<compile_context>
chip_gen: v5e
topology: v5e:2x2
jax: 0.10.0
libtpu: 0.0.40
codegen_flags: <defaults>
</compile_context>

<pallas_src>
import functools

import jax
import jax.numpy as jnp
from jax import lax
from jax.experimental import pallas as pl
from jax.experimental.pallas import tpu as pltpu

EPS = 1e-5
C1, C2 = 8, 16        # conv channel counts fixed by the module
KSIZE = 5             # 5x5 convolutions, padding=2


# -----------------------------------------------------------------------------
# One-off probe: resolve the pltpu.roll direction convention (outside the hot
# kernel, cached as a Python bool).  True == jnp.roll convention (elem i -> i+s).
# -----------------------------------------------------------------------------
@functools.cache
def _roll_moves_up():
    def probe(x_ref, o_ref):
        o_ref[...] = pltpu.roll(x_ref[...], 1, axis=1)

    try:
        with jax.ensure_compile_time_eval():
            x = jnp.tile(jnp.arange(128, dtype=jnp.float32)[None, :], (8, 1))
            y = pl.pallas_call(
                probe,
                out_shape=jax.ShapeDtypeStruct((8, 128), jnp.float32),
            )(x)
            return bool(y[0, 1] == 0.0)
    except Exception:
        return True  # best-known default (jnp.roll convention)


# -----------------------------------------------------------------------------
# Wrapper-side layout plumbing (gathers / permutations only, no arithmetic).
# -----------------------------------------------------------------------------
def _im2col_pool_major(x, N, H, W):
    """(N,3,H,W) -> (80, 4*(H//2)*(W//2)*N) conv1 im2col patch matrix (bf16).

    Columns:  col = p*LP + (ho*W2 + wo)*N + n  with p = dh*2+dw the position in
    the 2x2 pool window and LP = (H//2)*(W//2)*N, so max-pool after conv1 is an
    elementwise max of four lane-aligned blocks.  Rows: (kh*5+kw)*3 + ci (75->80).
    """
    H2, W2 = H // 2, W // 2
    xp = jnp.pad(x, ((0, 0), (0, 0), (2, 2), (2, 2)))
    taps = [xp[:, :, kh:kh + H, kw:kw + W]
            for kh in range(KSIZE) for kw in range(KSIZE)]        # 25 x (N,3,H,W)
    t = jnp.stack(taps, axis=0)                                   # (25,N,3,H,W)
    t = t.reshape(25, N, 3, H2, 2, W2, 2)                         # (t,n,ci,ho,dh,wo,dw)
    t = t.transpose(0, 2, 4, 6, 3, 5, 1)                          # (t,ci,dh,dw,ho,wo,n)
    p1 = t.reshape(25 * 3, 4 * H2 * W2 * N)
    p1 = jnp.pad(p1, ((0, 5), (0, 0)))                            # (80, 4*LP)
    return p1.astype(jnp.bfloat16)


def _to_kernel_params(p, S):
    """Torch-layout parameters -> packed, lane-dense kernel operands."""
    out_ch = p['fc3_w'].shape[0]
    f32 = jnp.float32
    w1 = jnp.transpose(p['conv1_w'], (0, 2, 3, 1)).reshape(C1, 25 * 3)
    w1 = jnp.pad(w1, ((0, 0), (0, 5))).astype(jnp.bfloat16)               # (8, 80)
    w2 = jnp.transpose(p['conv2_w'], (0, 2, 3, 1)).reshape(C2, 25 * C1)
    w2 = w2.astype(jnp.bfloat16)                                          # (16, 200)
    # fc1 weight reorganized per pooled spatial position s: (S, 128, C2)
    wf1 = p['fc1_w'].reshape(-1, C2, S).transpose(2, 0, 1).astype(jnp.bfloat16)
    wf2 = p['fc2_w'].astype(jnp.bfloat16)                                 # (128, 128)
    wf3 = p['fc3_w'].astype(jnp.bfloat16)                                 # (out_ch, 128)
    # conv-side per-channel params packed as (16, 6) columns [b1,g1,be1,b2,g2,be2]
    pad8 = lambda v: jnp.pad(v.astype(f32), (0, C2 - C1))
    cpar = jnp.stack([pad8(p['conv1_b']), pad8(p['bn1_g']), pad8(p['bn1_b']),
                      p['conv2_b'].astype(f32), p['bn2_g'].astype(f32),
                      p['bn2_b'].astype(f32)], axis=1)                    # (16, 6)
    # fc-side biases packed as (128, 3) columns [fc1_b, fc2_b, fc3_b (padded)]
    fcb = jnp.stack([p['fc1_b'].astype(f32), p['fc2_b'].astype(f32),
                     jnp.pad(p['fc3_b'].astype(f32), (0, 128 - out_ch))], axis=1)
    alphas = jnp.stack([p['prelu1_a'], p['prelu2_a'],
                        p['prelu3_a'], p['prelu4_a']]).astype(f32)        # (4,)
    return dict(alphas=alphas, w1m=w1, w2m=w2, cpar=cpar,
                wf1=wf1, wf2=wf2, wf3=wf3, fcb=fcb)


# -----------------------------------------------------------------------------
# Fused forward pass.
# -----------------------------------------------------------------------------
def embedding_net_forward(x_nchw, params):
    """EmbeddingNet forward; returns (N, out_channels) exactly like the nn.Module."""
    N, Cin, H, W = x_nchw.shape
    assert Cin == 3 and H % 4 == 0 and W % 4 == 0, (Cin, H, W)
    H2, W2, H3, W3 = H // 2, W // 2, H // 4, W // 4
    S = H3 * W3
    LP = H2 * W2 * N                      # lane extent after the first max-pool
    out_channels = params['fc3_w'].shape[0]
    assert out_channels <= 128

    roll_up = _roll_moves_up()            # python bool, resolved once at setup

    kp = _to_kernel_params(params, S)
    p1 = _im2col_pool_major(x_nchw.astype(jnp.float32), N, H, W)

    def kernel(alpha_ref,
               p1_ref, w1_ref, w2_ref, cpar_ref,
               wf1_ref, wf2_ref, wf3_ref, fcb_ref,
               out_ref):

        def prelu(v, a):
            return jnp.where(v >= 0, v, a * v)

        def bn_train(v, gamma, beta):
            # training-mode BatchNorm2d (batch stats, biased variance), single pass.
            # Lane reductions are done on the (otherwise idle) MXU.
            cols = v.shape[1]
            c = v.shape[0]
            ones_col = jnp.ones((cols, 1), dtype=jnp.float32)
            stacked = jnp.concatenate([v, v * v], axis=0)            # (2C, cols)
            sums = jnp.dot(stacked, ones_col,
                           preferred_element_type=jnp.float32)       # (2C, 1)
            inv_cnt = 1.0 / float(cols)
            mean = sums[:c] * inv_cnt
            ex2 = sums[c:] * inv_cnt
            var = ex2 - mean * mean
            scale = gamma * lax.rsqrt(var + EPS)
            shift = beta - mean * scale
            return v * scale + shift

        def lane_shift(v, delta):
            # out[:, j] = v[:, (j + delta) % LP]  (single XLU roll)
            d = delta % LP
            if d == 0:
                return v
            s = (LP - d) if roll_up else d
            return pltpu.roll(v, s, axis=1)

        # ---- unpack packed per-channel params (tiny static slices) -------------
        b1, g1, be1 = (cpar_ref[0:C1, 0:1], cpar_ref[0:C1, 1:2], cpar_ref[0:C1, 2:3])
        b2, g2, be2 = (cpar_ref[:, 3:4], cpar_ref[:, 4:5], cpar_ref[:, 5:6])
        b_fc1 = fcb_ref[:, 0:1]
        b_fc2 = fcb_ref[:, 1:2]
        b_fc3 = fcb_ref[0:out_channels, 2:3]

        # ---- conv1: one MXU matmul over the pool-position-major patch matrix ----
        x1 = jnp.dot(w1_ref[...], p1_ref[...],
                     preferred_element_type=jnp.float32)             # (8, 4*LP)
        x1 = prelu(x1 + b1, alpha_ref[0])
        x1 = bn_train(x1, g1, be1)

        # ---- maxpool1: elementwise max of the four pool-position lane blocks ----
        pooled = jnp.maximum(
            jnp.maximum(x1[:, 0 * LP:1 * LP], x1[:, 1 * LP:2 * LP]),
            jnp.maximum(x1[:, 2 * LP:3 * LP], x1[:, 3 * LP:4 * LP]))  # (8, LP)

        # ---- lane bookkeeping: col = (h2*W2 + w2)*N + n over the pooled grid ----
        lane = lax.broadcasted_iota(jnp.int32, (1, LP), 1).astype(jnp.float32)
        hh = jnp.floor(lane / float(W2 * N))
        ww = jnp.floor((lane - hh * float(W2 * N)) / float(N))

        # ---- conv2: im2col built in-register (one roll + one mask per tap) ------
        blocks = []
        for kh in range(KSIZE):
            for kw in range(KSIZE):
                dh, dw = kh - 2, kw - 2
                if dh == 0 and dw == 0:
                    blocks.append(pooled)
                    continue
                shifted = lane_shift(pooled, (dh * W2 + dw) * N)
                valid = ((hh >= float(-dh)) & (hh < float(H2 - dh)) &
                         (ww >= float(-dw)) & (ww < float(W2 - dw)))
                blocks.append(jnp.where(valid, shifted, 0.0))
        patches2 = jnp.concatenate(blocks, axis=0).astype(jnp.bfloat16)  # (200, LP)
        x2 = jnp.dot(w2_ref[...], patches2,
                     preferred_element_type=jnp.float32)             # (16, LP)
        x2 = prelu(x2 + b2, alpha_ref[1])
        x2 = bn_train(x2, g2, be2)

        # ---- maxpool2 via two lane rolls; valid results at even (h2, w2) --------
        m = jnp.maximum(x2, lane_shift(x2, N))
        m = jnp.maximum(m, lane_shift(m, W2 * N))                    # (16, LP)
        m_b = m.astype(jnp.bfloat16)

        # ---- fc1: accumulate S small MXU matmuls over per-position lane slices
        #      (no lanes->sublanes "xt" concat); torch (N,C,H,W) flatten order is
        #      folded into the per-position fc1 weight blocks ----------------------
        acc = None
        for h3 in range(H3):
            for w3 in range(W3):
                s = h3 * W3 + w3
                c0 = (2 * h3 * W2 + 2 * w3) * N
                ms = m_b[:, c0:c0 + N]                               # (16, N) bf16
                t = jnp.dot(wf1_ref[s], ms,
                            preferred_element_type=jnp.float32)      # (128, N)
                acc = t if acc is None else acc + t

        # ---- FC head (features on sublanes, batch on lanes), bf16 MXU operands --
        h1 = prelu(acc + b_fc1, alpha_ref[2])
        h2 = jnp.dot(wf2_ref[...], h1.astype(jnp.bfloat16),
                     preferred_element_type=jnp.float32)
        h2 = prelu(h2 + b_fc2, alpha_ref[3])
        out = jnp.dot(wf3_ref[...], h2.astype(jnp.bfloat16),
                      preferred_element_type=jnp.float32)
        out_ref[...] = (out + b_fc3).astype(out_ref.dtype)           # (out_ch, N)

    vmem_arrays = (p1, kp['w1m'], kp['w2m'], kp['cpar'],
                   kp['wf1'], kp['wf2'], kp['wf3'], kp['fcb'])

    def full_spec(a):
        if a.ndim == 2:
            return pl.BlockSpec(a.shape, lambda i: (0, 0))
        assert a.ndim == 3
        return pl.BlockSpec(a.shape, lambda i: (0, 0, 0))

    in_specs = ([pl.BlockSpec(memory_space=pltpu.MemorySpace.SMEM)] +  # PReLU alphas
                [full_spec(a) for a in vmem_arrays])

    out_t = pl.pallas_call(
        kernel,
        out_shape=jax.ShapeDtypeStruct((out_channels, N), jnp.float32),
        grid_spec=pltpu.PrefetchScalarGridSpec(
            num_scalar_prefetch=0,
            grid=(1,),
            in_specs=in_specs,
            out_specs=pl.BlockSpec((out_channels, N), lambda i: (0, 0)),
        ),
        compiler_params=pltpu.CompilerParams(
            dimension_semantics=("arbitrary",)),
    )(kp['alphas'], *vmem_arrays)

    return out_t.T                                                   # (N, out_channels)


# -----------------------------------------------------------------------------
# Pure-JAX reference (the PyTorch module spec, training-mode BN) + init + main.
# -----------------------------------------------------------------------------
def embedding_net_reference(x, p):
    def prelu(v, a):
        return jnp.where(v >= 0, v, a * v)

    def bn(v, g, b):
        mu = jnp.mean(v, axis=(0, 2, 3), keepdims=True)
        var = jnp.mean((v - mu) ** 2, axis=(0, 2, 3), keepdims=True)
        return ((v - mu) / jnp.sqrt(var + EPS)) * g.reshape(1, -1, 1, 1) + b.reshape(1, -1, 1, 1)

    def pool(v):
        return lax.reduce_window(v, jnp.array(-jnp.inf, v.dtype), lax.max,
                                 (1, 1, 2, 2), (1, 1, 2, 2), 'VALID')

    def conv(v, w, b):
        o = lax.conv_general_dilated(v, w, (1, 1), ((2, 2), (2, 2)),
                                     dimension_numbers=('NCHW', 'OIHW', 'NCHW'))
        return o + b.reshape(1, -1, 1, 1)

    v = pool(bn(prelu(conv(x, p['conv1_w'], p['conv1_b']), p['prelu1_a']),
                p['bn1_g'], p['bn1_b']))
    v = pool(bn(prelu(conv(v, p['conv2_w'], p['conv2_b']), p['prelu2_a']),
                p['bn2_g'], p['bn2_b']))
    v = v.reshape(v.shape[0], -1)
    v = prelu(v @ p['fc1_w'].T + p['fc1_b'], p['prelu3_a'])
    v = prelu(v @ p['fc2_w'].T + p['fc2_b'], p['prelu4_a'])
    return v @ p['fc3_w'].T + p['fc3_b']


def init_params(key, img_size=(16, 16), out_channels=32):
    H, W = img_size
    fc_in = 16 * (H // 4) * (W // 4)
    ks = jax.random.split(key, 8)
    nrm = lambda k, s, sc: (sc * jax.random.normal(k, s)).astype(jnp.float32)
    a = lambda: jnp.array(0.25, jnp.float32)          # nn.PReLU() default init
    return {
        'conv1_w': nrm(ks[0], (8, 3, 5, 5), 0.1), 'conv1_b': nrm(ks[1], (8,), 0.1),
        'prelu1_a': a(),
        'bn1_g': jnp.ones((8,), jnp.float32), 'bn1_b': jnp.zeros((8,), jnp.float32),
        'conv2_w': nrm(ks[2], (16, 8, 5, 5), 0.05), 'conv2_b': nrm(ks[3], (16,), 0.1),
        'prelu2_a': a(),
        'bn2_g': jnp.ones((16,), jnp.float32), 'bn2_b': jnp.zeros((16,), jnp.float32),
        'fc1_w': nrm(ks[4], (128, fc_in), 0.05), 'fc1_b': nrm(ks[5], (128,), 0.05),
        'prelu3_a': a(),
        'fc2_w': nrm(ks[6], (128, 128), 0.05), 'fc2_b': jnp.zeros((128,), jnp.float32),
        'prelu4_a': a(),
        'fc3_w': nrm(ks[7], (out_channels, 128), 0.05),
        'fc3_b': jnp.zeros((out_channels,), jnp.float32),
    }


if __name__ == "__main__":
    key = jax.random.PRNGKey(0)
    kx, kparam = jax.random.split(key)
    img_size = (16, 16)
    out_channels = 32

    x = jax.random.normal(kx, (2, 3, *img_size), dtype=jnp.float32)
    params = init_params(kparam, img_size, out_channels)

    _roll_moves_up()  # resolve the roll convention once, before jit tracing

    y = jax.jit(embedding_net_forward)(x, params)
    jax.block_until_ready(y)
    assert y.shape == (2, out_channels), y.shape

    # correctness check against the pure-JAX reference of the PyTorch module
    y_ref = embedding_net_reference(x, params)
    err = float(jnp.max(jnp.abs(y - y_ref)))
    assert err < 5e-2, f"kernel vs reference mismatch: max abs err = {err}"

    print("KERNEL_OK")
</pallas_src>

<mosaic_0001>
module attributes {stable_mosaic.version = 11 : i64} {
  func.func @probe(%arg0: memref<8x128xf32, #tpu.memory_space<vmem>>, %arg1: memref<8x128xf32, #tpu.memory_space<vmem>>) attributes {dimension_semantics = [], scalar_prefetch = 0 : i64, scratch_operands = 0 : i64, tpu.core_type = #tpu.core_type<tc>} {
    %c0 = arith.constant 0 : index
    %c0_0 = arith.constant 0 : index
    %0 = vector.load %arg0[%c0, %c0_0] : memref<8x128xf32, #tpu.memory_space<vmem>>, vector<8x128xf32>
    %c1_i32 = arith.constant 1 : i32
    %1 = tpu.dynamic_rotate %0 by %c1_i32 dim 1 : vector<8x128xf32>, i32 -> vector<8x128xf32>
    %c0_1 = arith.constant 0 : index
    %c0_2 = arith.constant 0 : index
    %2 = vector.load %arg1[%c0_1, %c0_2] : memref<8x128xf32, #tpu.memory_space<vmem>>, vector<8x128xf32>
    tpu.vector_store %arg1[%c0_1, %c0_2], %1 {strides = array<i32>} : memref<8x128xf32, #tpu.memory_space<vmem>>, vector<8x128xf32>,
    return
  }
}

module attributes {stable_mosaic.version = 11 : i64} {
  func.func @kernel(%arg0: i32, %arg1: memref<4xf32, #tpu.memory_space<smem>>, %arg2: memref<80x512xbf16, #tpu.memory_space<vmem>>, %arg3: memref<8x80xbf16, #tpu.memory_space<vmem>>, %arg4: memref<16x200xbf16, #tpu.memory_space<vmem>>, %arg5: memref<16x6xf32, #tpu.memory_space<vmem>>, %arg6: memref<16x128x16xbf16, #tpu.memory_space<vmem>>, %arg7: memref<128x128xbf16, #tpu.memory_space<vmem>>, %arg8: memref<32x128xbf16, #tpu.memory_space<vmem>>, %arg9: memref<128x3xf32, #tpu.memory_space<vmem>>, %arg10: memref<32x2xf32, #tpu.memory_space<vmem>>) attributes {dimension_semantics = [#tpu.dimension_semantics<arbitrary>], iteration_bounds = array<i64: 1>, scalar_prefetch = 0 : i64, scratch_operands = 0 : i64, tpu.core_type = #tpu.core_type<tc>, window_params = [{transform_indices = @transform_0, window_bounds = array<i64: 4>}, {pipeline_mode = #tpu.pipeline_mode<synchronous>, transform_indices = @transform_1, window_bounds = array<i64: 80, 512>}, {pipeline_mode = #tpu.pipeline_mode<synchronous>, transform_indices = @transform_2, window_bounds = array<i64: 8, 80>}, {pipeline_mode = #tpu.pipeline_mode<synchronous>, transform_indices = @transform_3, window_bounds = array<i64: 16, 200>}, {pipeline_mode = #tpu.pipeline_mode<synchronous>, transform_indices = @transform_4, window_bounds = array<i64: 16, 6>}, {pipeline_mode = #tpu.pipeline_mode<synchronous>, transform_indices = @transform_5, window_bounds = array<i64: 16, 128, 16>}, {pipeline_mode = #tpu.pipeline_mode<synchronous>, transform_indices = @transform_6, window_bounds = array<i64: 128, 128>}, {pipeline_mode = #tpu.pipeline_mode<synchronous>, transform_indices = @transform_7, window_bounds = array<i64: 32, 128>}, {pipeline_mode = #tpu.pipeline_mode<synchronous>, transform_indices = @transform_8, window_bounds = array<i64: 128, 3>}, {pipeline_mode = #tpu.pipeline_mode<synchronous>, transform_indices = @transform_9, window_bounds = array<i64: 32, 2>}]} {
    %c0 = arith.constant 0 : index
    %c0_0 = arith.constant 0 : index
    %0 = vector.load %arg5[%c0, %c0_0] : memref<16x6xf32, #tpu.memory_space<vmem>>, vector<8x1xf32>
    %c0_1 = arith.constant 0 : index
    %c1 = arith.constant 1 : index
    %1 = vector.load %arg5[%c0_1, %c1] : memref<16x6xf32, #tpu.memory_space<vmem>>, vector<8x1xf32>
    %c0_2 = arith.constant 0 : index
    %c2 = arith.constant 2 : index
    %2 = vector.load %arg5[%c0_2, %c2] : memref<16x6xf32, #tpu.memory_space<vmem>>, vector<8x1xf32>
    %c0_3 = arith.constant 0 : index
    %c3 = arith.constant 3 : index
    %3 = vector.load %arg5[%c0_3, %c3] : memref<16x6xf32, #tpu.memory_space<vmem>>, vector<16x1xf32>
    %c0_4 = arith.constant 0 : index
    %c4 = arith.constant 4 : index
    %4 = vector.load %arg5[%c0_4, %c4] : memref<16x6xf32, #tpu.memory_space<vmem>>, vector<16x1xf32>
    %c0_5 = arith.constant 0 : index
    %c5 = arith.constant 5 : index
    %5 = vector.load %arg5[%c0_5, %c5] : memref<16x6xf32, #tpu.memory_space<vmem>>, vector<16x1xf32>
    %c0_6 = arith.constant 0 : index
    %c0_7 = arith.constant 0 : index
    %6 = vector.load %arg9[%c0_6, %c0_7] : memref<128x3xf32, #tpu.memory_space<vmem>>, vector<128x1xf32>
    %c0_8 = arith.constant 0 : index
    %c1_9 = arith.constant 1 : index
    %7 = vector.load %arg9[%c0_8, %c1_9] : memref<128x3xf32, #tpu.memory_space<vmem>>, vector<128x1xf32>
    %c0_10 = arith.constant 0 : index
    %c2_11 = arith.constant 2 : index
    %8 = vector.load %arg9[%c0_10, %c2_11] : memref<128x3xf32, #tpu.memory_space<vmem>>, vector<32x1xf32>
    %c0_12 = arith.constant 0 : index
    %c0_13 = arith.constant 0 : index
    %9 = vector.load %arg3[%c0_12, %c0_13] : memref<8x80xbf16, #tpu.memory_space<vmem>>, vector<8x80xbf16>
    %c0_14 = arith.constant 0 : index
    %c0_15 = arith.constant 0 : index
    %10 = vector.load %arg2[%c0_14, %c0_15] : memref<80x512xbf16, #tpu.memory_space<vmem>>, vector<80x512xbf16>
    %cst = arith.constant dense<0.000000e+00> : vector<8x512xf32>
    %11 = tpu.matmul %9, %10, %cst {dimension_numbers = #tpu.dot_dimension_numbers<[1], [0], [0], [1], [0, 0, 1, 1], [], []>} : vector<8x80xbf16>, vector<80x512xbf16>, vector<8x512xf32> -> vector<8x512xf32>
    %12 = vector.broadcast %0 : vector<8x1xf32> to vector<8x512xf32>
    %13 = arith.addf %11, %12 : vector<8x512xf32>
    %c0_16 = arith.constant 0 : index
    %14 = memref.load %arg1[%c0_16] : memref<4xf32, #tpu.memory_space<smem>>
    %cst_17 = arith.constant 0.000000e+00 : f32
    %15 = vector.broadcast %cst_17 : f32 to vector<8x512xf32>
    %16 = arith.cmpf oge, %13, %15 : vector<8x512xf32>
    %17 = vector.broadcast %14 : f32 to vector<8x512xf32>
    %18 = arith.mulf %17, %13 : vector<8x512xf32>
    %19 = arith.select %16, %13, %18 : vector<8x512xi1>, vector<8x512xf32>
    %cst_18 = arith.constant 1.000000e+00 : f32
    %20 = vector.broadcast %cst_18 : f32 to vector<512x1xf32>
    %21 = arith.mulf %19, %19 : vector<8x512xf32>
    %22 = tpu.concatenate %19, %21 in 0 : vector<8x512xf32>, vector<8x512xf32> -> vector<16x512xf32>
    %cst_19 = arith.constant dense<0.000000e+00> : vector<16x1xf32>
    %23 = tpu.matmul %22, %20, %cst_19 {dimension_numbers = #tpu.dot_dimension_numbers<[1], [0], [0], [1], [0, 0, 1, 1], [], []>} : vector<16x512xf32>, vector<512x1xf32>, vector<16x1xf32> -> vector<16x1xf32>
    %24 = vector.extract_strided_slice %23 {offsets = [0, 0], sizes = [8, 1], strides = [1, 1]} : vector<16x1xf32> to vector<8x1xf32>
    %cst_20 = arith.constant 0.001953125 : f32
    %25 = vector.broadcast %cst_20 : f32 to vector<8x1xf32>
    %26 = arith.mulf %24, %25 : vector<8x1xf32>
    %27 = vector.extract_strided_slice %23 {offsets = [8, 0], sizes = [8, 1], strides = [1, 1]} : vector<16x1xf32> to vector<8x1xf32>
    %cst_21 = arith.constant 0.001953125 : f32
    %28 = vector.broadcast %cst_21 : f32 to vector<8x1xf32>
    %29 = arith.mulf %27, %28 : vector<8x1xf32>
    %30 = arith.mulf %26, %26 : vector<8x1xf32>
    %31 = arith.subf %29, %30 : vector<8x1xf32>
    %cst_22 = arith.constant 9.99999974E-6 : f32
    %32 = vector.broadcast %cst_22 : f32 to vector<8x1xf32>
    %33 = arith.addf %31, %32 : vector<8x1xf32>
    %34 = math.rsqrt %33 : vector<8x1xf32>
    %35 = arith.mulf %1, %34 : vector<8x1xf32>
    %36 = arith.mulf %26, %35 : vector<8x1xf32>
    %37 = arith.subf %2, %36 : vector<8x1xf32>
    %38 = vector.broadcast %35 : vector<8x1xf32> to vector<8x512xf32>
    %39 = arith.mulf %19, %38 : vector<8x512xf32>
    %40 = vector.broadcast %37 : vector<8x1xf32> to vector<8x512xf32>
    %41 = arith.addf %39, %40 : vector<8x512xf32>
    %42 = vector.extract_strided_slice %41 {offsets = [0, 0], sizes = [8, 128], strides = [1, 1]} : vector<8x512xf32> to vector<8x128xf32>
    %43 = vector.extract_strided_slice %41 {offsets = [0, 128], sizes = [8, 128], strides = [1, 1]} : vector<8x512xf32> to vector<8x128xf32>
    %44 = arith.maximumf %42, %43 : vector<8x128xf32>
    %45 = vector.extract_strided_slice %41 {offsets = [0, 256], sizes = [8, 128], strides = [1, 1]} : vector<8x512xf32> to vector<8x128xf32>
    %46 = vector.extract_strided_slice %41 {offsets = [0, 384], sizes = [8, 128], strides = [1, 1]} : vector<8x512xf32> to vector<8x128xf32>
    %47 = arith.maximumf %45, %46 : vector<8x128xf32>
    %48 = arith.maximumf %44, %47 : vector<8x128xf32>
    %49 = tpu.iota {dimensions = array<i32: 1>} : vector<1x128xi32>
    %50 = arith.sitofp %49 : vector<1x128xi32> to vector<1x128xf32>
    %cst_23 = arith.constant 1.600000e+01 : f32
    %51 = vector.broadcast %cst_23 : f32 to vector<1x128xf32>
    %52 = arith.divf %50, %51 : vector<1x128xf32>
    %53 = math.floor %52 : vector<1x128xf32>
    %cst_24 = arith.constant 1.600000e+01 : f32
    %54 = vector.broadcast %cst_24 : f32 to vector<1x128xf32>
    %55 = arith.mulf %53, %54 : vector<1x128xf32>
    %56 = arith.subf %50, %55 : vector<1x128xf32>
    %cst_25 = arith.constant 2.000000e+00 : f32
    %57 = vector.broadcast %cst_25 : f32 to vector<1x128xf32>
    %58 = arith.divf %56, %57 : vector<1x128xf32>
    %59 = math.floor %58 : vector<1x128xf32>
    %c36_i32 = arith.constant 36 : i32
    %60 = tpu.dynamic_rotate %48 by %c36_i32 dim 1 : vector<8x128xf32>, i32 -> vector<8x128xf32>
    %cst_26 = arith.constant 2.000000e+00 : f32
    %61 = vector.broadcast %cst_26 : f32 to vector<1x128xf32>
    %62 = arith.cmpf oge, %53, %61 : vector<1x128xf32>
    %cst_27 = arith.constant 1.000000e+01 : f32
    %63 = vector.broadcast %cst_27 : f32 to vector<1x128xf32>
    %64 = arith.cmpf olt, %53, %63 : vector<1x128xf32>
    %65 = arith.andi %62, %64 : vector<1x128xi1>
    %cst_28 = arith.constant 2.000000e+00 : f32
    %66 = vector.broadcast %cst_28 : f32 to vector<1x128xf32>
    %67 = arith.cmpf oge, %59, %66 : vector<1x128xf32>
    %68 = arith.andi %65, %67 : vector<1x128xi1>
    %cst_29 = arith.constant 1.000000e+01 : f32
    %69 = vector.broadcast %cst_29 : f32 to vector<1x128xf32>
    %70 = arith.cmpf olt, %59, %69 : vector<1x128xf32>
    %71 = arith.andi %68, %70 : vector<1x128xi1>
    %cst_30 = arith.constant 0.000000e+00 : f32
    %72 = vector.shape_cast %71 : vector<1x128xi1> to vector<1x128xi1>
    %73 = vector.broadcast %72 : vector<1x128xi1> to vector<8x128xi1>
    %74 = vector.broadcast %cst_30 : f32 to vector<8x128xf32>
    %75 = arith.select %73, %60, %74 : vector<8x128xi1>, vector<8x128xf32>
    %c34_i32 = arith.constant 34 : i32
    %76 = tpu.dynamic_rotate %48 by %c34_i32 dim 1 : vector<8x128xf32>, i32 -> vector<8x128xf32>
    %cst_31 = arith.constant 2.000000e+00 : f32
    %77 = vector.broadcast %cst_31 : f32 to vector<1x128xf32>
    %78 = arith.cmpf oge, %53, %77 : vector<1x128xf32>
    %cst_32 = arith.constant 1.000000e+01 : f32
    %79 = vector.broadcast %cst_32 : f32 to vector<1x128xf32>
    %80 = arith.cmpf olt, %53, %79 : vector<1x128xf32>
    %81 = arith.andi %78, %80 : vector<1x128xi1>
    %cst_33 = arith.constant 1.000000e+00 : f32
    %82 = vector.broadcast %cst_33 : f32 to vector<1x128xf32>
    %83 = arith.cmpf oge, %59, %82 : vector<1x128xf32>
    %84 = arith.andi %81, %83 : vector<1x128xi1>
    %cst_34 = arith.constant 9.000000e+00 : f32
    %85 = vector.broadcast %cst_34 : f32 to vector<1x128xf32>
    %86 = arith.cmpf olt, %59, %85 : vector<1x128xf32>
    %87 = arith.andi %84, %86 : vector<1x128xi1>
    %cst_35 = arith.constant 0.000000e+00 : f32
    %88 = vector.shape_cast %87 : vector<1x128xi1> to vector<1x128xi1>
    %89 = vector.broadcast %88 : vector<1x128xi1> to vector<8x128xi1>
    %90 = vector.broadcast %cst_35 : f32 to vector<8x128xf32>
    %91 = arith.select %89, %76, %90 : vector<8x128xi1>, vector<8x128xf32>
    %c32_i32 = arith.constant 32 : i32
    %92 = tpu.dynamic_rotate %48 by %c32_i32 dim 1 : vector<8x128xf32>, i32 -> vector<8x128xf32>
    %cst_36 = arith.constant 2.000000e+00 : f32
    %93 = vector.broadcast %cst_36 : f32 to vector<1x128xf32>
    %94 = arith.cmpf oge, %53, %93 : vector<1x128xf32>
    %cst_37 = arith.constant 1.000000e+01 : f32
    %95 = vector.broadcast %cst_37 : f32 to vector<1x128xf32>
    %96 = arith.cmpf olt, %53, %95 : vector<1x128xf32>
    %97 = arith.andi %94, %96 : vector<1x128xi1>
    %cst_38 = arith.constant 0.000000e+00 : f32
    %98 = vector.broadcast %cst_38 : f32 to vector<1x128xf32>
    %99 = arith.cmpf oge, %59, %98 : vector<1x128xf32>
    %100 = arith.andi %97, %99 : vector<1x128xi1>
    %cst_39 = arith.constant 8.000000e+00 : f32
    %101 = vector.broadcast %cst_39 : f32 to vector<1x128xf32>
    %102 = arith.cmpf olt, %59, %101 : vector<1x128xf32>
    %103 = arith.andi %100, %102 : vector<1x128xi1>
    %cst_40 = arith.constant 0.000000e+00 : f32
    %104 = vector.shape_cast %103 : vector<1x128xi1> to vector<1x128xi1>
    %105 = vector.broadcast %104 : vector<1x128xi1> to vector<8x128xi1>
    %106 = vector.broadcast %cst_40 : f32 to vector<8x128xf32>
    %107 = arith.select %105, %92, %106 : vector<8x128xi1>, vector<8x128xf32>
    %c30_i32 = arith.constant 30 : i32
    %108 = tpu.dynamic_rotate %48 by %c30_i32 dim 1 : vector<8x128xf32>, i32 -> vector<8x128xf32>
    %cst_41 = arith.constant 2.000000e+00 : f32
    %109 = vector.broadcast %cst_41 : f32 to vector<1x128xf32>
    %110 = arith.cmpf oge, %53, %109 : vector<1x128xf32>
    %cst_42 = arith.constant 1.000000e+01 : f32
    %111 = vector.broadcast %cst_42 : f32 to vector<1x128xf32>
    %112 = arith.cmpf olt, %53, %111 : vector<1x128xf32>
    %113 = arith.andi %110, %112 : vector<1x128xi1>
    %cst_43 = arith.constant -1.000000e+00 : f32
    %114 = vector.broadcast %cst_43 : f32 to vector<1x128xf32>
    %115 = arith.cmpf oge, %59, %114 : vector<1x128xf32>
    %116 = arith.andi %113, %115 : vector<1x128xi1>
    %cst_44 = arith.constant 7.000000e+00 : f32
    %117 = vector.broadcast %cst_44 : f32 to vector<1x128xf32>
    %118 = arith.cmpf olt, %59, %117 : vector<1x128xf32>
    %119 = arith.andi %116, %118 : vector<1x128xi1>
    %cst_45 = arith.constant 0.000000e+00 : f32
    %120 = vector.shape_cast %119 : vector<1x128xi1> to vector<1x128xi1>
    %121 = vector.broadcast %120 : vector<1x128xi1> to vector<8x128xi1>
    %122 = vector.broadcast %cst_45 : f32 to vector<8x128xf32>
    %123 = arith.select %121, %108, %122 : vector<8x128xi1>, vector<8x128xf32>
    %c28_i32 = arith.constant 28 : i32
    %124 = tpu.dynamic_rotate %48 by %c28_i32 dim 1 : vector<8x128xf32>, i32 -> vector<8x128xf32>
    %cst_46 = arith.constant 2.000000e+00 : f32
    %125 = vector.broadcast %cst_46 : f32 to vector<1x128xf32>
    %126 = arith.cmpf oge, %53, %125 : vector<1x128xf32>
    %cst_47 = arith.constant 1.000000e+01 : f32
    %127 = vector.broadcast %cst_47 : f32 to vector<1x128xf32>
    %128 = arith.cmpf olt, %53, %127 : vector<1x128xf32>
    %129 = arith.andi %126, %128 : vector<1x128xi1>
    %cst_48 = arith.constant -2.000000e+00 : f32
    %130 = vector.broadcast %cst_48 : f32 to vector<1x128xf32>
    %131 = arith.cmpf oge, %59, %130 : vector<1x128xf32>
    %132 = arith.andi %129, %131 : vector<1x128xi1>
    %cst_49 = arith.constant 6.000000e+00 : f32
    %133 = vector.broadcast %cst_49 : f32 to vector<1x128xf32>
    %134 = arith.cmpf olt, %59, %133 : vector<1x128xf32>
    %135 = arith.andi %132, %134 : vector<1x128xi1>
    %cst_50 = arith.constant 0.000000e+00 : f32
    %136 = vector.shape_cast %135 : vector<1x128xi1> to vector<1x128xi1>
    %137 = vector.broadcast %136 : vector<1x128xi1> to vector<8x128xi1>
    %138 = vector.broadcast %cst_50 : f32 to vector<8x128xf32>
    %139 = arith.select %137, %124, %138 : vector<8x128xi1>, vector<8x128xf32>
    %c20_i32 = arith.constant 20 : i32
    %140 = tpu.dynamic_rotate %48 by %c20_i32 dim 1 : vector<8x128xf32>, i32 -> vector<8x128xf32>
    %cst_51 = arith.constant 1.000000e+00 : f32
    %141 = vector.broadcast %cst_51 : f32 to vector<1x128xf32>
    %142 = arith.cmpf oge, %53, %141 : vector<1x128xf32>
    %cst_52 = arith.constant 9.000000e+00 : f32
    %143 = vector.broadcast %cst_52 : f32 to vector<1x128xf32>
    %144 = arith.cmpf olt, %53, %143 : vector<1x128xf32>
    %145 = arith.andi %142, %144 : vector<1x128xi1>
    %cst_53 = arith.constant 2.000000e+00 : f32
    %146 = vector.broadcast %cst_53 : f32 to vector<1x128xf32>
    %147 = arith.cmpf oge, %59, %146 : vector<1x128xf32>
    %148 = arith.andi %145, %147 : vector<1x128xi1>
    %cst_54 = arith.constant 1.000000e+01 : f32
    %149 = vector.broadcast %cst_54 : f32 to vector<1x128xf32>
    %150 = arith.cmpf olt, %59, %149 : vector<1x128xf32>
    %151 = arith.andi %148, %150 : vector<1x128xi1>
    %cst_55 = arith.constant 0.000000e+00 : f32
    %152 = vector.shape_cast %151 : vector<1x128xi1> to vector<1x128xi1>
    %153 = vector.broadcast %152 : vector<1x128xi1> to vector<8x128xi1>
    %154 = vector.broadcast %cst_55 : f32 to vector<8x128xf32>
    %155 = arith.select %153, %140, %154 : vector<8x128xi1>, vector<8x128xf32>
    %c18_i32 = arith.constant 18 : i32
    %156 = tpu.dynamic_rotate %48 by %c18_i32 dim 1 : vector<8x128xf32>, i32 -> vector<8x128xf32>
    %cst_56 = arith.constant 1.000000e+00 : f32
    %157 = vector.broadcast %cst_56 : f32 to vector<1x128xf32>
    %158 = arith.cmpf oge, %53, %157 : vector<1x128xf32>
    %cst_57 = arith.constant 9.000000e+00 : f32
    %159 = vector.broadcast %cst_57 : f32 to vector<1x128xf32>
    %160 = arith.cmpf olt, %53, %159 : vector<1x128xf32>
    %161 = arith.andi %158, %160 : vector<1x128xi1>
    %cst_58 = arith.constant 1.000000e+00 : f32
    %162 = vector.broadcast %cst_58 : f32 to vector<1x128xf32>
    %163 = arith.cmpf oge, %59, %162 : vector<1x128xf32>
    %164 = arith.andi %161, %163 : vector<1x128xi1>
    %cst_59 = arith.constant 9.000000e+00 : f32
    %165 = vector.broadcast %cst_59 : f32 to vector<1x128xf32>
    %166 = arith.cmpf olt, %59, %165 : vector<1x128xf32>
    %167 = arith.andi %164, %166 : vector<1x128xi1>
    %cst_60 = arith.constant 0.000000e+00 : f32
    %168 = vector.shape_cast %167 : vector<1x128xi1> to vector<1x128xi1>
    %169 = vector.broadcast %168 : vector<1x128xi1> to vector<8x128xi1>
    %170 = vector.broadcast %cst_60 : f32 to vector<8x128xf32>
    %171 = arith.select %169, %156, %170 : vector<8x128xi1>, vector<8x128xf32>
    %c16_i32 = arith.constant 16 : i32
    %172 = tpu.dynamic_rotate %48 by %c16_i32 dim 1 : vector<8x128xf32>, i32 -> vector<8x128xf32>
    %cst_61 = arith.constant 1.000000e+00 : f32
    %173 = vector.broadcast %cst_61 : f32 to vector<1x128xf32>
    %174 = arith.cmpf oge, %53, %173 : vector<1x128xf32>
    %cst_62 = arith.constant 9.000000e+00 : f32
    %175 = vector.broadcast %cst_62 : f32 to vector<1x128xf32>
    %176 = arith.cmpf olt, %53, %175 : vector<1x128xf32>
    %177 = arith.andi %174, %176 : vector<1x128xi1>
    %cst_63 = arith.constant 0.000000e+00 : f32
    %178 = vector.broadcast %cst_63 : f32 to vector<1x128xf32>
    %179 = arith.cmpf oge, %59, %178 : vector<1x128xf32>
    %180 = arith.andi %177, %179 : vector<1x128xi1>
    %cst_64 = arith.constant 8.000000e+00 : f32
    %181 = vector.broadcast %cst_64 : f32 to vector<1x128xf32>
    %182 = arith.cmpf olt, %59, %181 : vector<1x128xf32>
    %183 = arith.andi %180, %182 : vector<1x128xi1>
    %cst_65 = arith.constant 0.000000e+00 : f32
    %184 = vector.shape_cast %183 : vector<1x128xi1> to vector<1x128xi1>
    %185 = vector.broadcast %184 : vector<1x128xi1> to vector<8x128xi1>
    %186 = vector.broadcast %cst_65 : f32 to vector<8x128xf32>
    %187 = arith.select %185, %172, %186 : vector<8x128xi1>, vector<8x128xf32>
    %c14_i32 = arith.constant 14 : i32
    %188 = tpu.dynamic_rotate %48 by %c14_i32 dim 1 : vector<8x128xf32>, i32 -> vector<8x128xf32>
    %cst_66 = arith.constant 1.000000e+00 : f32
    %189 = vector.broadcast %cst_66 : f32 to vector<1x128xf32>
    %190 = arith.cmpf oge, %53, %189 : vector<1x128xf32>
    %cst_67 = arith.constant 9.000000e+00 : f32
    %191 = vector.broadcast %cst_67 : f32 to vector<1x128xf32>
    %192 = arith.cmpf olt, %53, %191 : vector<1x128xf32>
    %193 = arith.andi %190, %192 : vector<1x128xi1>
    %cst_68 = arith.constant -1.000000e+00 : f32
    %194 = vector.broadcast %cst_68 : f32 to vector<1x128xf32>
    %195 = arith.cmpf oge, %59, %194 : vector<1x128xf32>
    %196 = arith.andi %193, %195 : vector<1x128xi1>
    %cst_69 = arith.constant 7.000000e+00 : f32
    %197 = vector.broadcast %cst_69 : f32 to vector<1x128xf32>
    %198 = arith.cmpf olt, %59, %197 : vector<1x128xf32>
    %199 = arith.andi %196, %198 : vector<1x128xi1>
    %cst_70 = arith.constant 0.000000e+00 : f32
    %200 = vector.shape_cast %199 : vector<1x128xi1> to vector<1x128xi1>
    %201 = vector.broadcast %200 : vector<1x128xi1> to vector<8x128xi1>
    %202 = vector.broadcast %cst_70 : f32 to vector<8x128xf32>
    %203 = arith.select %201, %188, %202 : vector<8x128xi1>, vector<8x128xf32>
    %c12_i32 = arith.constant 12 : i32
    %204 = tpu.dynamic_rotate %48 by %c12_i32 dim 1 : vector<8x128xf32>, i32 -> vector<8x128xf32>
    %cst_71 = arith.constant 1.000000e+00 : f32
    %205 = vector.broadcast %cst_71 : f32 to vector<1x128xf32>
    %206 = arith.cmpf oge, %53, %205 : vector<1x128xf32>
    %cst_72 = arith.constant 9.000000e+00 : f32
    %207 = vector.broadcast %cst_72 : f32 to vector<1x128xf32>
    %208 = arith.cmpf olt, %53, %207 : vector<1x128xf32>
    %209 = arith.andi %206, %208 : vector<1x128xi1>
    %cst_73 = arith.constant -2.000000e+00 : f32
    %210 = vector.broadcast %cst_73 : f32 to vector<1x128xf32>
    %211 = arith.cmpf oge, %59, %210 : vector<1x128xf32>
    %212 = arith.andi %209, %211 : vector<1x128xi1>
    %cst_74 = arith.constant 6.000000e+00 : f32
    %213 = vector.broadcast %cst_74 : f32 to vector<1x128xf32>
    %214 = arith.cmpf olt, %59, %213 : vector<1x128xf32>
    %215 = arith.andi %212, %214 : vector<1x128xi1>
    %cst_75 = arith.constant 0.000000e+00 : f32
    %216 = vector.shape_cast %215 : vector<1x128xi1> to vector<1x128xi1>
    %217 = vector.broadcast %216 : vector<1x128xi1> to vector<8x128xi1>
    %218 = vector.broadcast %cst_75 : f32 to vector<8x128xf32>
    %219 = arith.select %217, %204, %218 : vector<8x128xi1>, vector<8x128xf32>
    %c4_i32 = arith.constant 4 : i32
    %220 = tpu.dynamic_rotate %48 by %c4_i32 dim 1 : vector<8x128xf32>, i32 -> vector<8x128xf32>
    %cst_76 = arith.constant 0.000000e+00 : f32
    %221 = vector.broadcast %cst_76 : f32 to vector<1x128xf32>
    %222 = arith.cmpf oge, %53, %221 : vector<1x128xf32>
    %cst_77 = arith.constant 8.000000e+00 : f32
    %223 = vector.broadcast %cst_77 : f32 to vector<1x128xf32>
    %224 = arith.cmpf olt, %53, %223 : vector<1x128xf32>
    %225 = arith.andi %222, %224 : vector<1x128xi1>
    %cst_78 = arith.constant 2.000000e+00 : f32
    %226 = vector.broadcast %cst_78 : f32 to vector<1x128xf32>
    %227 = arith.cmpf oge, %59, %226 : vector<1x128xf32>
    %228 = arith.andi %225, %227 : vector<1x128xi1>
    %cst_79 = arith.constant 1.000000e+01 : f32
    %229 = vector.broadcast %cst_79 : f32 to vector<1x128xf32>
    %230 = arith.cmpf olt, %59, %229 : vector<1x128xf32>
    %231 = arith.andi %228, %230 : vector<1x128xi1>
    %cst_80 = arith.constant 0.000000e+00 : f32
    %232 = vector.shape_cast %231 : vector<1x128xi1> to vector<1x128xi1>
    %233 = vector.broadcast %232 : vector<1x128xi1> to vector<8x128xi1>
    %234 = vector.broadcast %cst_80 : f32 to vector<8x128xf32>
    %235 = arith.select %233, %220, %234 : vector<8x128xi1>, vector<8x128xf32>
    %c2_i32 = arith.constant 2 : i32
    %236 = tpu.dynamic_rotate %48 by %c2_i32 dim 1 : vector<8x128xf32>, i32 -> vector<8x128xf32>
    %cst_81 = arith.constant 0.000000e+00 : f32
    %237 = vector.broadcast %cst_81 : f32 to vector<1x128xf32>
    %238 = arith.cmpf oge, %53, %237 : vector<1x128xf32>
    %cst_82 = arith.constant 8.000000e+00 : f32
    %239 = vector.broadcast %cst_82 : f32 to vector<1x128xf32>
    %240 = arith.cmpf olt, %53, %239 : vector<1x128xf32>
    %241 = arith.andi %238, %240 : vector<1x128xi1>
    %cst_83 = arith.constant 1.000000e+00 : f32
    %242 = vector.broadcast %cst_83 : f32 to vector<1x128xf32>
    %243 = arith.cmpf oge, %59, %242 : vector<1x128xf32>
    %244 = arith.andi %241, %243 : vector<1x128xi1>
    %cst_84 = arith.constant 9.000000e+00 : f32
    %245 = vector.broadcast %cst_84 : f32 to vector<1x128xf32>
    %246 = arith.cmpf olt, %59, %245 : vector<1x128xf32>
    %247 = arith.andi %244, %246 : vector<1x128xi1>
    %cst_85 = arith.constant 0.000000e+00 : f32
    %248 = vector.shape_cast %247 : vector<1x128xi1> to vector<1x128xi1>
    %249 = vector.broadcast %248 : vector<1x128xi1> to vector<8x128xi1>
    %250 = vector.broadcast %cst_85 : f32 to vector<8x128xf32>
    %251 = arith.select %249, %236, %250 : vector<8x128xi1>, vector<8x128xf32>
    %c126_i32 = arith.constant 126 : i32
    %252 = tpu.dynamic_rotate %48 by %c126_i32 dim 1 : vector<8x128xf32>, i32 -> vector<8x128xf32>
    %cst_86 = arith.constant 0.000000e+00 : f32
    %253 = vector.broadcast %cst_86 : f32 to vector<1x128xf32>
    %254 = arith.cmpf oge, %53, %253 : vector<1x128xf32>
    %cst_87 = arith.constant 8.000000e+00 : f32
    %255 = vector.broadcast %cst_87 : f32 to vector<1x128xf32>
    %256 = arith.cmpf olt, %53, %255 : vector<1x128xf32>
    %257 = arith.andi %254, %256 : vector<1x128xi1>
    %cst_88 = arith.constant -1.000000e+00 : f32
    %258 = vector.broadcast %cst_88 : f32 to vector<1x128xf32>
    %259 = arith.cmpf oge, %59, %258 : vector<1x128xf32>
    %260 = arith.andi %257, %259 : vector<1x128xi1>
    %cst_89 = arith.constant 7.000000e+00 : f32
    %261 = vector.broadcast %cst_89 : f32 to vector<1x128xf32>
    %262 = arith.cmpf olt, %59, %261 : vector<1x128xf32>
    %263 = arith.andi %260, %262 : vector<1x128xi1>
    %cst_90 = arith.constant 0.000000e+00 : f32
    %264 = vector.shape_cast %263 : vector<1x128xi1> to vector<1x128xi1>
    %265 = vector.broadcast %264 : vector<1x128xi1> to vector<8x128xi1>
    %266 = vector.broadcast %cst_90 : f32 to vector<8x128xf32>
    %267 = arith.select %265, %252, %266 : vector<8x128xi1>, vector<8x128xf32>
    %c124_i32 = arith.constant 124 : i32
    %268 = tpu.dynamic_rotate %48 by %c124_i32 dim 1 : vector<8x128xf32>, i32 -> vector<8x128xf32>
    %cst_91 = arith.constant 0.000000e+00 : f32
    %269 = vector.broadcast %cst_91 : f32 to vector<1x128xf32>
    %270 = arith.cmpf oge, %53, %269 : vector<1x128xf32>
    %cst_92 = arith.constant 8.000000e+00 : f32
    %271 = vector.broadcast %cst_92 : f32 to vector<1x128xf32>
    %272 = arith.cmpf olt, %53, %271 : vector<1x128xf32>
    %273 = arith.andi %270, %272 : vector<1x128xi1>
    %cst_93 = arith.constant -2.000000e+00 : f32
    %274 = vector.broadcast %cst_93 : f32 to vector<1x128xf32>
    %275 = arith.cmpf oge, %59, %274 : vector<1x128xf32>
    %276 = arith.andi %273, %275 : vector<1x128xi1>
    %cst_94 = arith.constant 6.000000e+00 : f32
    %277 = vector.broadcast %cst_94 : f32 to vector<1x128xf32>
    %278 = arith.cmpf olt, %59, %277 : vector<1x128xf32>
    %279 = arith.andi %276, %278 : vector<1x128xi1>
    %cst_95 = arith.constant 0.000000e+00 : f32
    %280 = vector.shape_cast %279 : vector<1x128xi1> to vector<1x128xi1>
    %281 = vector.broadcast %280 : vector<1x128xi1> to vector<8x128xi1>
    %282 = vector.broadcast %cst_95 : f32 to vector<8x128xf32>
    %283 = arith.select %281, %268, %282 : vector<8x128xi1>, vector<8x128xf32>
    %c116_i32 = arith.constant 116 : i32
    %284 = tpu.dynamic_rotate %48 by %c116_i32 dim 1 : vector<8x128xf32>, i32 -> vector<8x128xf32>
    %cst_96 = arith.constant -1.000000e+00 : f32
    %285 = vector.broadcast %cst_96 : f32 to vector<1x128xf32>
    %286 = arith.cmpf oge, %53, %285 : vector<1x128xf32>
    %cst_97 = arith.constant 7.000000e+00 : f32
    %287 = vector.broadcast %cst_97 : f32 to vector<1x128xf32>
    %288 = arith.cmpf olt, %53, %287 : vector<1x128xf32>
    %289 = arith.andi %286, %288 : vector<1x128xi1>
    %cst_98 = arith.constant 2.000000e+00 : f32
    %290 = vector.broadcast %cst_98 : f32 to vector<1x128xf32>
    %291 = arith.cmpf oge, %59, %290 : vector<1x128xf32>
    %292 = arith.andi %289, %291 : vector<1x128xi1>
    %cst_99 = arith.constant 1.000000e+01 : f32
    %293 = vector.broadcast %cst_99 : f32 to vector<1x128xf32>
    %294 = arith.cmpf olt, %59, %293 : vector<1x128xf32>
    %295 = arith.andi %292, %294 : vector<1x128xi1>
    %cst_100 = arith.constant 0.000000e+00 : f32
    %296 = vector.shape_cast %295 : vector<1x128xi1> to vector<1x128xi1>
    %297 = vector.broadcast %296 : vector<1x128xi1> to vector<8x128xi1>
    %298 = vector.broadcast %cst_100 : f32 to vector<8x128xf32>
    %299 = arith.select %297, %284, %298 : vector<8x128xi1>, vector<8x128xf32>
    %c114_i32 = arith.constant 114 : i32
    %300 = tpu.dynamic_rotate %48 by %c114_i32 dim 1 : vector<8x128xf32>, i32 -> vector<8x128xf32>
    %cst_101 = arith.constant -1.000000e+00 : f32
    %301 = vector.broadcast %cst_101 : f32 to vector<1x128xf32>
    %302 = arith.cmpf oge, %53, %301 : vector<1x128xf32>
    %cst_102 = arith.constant 7.000000e+00 : f32
    %303 = vector.broadcast %cst_102 : f32 to vector<1x128xf32>
    %304 = arith.cmpf olt, %53, %303 : vector<1x128xf32>
    %305 = arith.andi %302, %304 : vector<1x128xi1>
    %cst_103 = arith.constant 1.000000e+00 : f32
    %306 = vector.broadcast %cst_103 : f32 to vector<1x128xf32>
    %307 = arith.cmpf oge, %59, %306 : vector<1x128xf32>
    %308 = arith.andi %305, %307 : vector<1x128xi1>
    %cst_104 = arith.constant 9.000000e+00 : f32
    %309 = vector.broadcast %cst_104 : f32 to vector<1x128xf32>
    %310 = arith.cmpf olt, %59, %309 : vector<1x128xf32>
    %311 = arith.andi %308, %310 : vector<1x128xi1>
    %cst_105 = arith.constant 0.000000e+00 : f32
    %312 = vector.shape_cast %311 : vector<1x128xi1> to vector<1x128xi1>
    %313 = vector.broadcast %312 : vector<1x128xi1> to vector<8x128xi1>
    %314 = vector.broadcast %cst_105 : f32 to vector<8x128xf32>
    %315 = arith.select %313, %300, %314 : vector<8x128xi1>, vector<8x128xf32>
    %c112_i32 = arith.constant 112 : i32
    %316 = tpu.dynamic_rotate %48 by %c112_i32 dim 1 : vector<8x128xf32>, i32 -> vector<8x128xf32>
    %cst_106 = arith.constant -1.000000e+00 : f32
    %317 = vector.broadcast %cst_106 : f32 to vector<1x128xf32>
    %318 = arith.cmpf oge, %53, %317 : vector<1x128xf32>
    %cst_107 = arith.constant 7.000000e+00 : f32
    %319 = vector.broadcast %cst_107 : f32 to vector<1x128xf32>
    %320 = arith.cmpf olt, %53, %319 : vector<1x128xf32>
    %321 = arith.andi %318, %320 : vector<1x128xi1>
    %cst_108 = arith.constant 0.000000e+00 : f32
    %322 = vector.broadcast %cst_108 : f32 to vector<1x128xf32>
    %323 = arith.cmpf oge, %59, %322 : vector<1x128xf32>
    %324 = arith.andi %321, %323 : vector<1x128xi1>
    %cst_109 = arith.constant 8.000000e+00 : f32
    %325 = vector.broadcast %cst_109 : f32 to vector<1x128xf32>
    %326 = arith.cmpf olt, %59, %325 : vector<1x128xf32>
    %327 = arith.andi %324, %326 : vector<1x128xi1>
    %cst_110 = arith.constant 0.000000e+00 : f32
    %328 = vector.shape_cast %327 : vector<1x128xi1> to vector<1x128xi1>
    %329 = vector.broadcast %328 : vector<1x128xi1> to vector<8x128xi1>
    %330 = vector.broadcast %cst_110 : f32 to vector<8x128xf32>
    %331 = arith.select %329, %316, %330 : vector<8x128xi1>, vector<8x128xf32>
    %c110_i32 = arith.constant 110 : i32
    %332 = tpu.dynamic_rotate %48 by %c110_i32 dim 1 : vector<8x128xf32>, i32 -> vector<8x128xf32>
    %cst_111 = arith.constant -1.000000e+00 : f32
    %333 = vector.broadcast %cst_111 : f32 to vector<1x128xf32>
    %334 = arith.cmpf oge, %53, %333 : vector<1x128xf32>
    %cst_112 = arith.constant 7.000000e+00 : f32
    %335 = vector.broadcast %cst_112 : f32 to vector<1x128xf32>
    %336 = arith.cmpf olt, %53, %335 : vector<1x128xf32>
    %337 = arith.andi %334, %336 : vector<1x128xi1>
    %cst_113 = arith.constant -1.000000e+00 : f32
    %338 = vector.broadcast %cst_113 : f32 to vector<1x128xf32>
    %339 = arith.cmpf oge, %59, %338 : vector<1x128xf32>
    %340 = arith.andi %337, %339 : vector<1x128xi1>
    %cst_114 = arith.constant 7.000000e+00 : f32
    %341 = vector.broadcast %cst_114 : f32 to vector<1x128xf32>
    %342 = arith.cmpf olt, %59, %341 : vector<1x128xf32>
    %343 = arith.andi %340, %342 : vector<1x128xi1>
    %cst_115 = arith.constant 0.000000e+00 : f32
    %344 = vector.shape_cast %343 : vector<1x128xi1> to vector<1x128xi1>
    %345 = vector.broadcast %344 : vector<1x128xi1> to vector<8x128xi1>
    %346 = vector.broadcast %cst_115 : f32 to vector<8x128xf32>
    %347 = arith.select %345, %332, %346 : vector<8x128xi1>, vector<8x128xf32>
    %c108_i32 = arith.constant 108 : i32
    %348 = tpu.dynamic_rotate %48 by %c108_i32 dim 1 : vector<8x128xf32>, i32 -> vector<8x128xf32>
    %cst_116 = arith.constant -1.000000e+00 : f32
    %349 = vector.broadcast %cst_116 : f32 to vector<1x128xf32>
    %350 = arith.cmpf oge, %53, %349 : vector<1x128xf32>
    %cst_117 = arith.constant 7.000000e+00 : f32
    %351 = vector.broadcast %cst_117 : f32 to vector<1x128xf32>
    %352 = arith.cmpf olt, %53, %351 : vector<1x128xf32>
    %353 = arith.andi %350, %352 : vector<1x128xi1>
    %cst_118 = arith.constant -2.000000e+00 : f32
    %354 = vector.broadcast %cst_118 : f32 to vector<1x128xf32>
    %355 = arith.cmpf oge, %59, %354 : vector<1x128xf32>
    %356 = arith.andi %353, %355 : vector<1x128xi1>
    %cst_119 = arith.constant 6.000000e+00 : f32
    %357 = vector.broadcast %cst_119 : f32 to vector<1x128xf32>
    %358 = arith.cmpf olt, %59, %357 : vector<1x128xf32>
    %359 = arith.andi %356, %358 : vector<1x128xi1>
    %cst_120 = arith.constant 0.000000e+00 : f32
    %360 = vector.shape_cast %359 : vector<1x128xi1> to vector<1x128xi1>
    %361 = vector.broadcast %360 : vector<1x128xi1> to vector<8x128xi1>
    %362 = vector.broadcast %cst_120 : f32 to vector<8x128xf32>
    %363 = arith.select %361, %348, %362 : vector<8x128xi1>, vector<8x128xf32>
    %c100_i32 = arith.constant 100 : i32
    %364 = tpu.dynamic_rotate %48 by %c100_i32 dim 1 : vector<8x128xf32>, i32 -> vector<8x128xf32>
    %cst_121 = arith.constant -2.000000e+00 : f32
    %365 = vector.broadcast %cst_121 : f32 to vector<1x128xf32>
    %366 = arith.cmpf oge, %53, %365 : vector<1x128xf32>
    %cst_122 = arith.constant 6.000000e+00 : f32
    %367 = vector.broadcast %cst_122 : f32 to vector<1x128xf32>
    %368 = arith.cmpf olt, %53, %367 : vector<1x128xf32>
    %369 = arith.andi %366, %368 : vector<1x128xi1>
    %cst_123 = arith.constant 2.000000e+00 : f32
    %370 = vector.broadcast %cst_123 : f32 to vector<1x128xf32>
    %371 = arith.cmpf oge, %59, %370 : vector<1x128xf32>
    %372 = arith.andi %369, %371 : vector<1x128xi1>
    %cst_124 = arith.constant 1.000000e+01 : f32
    %373 = vector.broadcast %cst_124 : f32 to vector<1x128xf32>
    %374 = arith.cmpf olt, %59, %373 : vector<1x128xf32>
    %375 = arith.andi %372, %374 : vector<1x128xi1>
    %cst_125 = arith.constant 0.000000e+00 : f32
    %376 = vector.shape_cast %375 : vector<1x128xi1> to vector<1x128xi1>
    %377 = vector.broadcast %376 : vector<1x128xi1> to vector<8x128xi1>
    %378 = vector.broadcast %cst_125 : f32 to vector<8x128xf32>
    %379 = arith.select %377, %364, %378 : vector<8x128xi1>, vector<8x128xf32>
    %c98_i32 = arith.constant 98 : i32
    %380 = tpu.dynamic_rotate %48 by %c98_i32 dim 1 : vector<8x128xf32>, i32 -> vector<8x128xf32>
    %cst_126 = arith.constant -2.000000e+00 : f32
    %381 = vector.broadcast %cst_126 : f32 to vector<1x128xf32>
    %382 = arith.cmpf oge, %53, %381 : vector<1x128xf32>
    %cst_127 = arith.constant 6.000000e+00 : f32
    %383 = vector.broadcast %cst_127 : f32 to vector<1x128xf32>
    %384 = arith.cmpf olt, %53, %383 : vector<1x128xf32>
    %385 = arith.andi %382, %384 : vector<1x128xi1>
    %cst_128 = arith.constant 1.000000e+00 : f32
    %386 = vector.broadcast %cst_128 : f32 to vector<1x128xf32>
    %387 = arith.cmpf oge, %59, %386 : vector<1x128xf32>
    %388 = arith.andi %385, %387 : vector<1x128xi1>
    %cst_129 = arith.constant 9.000000e+00 : f32
    %389 = vector.broadcast %cst_129 : f32 to vector<1x128xf32>
    %390 = arith.cmpf olt, %59, %389 : vector<1x128xf32>
    %391 = arith.andi %388, %390 : vector<1x128xi1>
    %cst_130 = arith.constant 0.000000e+00 : f32
    %392 = vector.shape_cast %391 : vector<1x128xi1> to vector<1x128xi1>
    %393 = vector.broadcast %392 : vector<1x128xi1> to vector<8x128xi1>
    %394 = vector.broadcast %cst_130 : f32 to vector<8x128xf32>
    %395 = arith.select %393, %380, %394 : vector<8x128xi1>, vector<8x128xf32>
    %c96_i32 = arith.constant 96 : i32
    %396 = tpu.dynamic_rotate %48 by %c96_i32 dim 1 : vector<8x128xf32>, i32 -> vector<8x128xf32>
    %cst_131 = arith.constant -2.000000e+00 : f32
    %397 = vector.broadcast %cst_131 : f32 to vector<1x128xf32>
    %398 = arith.cmpf oge, %53, %397 : vector<1x128xf32>
    %cst_132 = arith.constant 6.000000e+00 : f32
    %399 = vector.broadcast %cst_132 : f32 to vector<1x128xf32>
    %400 = arith.cmpf olt, %53, %399 : vector<1x128xf32>
    %401 = arith.andi %398, %400 : vector<1x128xi1>
    %cst_133 = arith.constant 0.000000e+00 : f32
    %402 = vector.broadcast %cst_133 : f32 to vector<1x128xf32>
    %403 = arith.cmpf oge, %59, %402 : vector<1x128xf32>
    %404 = arith.andi %401, %403 : vector<1x128xi1>
    %cst_134 = arith.constant 8.000000e+00 : f32
    %405 = vector.broadcast %cst_134 : f32 to vector<1x128xf32>
    %406 = arith.cmpf olt, %59, %405 : vector<1x128xf32>
    %407 = arith.andi %404, %406 : vector<1x128xi1>
    %cst_135 = arith.constant 0.000000e+00 : f32
    %408 = vector.shape_cast %407 : vector<1x128xi1> to vector<1x128xi1>
    %409 = vector.broadcast %408 : vector<1x128xi1> to vector<8x128xi1>
    %410 = vector.broadcast %cst_135 : f32 to vector<8x128xf32>
    %411 = arith.select %409, %396, %410 : vector<8x128xi1>, vector<8x128xf32>
    %c94_i32 = arith.constant 94 : i32
    %412 = tpu.dynamic_rotate %48 by %c94_i32 dim 1 : vector<8x128xf32>, i32 -> vector<8x128xf32>
    %cst_136 = arith.constant -2.000000e+00 : f32
    %413 = vector.broadcast %cst_136 : f32 to vector<1x128xf32>
    %414 = arith.cmpf oge, %53, %413 : vector<1x128xf32>
    %cst_137 = arith.constant 6.000000e+00 : f32
    %415 = vector.broadcast %cst_137 : f32 to vector<1x128xf32>
    %416 = arith.cmpf olt, %53, %415 : vector<1x128xf32>
    %417 = arith.andi %414, %416 : vector<1x128xi1>
    %cst_138 = arith.constant -1.000000e+00 : f32
    %418 = vector.broadcast %cst_138 : f32 to vector<1x128xf32>
    %419 = arith.cmpf oge, %59, %418 : vector<1x128xf32>
    %420 = arith.andi %417, %419 : vector<1x128xi1>
    %cst_139 = arith.constant 7.000000e+00 : f32
    %421 = vector.broadcast %cst_139 : f32 to vector<1x128xf32>
    %422 = arith.cmpf olt, %59, %421 : vector<1x128xf32>
    %423 = arith.andi %420, %422 : vector<1x128xi1>
    %cst_140 = arith.constant 0.000000e+00 : f32
    %424 = vector.shape_cast %423 : vector<1x128xi1> to vector<1x128xi1>
    %425 = vector.broadcast %424 : vector<1x128xi1> to vector<8x128xi1>
    %426 = vector.broadcast %cst_140 : f32 to vector<8x128xf32>
    %427 = arith.select %425, %412, %426 : vector<8x128xi1>, vector<8x128xf32>
    %c92_i32 = arith.constant 92 : i32
    %428 = tpu.dynamic_rotate %48 by %c92_i32 dim 1 : vector<8x128xf32>, i32 -> vector<8x128xf32>
    %cst_141 = arith.constant -2.000000e+00 : f32
    %429 = vector.broadcast %cst_141 : f32 to vector<1x128xf32>
    %430 = arith.cmpf oge, %53, %429 : vector<1x128xf32>
    %cst_142 = arith.constant 6.000000e+00 : f32
    %431 = vector.broadcast %cst_142 : f32 to vector<1x128xf32>
    %432 = arith.cmpf olt, %53, %431 : vector<1x128xf32>
    %433 = arith.andi %430, %432 : vector<1x128xi1>
    %cst_143 = arith.constant -2.000000e+00 : f32
    %434 = vector.broadcast %cst_143 : f32 to vector<1x128xf32>
    %435 = arith.cmpf oge, %59, %434 : vector<1x128xf32>
    %436 = arith.andi %433, %435 : vector<1x128xi1>
    %cst_144 = arith.constant 6.000000e+00 : f32
    %437 = vector.broadcast %cst_144 : f32 to vector<1x128xf32>
    %438 = arith.cmpf olt, %59, %437 : vector<1x128xf32>
    %439 = arith.andi %436, %438 : vector<1x128xi1>
    %cst_145 = arith.constant 0.000000e+00 : f32
    %440 = vector.shape_cast %439 : vector<1x128xi1> to vector<1x128xi1>
    %441 = vector.broadcast %440 : vector<1x128xi1> to vector<8x128xi1>
    %442 = vector.broadcast %cst_145 : f32 to vector<8x128xf32>
    %443 = arith.select %441, %428, %442 : vector<8x128xi1>, vector<8x128xf32>
    %444 = tpu.concatenate %75, %91, %107, %123, %139, %155, %171, %187, %203, %219, %235, %251, %48, %267, %283, %299 in 0 : vector<8x128xf32>, vector<8x128xf32>, vector<8x128xf32>, vector<8x128xf32>, vector<8x128xf32>, vector<8x128xf32>, vector<8x128xf32>, vector<8x128xf32>, vector<8x128xf32>, vector<8x128xf32>, vector<8x128xf32>, vector<8x128xf32>, vector<8x128xf32>, vector<8x128xf32>, vector<8x128xf32>, vector<8x128xf32> -> vector<128x128xf32>
    %445 = tpu.concatenate %315, %331, %347, %363, %379, %395, %411, %427, %443 in 0 : vector<8x128xf32>, vector<8x128xf32>, vector<8x128xf32>, vector<8x128xf32>, vector<8x128xf32>, vector<8x128xf32>, vector<8x128xf32>, vector<8x128xf32>, vector<8x128xf32> -> vector<72x128xf32>
    %446 = tpu.concatenate %444, %445 in 0 : vector<128x128xf32>, vector<72x128xf32> -> vector<200x128xf32>
    %447 = arith.truncf %446 : vector<200x128xf32> to vector<200x128xbf16>
    %c0_146 = arith.constant 0 : index
    %c0_147 = arith.constant 0 : index
    %448 = vector.load %arg4[%c0_146, %c0_147] : memref<16x200xbf16, #tpu.memory_space<vmem>>, vector<16x200xbf16>
    %cst_148 = arith.constant dense<0.000000e+00> : vector<16x128xf32>
    %449 = tpu.matmul %448, %447, %cst_148 {dimension_numbers = #tpu.dot_dimension_numbers<[1], [0], [0], [1], [0, 0, 1, 1], [], []>} : vector<16x200xbf16>, vector<200x128xbf16>, vector<16x128xf32> -> vector<16x128xf32>
    %450 = vector.broadcast %3 : vector<16x1xf32> to vector<16x128xf32>
    %451 = arith.addf %449, %450 : vector<16x128xf32>
    %c1_149 = arith.constant 1 : index
    %452 = memref.load %arg1[%c1_149] : memref<4xf32, #tpu.memory_space<smem>>
    %cst_150 = arith.constant 0.000000e+00 : f32
    %453 = vector.broadcast %cst_150 : f32 to vector<16x128xf32>
    %454 = arith.cmpf oge, %451, %453 : vector<16x128xf32>
    %455 = vector.broadcast %452 : f32 to vector<16x128xf32>
    %456 = arith.mulf %455, %451 : vector<16x128xf32>
    %457 = arith.select %454, %451, %456 : vector<16x128xi1>, vector<16x128xf32>
    %cst_151 = arith.constant 1.000000e+00 : f32
    %458 = vector.broadcast %cst_151 : f32 to vector<128x1xf32>
    %459 = arith.mulf %457, %457 : vector<16x128xf32>
    %460 = tpu.concatenate %457, %459 in 0 : vector<16x128xf32>, vector<16x128xf32> -> vector<32x128xf32>
    %cst_152 = arith.constant dense<0.000000e+00> : vector<32x1xf32>
    %461 = tpu.matmul %460, %458, %cst_152 {dimension_numbers = #tpu.dot_dimension_numbers<[1], [0], [0], [1], [0, 0, 1, 1], [], []>} : vector<32x128xf32>, vector<128x1xf32>, vector<32x1xf32> -> vector<32x1xf32>
    %462 = vector.extract_strided_slice %461 {offsets = [0, 0], sizes = [16, 1], strides = [1, 1]} : vector<32x1xf32> to vector<16x1xf32>
    %cst_153 = arith.constant 7.812500e-03 : f32
    %463 = vector.broadcast %cst_153 : f32 to vector<16x1xf32>
    %464 = arith.mulf %462, %463 : vector<16x1xf32>
    %465 = vector.extract_strided_slice %461 {offsets = [16, 0], sizes = [16, 1], strides = [1, 1]} : vector<32x1xf32> to vector<16x1xf32>
    %cst_154 = arith.constant 7.812500e-03 : f32
    %466 = vector.broadcast %cst_154 : f32 to vector<16x1xf32>
    %467 = arith.mulf %465, %466 : vector<16x1xf32>
    %468 = arith.mulf %464, %464 : vector<16x1xf32>
    %469 = arith.subf %467, %468 : vector<16x1xf32>
    %cst_155 = arith.constant 9.99999974E-6 : f32
    %470 = vector.broadcast %cst_155 : f32 to vector<16x1xf32>
    %471 = arith.addf %469, %470 : vector<16x1xf32>
    %472 = math.rsqrt %471 : vector<16x1xf32>
    %473 = arith.mulf %4, %472 : vector<16x1xf32>
    %474 = arith.mulf %464, %473 : vector<16x1xf32>
    %475 = arith.subf %5, %474 : vector<16x1xf32>
    %476 = vector.broadcast %473 : vector<16x1xf32> to vector<16x128xf32>
    %477 = arith.mulf %457, %476 : vector<16x128xf32>
    %478 = vector.broadcast %475 : vector<16x1xf32> to vector<16x128xf32>
    %479 = arith.addf %477, %478 : vector<16x128xf32>
    %c126_i32_156 = arith.constant 126 : i32
    %480 = tpu.dynamic_rotate %479 by %c126_i32_156 dim 1 : vector<16x128xf32>, i32 -> vector<16x128xf32>
    %481 = arith.maximumf %479, %480 : vector<16x128xf32>
    %c112_i32_157 = arith.constant 112 : i32
    %482 = tpu.dynamic_rotate %481 by %c112_i32_157 dim 1 : vector<16x128xf32>, i32 -> vector<16x128xf32>
    %483 = arith.maximumf %481, %482 : vector<16x128xf32>
    %484 = arith.truncf %483 : vector<16x128xf32> to vector<16x128xbf16>
    %485 = vector.extract_strided_slice %484 {offsets = [0, 0], sizes = [16, 2], strides = [1, 1]} : vector<16x128xbf16> to vector<16x2xbf16>
    %c0_158 = arith.constant 0 : index
    %c0_159 = arith.constant 0 : index
    %c0_160 = arith.constant 0 : index
    %486 = vector.load %arg6[%c0_158, %c0_159, %c0_160] : memref<16x128x16xbf16, #tpu.memory_space<vmem>>, vector<1x128x16xbf16>
    %487 = vector.shape_cast %486 : vector<1x128x16xbf16> to vector<128x16xbf16>
    %cst_161 = arith.constant dense<0.000000e+00> : vector<128x2xf32>
    %488 = tpu.matmul %487, %485, %cst_161 {dimension_numbers = #tpu.dot_dimension_numbers<[1], [0], [0], [1], [0, 0, 1, 1], [], []>} : vector<128x16xbf16>, vector<16x2xbf16>, vector<128x2xf32> -> vector<128x2xf32>
    %489 = vector.extract_strided_slice %484 {offsets = [0, 4], sizes = [16, 2], strides = [1, 1]} : vector<16x128xbf16> to vector<16x2xbf16>
    %c1_162 = arith.constant 1 : index
    %c0_163 = arith.constant 0 : index
    %c0_164 = arith.constant 0 : index
    %490 = vector.load %arg6[%c1_162, %c0_163, %c0_164] : memref<16x128x16xbf16, #tpu.memory_space<vmem>>, vector<1x128x16xbf16>
    %491 = vector.shape_cast %490 : vector<1x128x16xbf16> to vector<128x16xbf16>
    %cst_165 = arith.constant dense<0.000000e+00> : vector<128x2xf32>
    %492 = tpu.matmul %491, %489, %cst_165 {dimension_numbers = #tpu.dot_dimension_numbers<[1], [0], [0], [1], [0, 0, 1, 1], [], []>} : vector<128x16xbf16>, vector<16x2xbf16>, vector<128x2xf32> -> vector<128x2xf32>
    %493 = arith.addf %488, %492 : vector<128x2xf32>
    %494 = vector.extract_strided_slice %484 {offsets = [0, 8], sizes = [16, 2], strides = [1, 1]} : vector<16x128xbf16> to vector<16x2xbf16>
    %c2_166 = arith.constant 2 : index
    %c0_167 = arith.constant 0 : index
    %c0_168 = arith.constant 0 : index
    %495 = vector.load %arg6[%c2_166, %c0_167, %c0_168] : memref<16x128x16xbf16, #tpu.memory_space<vmem>>, vector<1x128x16xbf16>
    %496 = vector.shape_cast %495 : vector<1x128x16xbf16> to vector<128x16xbf16>
    %cst_169 = arith.constant dense<0.000000e+00> : vector<128x2xf32>
    %497 = tpu.matmul %496, %494, %cst_169 {dimension_numbers = #tpu.dot_dimension_numbers<[1], [0], [0], [1], [0, 0, 1, 1], [], []>} : vector<128x16xbf16>, vector<16x2xbf16>, vector<128x2xf32> -> vector<128x2xf32>
    %498 = arith.addf %493, %497 : vector<128x2xf32>
    %499 = vector.extract_strided_slice %484 {offsets = [0, 12], sizes = [16, 2], strides = [1, 1]} : vector<16x128xbf16> to vector<16x2xbf16>
    %c3_170 = arith.constant 3 : index
    %c0_171 = arith.constant 0 : index
    %c0_172 = arith.constant 0 : index
    %500 = vector.load %arg6[%c3_170, %c0_171, %c0_172] : memref<16x128x16xbf16, #tpu.memory_space<vmem>>, vector<1x128x16xbf16>
    %501 = vector.shape_cast %500 : vector<1x128x16xbf16> to vector<128x16xbf16>
    %cst_173 = arith.constant dense<0.000000e+00> : vector<128x2xf32>
    %502 = tpu.matmul %501, %499, %cst_173 {dimension_numbers = #tpu.dot_dimension_numbers<[1], [0], [0], [1], [0, 0, 1, 1], [], []>} : vector<128x16xbf16>, vector<16x2xbf16>, vector<128x2xf32> -> vector<128x2xf32>
    %503 = arith.addf %498, %502 : vector<128x2xf32>
    %504 = vector.extract_strided_slice %484 {offsets = [0, 32], sizes = [16, 2], strides = [1, 1]} : vector<16x128xbf16> to vector<16x2xbf16>
    %c4_174 = arith.constant 4 : index
    %c0_175 = arith.constant 0 : index
    %c0_176 = arith.constant 0 : index
    %505 = vector.load %arg6[%c4_174, %c0_175, %c0_176] : memref<16x128x16xbf16, #tpu.memory_space<vmem>>, vector<1x128x16xbf16>
    %506 = vector.shape_cast %505 : vector<1x128x16xbf16> to vector<128x16xbf16>
    %cst_177 = arith.constant dense<0.000000e+00> : vector<128x2xf32>
    %507 = tpu.matmul %506, %504, %cst_177 {dimension_numbers = #tpu.dot_dimension_numbers<[1], [0], [0], [1], [0, 0, 1, 1], [], []>} : vector<128x16xbf16>, vector<16x2xbf16>, vector<128x2xf32> -> vector<128x2xf32>
    %508 = arith.addf %503, %507 : vector<128x2xf32>
    %509 = vector.extract_strided_slice %484 {offsets = [0, 36], sizes = [16, 2], strides = [1, 1]} : vector<16x128xbf16> to vector<16x2xbf16>
    %c5_178 = arith.constant 5 : index
    %c0_179 = arith.constant 0 : index
    %c0_180 = arith.constant 0 : index
    %510 = vector.load %arg6[%c5_178, %c0_179, %c0_180] : memref<16x128x16xbf16, #tpu.memory_space<vmem>>, vector<1x128x16xbf16>
    %511 = vector.shape_cast %510 : vector<1x128x16xbf16> to vector<128x16xbf16>
    %cst_181 = arith.constant dense<0.000000e+00> : vector<128x2xf32>
    %512 = tpu.matmul %511, %509, %cst_181 {dimension_numbers = #tpu.dot_dimension_numbers<[1], [0], [0], [1], [0, 0, 1, 1], [], []>} : vector<128x16xbf16>, vector<16x2xbf16>, vector<128x2xf32> -> vector<128x2xf32>
    %513 = arith.addf %508, %512 : vector<128x2xf32>
    %514 = vector.extract_strided_slice %484 {offsets = [0, 40], sizes = [16, 2], strides = [1, 1]} : vector<16x128xbf16> to vector<16x2xbf16>
    %c6 = arith.constant 6 : index
    %c0_182 = arith.constant 0 : index
    %c0_183 = arith.constant 0 : index
    %515 = vector.load %arg6[%c6, %c0_182, %c0_183] : memref<16x128x16xbf16, #tpu.memory_space<vmem>>, vector<1x128x16xbf16>
    %516 = vector.shape_cast %515 : vector<1x128x16xbf16> to vector<128x16xbf16>
    %cst_184 = arith.constant dense<0.000000e+00> : vector<128x2xf32>
    %517 = tpu.matmul %516, %514, %cst_184 {dimension_numbers = #tpu.dot_dimension_numbers<[1], [0], [0], [1], [0, 0, 1, 1], [], []>} : vector<128x16xbf16>, vector<16x2xbf16>, vector<128x2xf32> -> vector<128x2xf32>
    %518 = arith.addf %513, %517 : vector<128x2xf32>
    %519 = vector.extract_strided_slice %484 {offsets = [0, 44], sizes = [16, 2], strides = [1, 1]} : vector<16x128xbf16> to vector<16x2xbf16>
    %c7 = arith.constant 7 : index
    %c0_185 = arith.constant 0 : index
    %c0_186 = arith.constant 0 : index
    %520 = vector.load %arg6[%c7, %c0_185, %c0_186] : memref<16x128x16xbf16, #tpu.memory_space<vmem>>, vector<1x128x16xbf16>
    %521 = vector.shape_cast %520 : vector<1x128x16xbf16> to vector<128x16xbf16>
    %cst_187 = arith.constant dense<0.000000e+00> : vector<128x2xf32>
    %522 = tpu.matmul %521, %519, %cst_187 {dimension_numbers = #tpu.dot_dimension_numbers<[1], [0], [0], [1], [0, 0, 1, 1], [], []>} : vector<128x16xbf16>, vector<16x2xbf16>, vector<128x2xf32> -> vector<128x2xf32>
    %523 = arith.addf %518, %522 : vector<128x2xf32>
    %524 = vector.extract_strided_slice %484 {offsets = [0, 64], sizes = [16, 2], strides = [1, 1]} : vector<16x128xbf16> to vector<16x2xbf16>
    %c8 = arith.constant 8 : index
    %c0_188 = arith.constant 0 : index
    %c0_189 = arith.constant 0 : index
    %525 = vector.load %arg6[%c8, %c0_188, %c0_189] : memref<16x128x16xbf16, #tpu.memory_space<vmem>>, vector<1x128x16xbf16>
    %526 = vector.shape_cast %525 : vector<1x128x16xbf16> to vector<128x16xbf16>
    %cst_190 = arith.constant dense<0.000000e+00> : vector<128x2xf32>
    %527 = tpu.matmul %526, %524, %cst_190 {dimension_numbers = #tpu.dot_dimension_numbers<[1], [0], [0], [1], [0, 0, 1, 1], [], []>} : vector<128x16xbf16>, vector<16x2xbf16>, vector<128x2xf32> -> vector<128x2xf32>
    %528 = arith.addf %523, %527 : vector<128x2xf32>
    %529 = vector.extract_strided_slice %484 {offsets = [0, 68], sizes = [16, 2], strides = [1, 1]} : vector<16x128xbf16> to vector<16x2xbf16>
    %c9 = arith.constant 9 : index
    %c0_191 = arith.constant 0 : index
    %c0_192 = arith.constant 0 : index
    %530 = vector.load %arg6[%c9, %c0_191, %c0_192] : memref<16x128x16xbf16, #tpu.memory_space<vmem>>, vector<1x128x16xbf16>
    %531 = vector.shape_cast %530 : vector<1x128x16xbf16> to vector<128x16xbf16>
    %cst_193 = arith.constant dense<0.000000e+00> : vector<128x2xf32>
    %532 = tpu.matmul %531, %529, %cst_193 {dimension_numbers = #tpu.dot_dimension_numbers<[1], [0], [0], [1], [0, 0, 1, 1], [], []>} : vector<128x16xbf16>, vector<16x2xbf16>, vector<128x2xf32> -> vector<128x2xf32>
    %533 = arith.addf %528, %532 : vector<128x2xf32>
    %534 = vector.extract_strided_slice %484 {offsets = [0, 72], sizes = [16, 2], strides = [1, 1]} : vector<16x128xbf16> to vector<16x2xbf16>
    %c10 = arith.constant 10 : index
    %c0_194 = arith.constant 0 : index
    %c0_195 = arith.constant 0 : index
    %535 = vector.load %arg6[%c10, %c0_194, %c0_195] : memref<16x128x16xbf16, #tpu.memory_space<vmem>>, vector<1x128x16xbf16>
    %536 = vector.shape_cast %535 : vector<1x128x16xbf16> to vector<128x16xbf16>
    %cst_196 = arith.constant dense<0.000000e+00> : vector<128x2xf32>
    %537 = tpu.matmul %536, %534, %cst_196 {dimension_numbers = #tpu.dot_dimension_numbers<[1], [0], [0], [1], [0, 0, 1, 1], [], []>} : vector<128x16xbf16>, vector<16x2xbf16>, vector<128x2xf32> -> vector<128x2xf32>
    %538 = arith.addf %533, %537 : vector<128x2xf32>
    %539 = vector.extract_strided_slice %484 {offsets = [0, 76], sizes = [16, 2], strides = [1, 1]} : vector<16x128xbf16> to vector<16x2xbf16>
    %c11 = arith.constant 11 : index
    %c0_197 = arith.constant 0 : index
    %c0_198 = arith.constant 0 : index
    %540 = vector.load %arg6[%c11, %c0_197, %c0_198] : memref<16x128x16xbf16, #tpu.memory_space<vmem>>, vector<1x128x16xbf16>
    %541 = vector.shape_cast %540 : vector<1x128x16xbf16> to vector<128x16xbf16>
    %cst_199 = arith.constant dense<0.000000e+00> : vector<128x2xf32>
    %542 = tpu.matmul %541, %539, %cst_199 {dimension_numbers = #tpu.dot_dimension_numbers<[1], [0], [0], [1], [0, 0, 1, 1], [], []>} : vector<128x16xbf16>, vector<16x2xbf16>, vector<128x2xf32> -> vector<128x2xf32>
    %543 = arith.addf %538, %542 : vector<128x2xf32>
    %544 = vector.extract_strided_slice %484 {offsets = [0, 96], sizes = [16, 2], strides = [1, 1]} : vector<16x128xbf16> to vector<16x2xbf16>
    %c12 = arith.constant 12 : index
    %c0_200 = arith.constant 0 : index
    %c0_201 = arith.constant 0 : index
    %545 = vector.load %arg6[%c12, %c0_200, %c0_201] : memref<16x128x16xbf16, #tpu.memory_space<vmem>>, vector<1x128x16xbf16>
    %546 = vector.shape_cast %545 : vector<1x128x16xbf16> to vector<128x16xbf16>
    %cst_202 = arith.constant dense<0.000000e+00> : vector<128x2xf32>
    %547 = tpu.matmul %546, %544, %cst_202 {dimension_numbers = #tpu.dot_dimension_numbers<[1], [0], [0], [1], [0, 0, 1, 1], [], []>} : vector<128x16xbf16>, vector<16x2xbf16>, vector<128x2xf32> -> vector<128x2xf32>
    %548 = arith.addf %543, %547 : vector<128x2xf32>
    %549 = vector.extract_strided_slice %484 {offsets = [0, 100], sizes = [16, 2], strides = [1, 1]} : vector<16x128xbf16> to vector<16x2xbf16>
    %c13 = arith.constant 13 : index
    %c0_203 = arith.constant 0 : index
    %c0_204 = arith.constant 0 : index
    %550 = vector.load %arg6[%c13, %c0_203, %c0_204] : memref<16x128x16xbf16, #tpu.memory_space<vmem>>, vector<1x128x16xbf16>
    %551 = vector.shape_cast %550 : vector<1x128x16xbf16> to vector<128x16xbf16>
    %cst_205 = arith.constant dense<0.000000e+00> : vector<128x2xf32>
    %552 = tpu.matmul %551, %549, %cst_205 {dimension_numbers = #tpu.dot_dimension_numbers<[1], [0], [0], [1], [0, 0, 1, 1], [], []>} : vector<128x16xbf16>, vector<16x2xbf16>, vector<128x2xf32> -> vector<128x2xf32>
    %553 = arith.addf %548, %552 : vector<128x2xf32>
    %554 = vector.extract_strided_slice %484 {offsets = [0, 104], sizes = [16, 2], strides = [1, 1]} : vector<16x128xbf16> to vector<16x2xbf16>
    %c14 = arith.constant 14 : index
    %c0_206 = arith.constant 0 : index
    %c0_207 = arith.constant 0 : index
    %555 = vector.load %arg6[%c14, %c0_206, %c0_207] : memref<16x128x16xbf16, #tpu.memory_space<vmem>>, vector<1x128x16xbf16>
    %556 = vector.shape_cast %555 : vector<1x128x16xbf16> to vector<128x16xbf16>
    %cst_208 = arith.constant dense<0.000000e+00> : vector<128x2xf32>
    %557 = tpu.matmul %556, %554, %cst_208 {dimension_numbers = #tpu.dot_dimension_numbers<[1], [0], [0], [1], [0, 0, 1, 1], [], []>} : vector<128x16xbf16>, vector<16x2xbf16>, vector<128x2xf32> -> vector<128x2xf32>
    %558 = arith.addf %553, %557 : vector<128x2xf32>
    %559 = vector.extract_strided_slice %484 {offsets = [0, 108], sizes = [16, 2], strides = [1, 1]} : vector<16x128xbf16> to vector<16x2xbf16>
    %c15 = arith.constant 15 : index
    %c0_209 = arith.constant 0 : index
    %c0_210 = arith.constant 0 : index
    %560 = vector.load %arg6[%c15, %c0_209, %c0_210] : memref<16x128x16xbf16, #tpu.memory_space<vmem>>, vector<1x128x16xbf16>
    %561 = vector.shape_cast %560 : vector<1x128x16xbf16> to vector<128x16xbf16>
    %cst_211 = arith.constant dense<0.000000e+00> : vector<128x2xf32>
    %562 = tpu.matmul %561, %559, %cst_211 {dimension_numbers = #tpu.dot_dimension_numbers<[1], [0], [0], [1], [0, 0, 1, 1], [], []>} : vector<128x16xbf16>, vector<16x2xbf16>, vector<128x2xf32> -> vector<128x2xf32>
    %563 = arith.addf %558, %562 : vector<128x2xf32>
    %564 = vector.broadcast %6 : vector<128x1xf32> to vector<128x2xf32>
    %565 = arith.addf %563, %564 : vector<128x2xf32>
    %c2_212 = arith.constant 2 : index
    %566 = memref.load %arg1[%c2_212] : memref<4xf32, #tpu.memory_space<smem>>
    %cst_213 = arith.constant 0.000000e+00 : f32
    %567 = vector.broadcast %cst_213 : f32 to vector<128x2xf32>
    %568 = arith.cmpf oge, %565, %567 : vector<128x2xf32>
    %569 = vector.broadcast %566 : f32 to vector<128x2xf32>
    %570 = arith.mulf %569, %565 : vector<128x2xf32>
    %571 = arith.select %568, %565, %570 : vector<128x2xi1>, vector<128x2xf32>
    %c0_214 = arith.constant 0 : index
    %c0_215 = arith.constant 0 : index
    %572 = vector.load %arg7[%c0_214, %c0_215] : memref<128x128xbf16, #tpu.memory_space<vmem>>, vector<128x128xbf16>
    %573 = arith.truncf %571 : vector<128x2xf32> to vector<128x2xbf16>
    %cst_216 = arith.constant dense<0.000000e+00> : vector<128x2xf32>
    %574 = tpu.matmul %572, %573, %cst_216 {dimension_numbers = #tpu.dot_dimension_numbers<[1], [0], [0], [1], [0, 0, 1, 1], [], []>} : vector<128x128xbf16>, vector<128x2xbf16>, vector<128x2xf32> -> vector<128x2xf32>
    %575 = vector.broadcast %7 : vector<128x1xf32> to vector<128x2xf32>
    %576 = arith.addf %574, %575 : vector<128x2xf32>
    %c3_217 = arith.constant 3 : index
    %577 = memref.load %arg1[%c3_217] : memref<4xf32, #tpu.memory_space<smem>>
    %cst_218 = arith.constant 0.000000e+00 : f32
    %578 = vector.broadcast %cst_218 : f32 to vector<128x2xf32>
    %579 = arith.cmpf oge, %576, %578 : vector<128x2xf32>
    %580 = vector.broadcast %577 : f32 to vector<128x2xf32>
    %581 = arith.mulf %580, %576 : vector<128x2xf32>
    %582 = arith.select %579, %576, %581 : vector<128x2xi1>, vector<128x2xf32>
    %c0_219 = arith.constant 0 : index
    %c0_220 = arith.constant 0 : index
    %583 = vector.load %arg8[%c0_219, %c0_220] : memref<32x128xbf16, #tpu.memory_space<vmem>>, vector<32x128xbf16>
    %584 = arith.truncf %582 : vector<128x2xf32> to vector<128x2xbf16>
    %cst_221 = arith.constant dense<0.000000e+00> : vector<32x2xf32>
    %585 = tpu.matmul %583, %584, %cst_221 {dimension_numbers = #tpu.dot_dimension_numbers<[1], [0], [0], [1], [0, 0, 1, 1], [], []>} : vector<32x128xbf16>, vector<128x2xbf16>, vector<32x2xf32> -> vector<32x2xf32>
    %586 = vector.broadcast %8 : vector<32x1xf32> to vector<32x2xf32>
    %587 = arith.addf %585, %586 : vector<32x2xf32>
    %c0_222 = arith.constant 0 : index
    %c0_223 = arith.constant 0 : index
    %588 = vector.load %arg10[%c0_222, %c0_223] : memref<32x2xf32, #tpu.memory_space<vmem>>, vector<32x2xf32>
    tpu.vector_store %arg10[%c0_222, %c0_223], %587 {strides = array<i32>} : memref<32x2xf32, #tpu.memory_space<vmem>>, vector<32x2xf32>,
    return
  }
  func.func @transform_0(%arg0: i32) -> i32 {
    %c0_i32 = arith.constant 0 : i32
    %c0_i32_0 = arith.constant 0 : i32
    return %c0_i32 : i32
  }
  func.func @transform_1(%arg0: i32) -> (i32, i32) {
    %c0_i32 = arith.constant 0 : i32
    %c0_i32_0 = arith.constant 0 : i32
    %c0_i32_1 = arith.constant 0 : i32
    return %c0_i32, %c0_i32_0 : i32, i32
  }
  func.func @transform_2(%arg0: i32) -> (i32, i32) {
    %c0_i32 = arith.constant 0 : i32
    %c0_i32_0 = arith.constant 0 : i32
    %c0_i32_1 = arith.constant 0 : i32
    return %c0_i32, %c0_i32_0 : i32, i32
  }
  func.func @transform_3(%arg0: i32) -> (i32, i32) {
    %c0_i32 = arith.constant 0 : i32
    %c0_i32_0 = arith.constant 0 : i32
    %c0_i32_1 = arith.constant 0 : i32
    return %c0_i32, %c0_i32_0 : i32, i32
  }
  func.func @transform_4(%arg0: i32) -> (i32, i32) {
    %c0_i32 = arith.constant 0 : i32
    %c0_i32_0 = arith.constant 0 : i32
    %c0_i32_1 = arith.constant 0 : i32
    return %c0_i32, %c0_i32_0 : i32, i32
  }
  func.func @transform_5(%arg0: i32) -> (i32, i32, i32) {
    %c0_i32 = arith.constant 0 : i32
    %c0_i32_0 = arith.constant 0 : i32
    %c0_i32_1 = arith.constant 0 : i32
    %c0_i32_2 = arith.constant 0 : i32
    return %c0_i32, %c0_i32_0, %c0_i32_1 : i32, i32, i32
  }
  func.func @transform_6(%arg0: i32) -> (i32, i32) {
    %c0_i32 = arith.constant 0 : i32
    %c0_i32_0 = arith.constant 0 : i32
    %c0_i32_1 = arith.constant 0 : i32
    return %c0_i32, %c0_i32_0 : i32, i32
  }
  func.func @transform_7(%arg0: i32) -> (i32, i32) {
    %c0_i32 = arith.constant 0 : i32
    %c0_i32_0 = arith.constant 0 : i32
    %c0_i32_1 = arith.constant 0 : i32
    return %c0_i32, %c0_i32_0 : i32, i32
  }
  func.func @transform_8(%arg0: i32) -> (i32, i32) {
    %c0_i32 = arith.constant 0 : i32
    %c0_i32_0 = arith.constant 0 : i32
    %c0_i32_1 = arith.constant 0 : i32
    return %c0_i32, %c0_i32_0 : i32, i32
  }
  func.func @transform_9(%arg0: i32) -> (i32, i32) {
    %c0_i32 = arith.constant 0 : i32
    %c0_i32_0 = arith.constant 0 : i32
    %c0_i32_1 = arith.constant 0 : i32
    return %c0_i32, %c0_i32_0 : i32, i32
  }
}

</mosaic_0001>

<llo_original>
// kernel: tpu_custom_call.1
$region0: #{tpu_custom_call.1}
  #allocation0 [shape = 'u32[]', space=smem, size = 0x4, offset = 0x4, fixed_abs, tag = 'smem constant byte address 0x4 - core index']
  #allocation1 [shape = 'u32[72,128]{1,0:T(1,128)}', space=vmem, size = 0x9000, scoped, tag = 'internal scratch']
  %s0 = inlined_call_operand.hbm [shape: f32[8,128], index: 0, kind: input, shape index: {}]
  %s1 = inlined_call_operand.hbm [shape: f32[8,128], index: 1, kind: output, shape index: {}]
  %s2 = sld [smem:[#allocation0]]
  $region18: #{tpu_custom_call.1} parent=0
    _
  %s4 = ssub.s32 1, %s2
  %s5 = scalar_select 0, %s4, %s2
  $region1: #{tpu_custom_call.1} parent=0
    #allocation2 [shape = 'u8[4096]{0}', space=vmem, size = 0x1000, scoped, tag = 'input window, operand 0, single buffered']
    #allocation3 [shape = 's32[1]{0}', space=sflag, size = 0x4, scoped, tag = 'scoped memory for tpu_custom_call.1']
    #allocation4 [shape = 's32[1]{0}', space=sflag, size = 0x4, scoped, tag = 'scoped memory for tpu_custom_call.1']
    #allocation5 [shape = 'u8[4096]{0}', space=vmem, size = 0x1000, scoped, tag = 'output window, operand 0, single buffered']
    %6 = vsyncpa [#allocation3], 0
    %7 = vsyncpa [#allocation4], 0
    // Predicated region
    $region2: #{tpu_custom_call.1} parent=1 // pred_check
      _
    $region3: #{tpu_custom_call.1} parent=1 // pred_check_branch
      %9 = sbr.rel (0) target = $region5
    $region4: #{tpu_custom_call.1} parent=1 // pred_region
      %11 = vsyncadd [#allocation3], 0
      %s13 = sshll.u32 %s0, 4
      %s14 = int_to_ptr.hbm [resolvable:$true] %s13
      %s15 = sshll.u32 [#allocation2], 4
      %s16 = int_to_ptr.vmem [resolvable:$true] %s15
      %18 = dma.hbm_to_vmem [thread:$0]  %s14, 128, %s16, [#allocation3]
    $region5: #{tpu_custom_call.1} parent=1 // pred_fallthru
      _
    // Predicated region
    $region6: #{tpu_custom_call.1} parent=1 // pred_check
      _
    $region7: #{tpu_custom_call.1} parent=1 // pred_check_branch
      %20 = sbr.rel (0) target = $region9
    $region8: #{tpu_custom_call.1} parent=1 // pred_region
      %22 = dma.done [#allocation3], 128
    $region9: #{tpu_custom_call.1} parent=1 // pred_fallthru
      _
    %v23 = vld [vmem:[#allocation2] sm:$0xff]
    %24 = vrot.lane.b32.xlu0 %v23, 1
    %v25 = vpop.permute.xlu0 %24
    %26 = vst [vmem:[#allocation5] sm:$0xff] %v25
    // Predicated region
    $region10: #{tpu_custom_call.1} parent=1 // pred_check
      _
    $region11: #{tpu_custom_call.1} parent=1 // pred_check_branch
      %28 = sbr.rel (0) target = $region13
    $region12: #{tpu_custom_call.1} parent=1 // pred_region
      %30 = vsyncadd [#allocation4], 0
      %s32 = sshll.u32 [#allocation5], 4
      %s33 = int_to_ptr.vmem [resolvable:$true] %s32
      %s34 = sshll.u32 %s1, 4
      %s35 = int_to_ptr.hbm [resolvable:$true] %s34
      %37 = dma.vmem_to_hbm [thread:$0]  %s33, 128, %s35, [#allocation4]
    $region13: #{tpu_custom_call.1} parent=1 // pred_fallthru
      _
    // Predicated region
    $region14: #{tpu_custom_call.1} parent=1 // pred_check
      _
    $region15: #{tpu_custom_call.1} parent=1 // pred_check_branch
      %39 = sbr.rel (0) target = $region17
    $region16: #{tpu_custom_call.1} parent=1 // pred_region
      %41 = dma.done [#allocation4], 128
    $region17: #{tpu_custom_call.1} parent=1 // pred_fallthru
      _
    %42 = vsyncpa [#allocation3], 1
    %43 = vsyncpa [#allocation4], 1

// kernel: embedding_net_forward.1
$region0: #{embedding_net_forward.1}
  #allocation0 [shape = 'u32[]', space=smem, size = 0x4, offset = 0x4, fixed_abs, tag = 'smem constant byte address 0x4 - core index']
  #allocation1 [shape = 'u32[72,128]{1,0:T(1,128)}', space=vmem, size = 0x9000, scoped, tag = 'internal scratch']
  %s0 = inlined_call_operand.vmem [shape: f32[4], index: 0, kind: input, shape index: {}]
  %s1 = inlined_call_operand.vmem [shape: bf16[80,512], index: 1, kind: input, shape index: {}]
  %s2 = inlined_call_operand.vmem [shape: bf16[8,80], index: 2, kind: input, shape index: {}]
  %s3 = inlined_call_operand.vmem [shape: bf16[16,200], index: 3, kind: input, shape index: {}]
  %s4 = inlined_call_operand.vmem [shape: f32[16,6], index: 4, kind: input, shape index: {}]
  %s5 = inlined_call_operand.vmem [shape: bf16[16,128,16], index: 5, kind: input, shape index: {}]
  %s6 = inlined_call_operand.vmem [shape: bf16[128,128], index: 6, kind: input, shape index: {}]
  %s7 = inlined_call_operand.vmem [shape: bf16[32,128], index: 7, kind: input, shape index: {}]
  %s8 = inlined_call_operand.vmem [shape: f32[128,3], index: 8, kind: input, shape index: {}]
  %s9 = inlined_call_operand.vmem [shape: f32[32,2], index: 9, kind: output, shape index: {}]
  %s10 = sld [smem:[#allocation0]]
  $region50: #{embedding_net_forward.1} parent=0
    _
  %s12 = ssub.s32 1, %s10
  %s13 = scalar_select 0, %s12, %s10
  $region1: #{embedding_net_forward.1} parent=0
    #allocation2 [shape = 'u8[512]{0}', space=smem, size = 0x200, scoped, tag = 'input window, operand 0, single buffered']
    #allocation3 [shape = 's32[1]{0}', space=sflag, size = 0x4, scoped, tag = 'scoped memory for embedding_net_forward.1']
    %14 = vsyncpa [#allocation3], 0
    // Predicated region
    $region2: #{embedding_net_forward.1} parent=1 // pred_check
      _
    $region3: #{embedding_net_forward.1} parent=1 // pred_check_branch
      %16 = sbr.rel (0) target = $region5
    $region4: #{embedding_net_forward.1} parent=1 // pred_region
      %18 = vsyncadd [#allocation3], 0
      %s20 = sshll.u32 %s0, 4
      %s21 = int_to_ptr.vmem [resolvable:$true] %s20
      %23 = dma.vmem_to_smem %s21, 16, [#allocation2], [#allocation3]
    $region5: #{embedding_net_forward.1} parent=1 // pred_fallthru
      _
    // Predicated region
    $region6: #{embedding_net_forward.1} parent=1 // pred_check
      _
    $region7: #{embedding_net_forward.1} parent=1 // pred_check_branch
      %25 = sbr.rel (0) target = $region9
    $region8: #{embedding_net_forward.1} parent=1 // pred_region
      _
    $region9: #{embedding_net_forward.1} parent=1 // pred_fallthru
      _
    // Predicated region
    $region10: #{embedding_net_forward.1} parent=1 // pred_check
      _
    $region11: #{embedding_net_forward.1} parent=1 // pred_check_branch
      %27 = sbr.rel (0) target = $region13
    $region12: #{embedding_net_forward.1} parent=1 // pred_region
      _
    $region13: #{embedding_net_forward.1} parent=1 // pred_fallthru
      _
    // Predicated region
    $region14: #{embedding_net_forward.1} parent=1 // pred_check
      _
    $region15: #{embedding_net_forward.1} parent=1 // pred_check_branch
      %29 = sbr.rel (0) target = $region17
    $region16: #{embedding_net_forward.1} parent=1 // pred_region
      _
    $region17: #{embedding_net_forward.1} parent=1 // pred_fallthru
      _
    // Predicated region
    $region18: #{embedding_net_forward.1} parent=1 // pred_check
      _
    $region19: #{embedding_net_forward.1} parent=1 // pred_check_branch
      %31 = sbr.rel (0) target = $region21
    $region20: #{embedding_net_forward.1} parent=1 // pred_region
      _
    $region21: #{embedding_net_forward.1} parent=1 // pred_fallthru
      _
    // Predicated region
    $region22: #{embedding_net_forward.1} parent=1 // pred_check
      _
    $region23: #{embedding_net_forward.1} parent=1 // pred_check_branch
      %33 = sbr.rel (0) target = $region25
    $region24: #{embedding_net_forward.1} parent=1 // pred_region
      _
    $region25: #{embedding_net_forward.1} parent=1 // pred_fallthru
      _
    // Predicated region
    $region26: #{embedding_net_forward.1} parent=1 // pred_check
      _
    $region27: #{embedding_net_forward.1} parent=1 // pred_check_branch
      %35 = sbr.rel (0) target = $region29
    $region28: #{embedding_net_forward.1} parent=1 // pred_region
      _
    $region29: #{embedding_net_forward.1} parent=1 // pred_fallthru
      _
    // Predicated region
    $region30: #{embedding_net_forward.1} parent=1 // pred_check
      _
    $region31: #{embedding_net_forward.1} parent=1 // pred_check_branch
      %37 = sbr.rel (0) target = $region33
    $region32: #{embedding_net_forward.1} parent=1 // pred_region
      _
    $region33: #{embedding_net_forward.1} parent=1 // pred_fallthru
      _
    // Predicated region
    $region34: #{embedding_net_forward.1} parent=1 // pred_check
      _
    $region35: #{embedding_net_forward.1} parent=1 // pred_check_branch
      %39 = sbr.rel (0) target = $region37
    $region36: #{embedding_net_forward.1} parent=1 // pred_region
      _
    $region37: #{embedding_net_forward.1} parent=1 // pred_fallthru
      _
    // Predicated region
    $region38: #{embedding_net_forward.1} parent=1 // pred_check
      _
    $region39: #{embedding_net_forward.1} parent=1 // pred_check_branch
      %41 = sbr.rel (0) target = $region41
    $region40: #{embedding_net_forward.1} parent=1 // pred_region
      %43 = dma.done [#allocation3], 16
    $region41: #{embedding_net_forward.1} parent=1 // pred_fallthru
      _
    %44 = sfence
    %v46 = vld [vmem:[%s4] sm:$0xff]
    %v47 = vld [vmem:[%s4 + $0x8] sm:$0xff]
    %v48 = vld [vmem:[%s8] sm:$0xff]
    %v49 = vld [vmem:[%s8 + $0x8] sm:$0xff]
    %v50 = vld [vmem:[%s8 + $0x10] sm:$0xff]
    %v51 = vld [vmem:[%s8 + $0x18] sm:$0xff]
    %v52 = vld [vmem:[%s8 + $0x20] sm:$0xff]
    %v53 = vld [vmem:[%s8 + $0x28] sm:$0xff]
    %v54 = vld [vmem:[%s8 + $0x30] sm:$0xff]
    %v55 = vld [vmem:[%s8 + $0x38] sm:$0xff]
    %v56 = vld [vmem:[%s8 + $0x40] sm:$0xff]
    %v57 = vld [vmem:[%s8 + $0x48] sm:$0xff]
    %v58 = vld [vmem:[%s8 + $0x50] sm:$0xff]
    %v59 = vld [vmem:[%s8 + $0x58] sm:$0xff]
    %v60 = vld [vmem:[%s8 + $0x60] sm:$0xff]
    %v61 = vld [vmem:[%s8 + $0x68] sm:$0xff]
    %v62 = vld [vmem:[%s8 + $0x70] sm:$0xff]
    %v63 = vld [vmem:[%s8 + $0x78] sm:$0xff]
    %v64 = vld [vmem:[%s2] sm:$0xf]
    %v65 = vld [vmem:[%s1] sm:$0xff]
    %v66 = vld [vmem:[%s1 + $0x8] sm:$0xff]
    %v67 = vld [vmem:[%s1 + $0x10] sm:$0xff]
    %v68 = vld [vmem:[%s1 + $0x18] sm:$0xff]
    %v69 = vld [vmem:[%s1 + $0x20] sm:$0xff]
    %v70 = vld [vmem:[%s1 + $0x28] sm:$0xff]
    %v71 = vld [vmem:[%s1 + $0x30] sm:$0xff]
    %v72 = vld [vmem:[%s1 + $0x38] sm:$0xff]
    %v73 = vld [vmem:[%s1 + $0x40] sm:$0xff]
    %v74 = vld [vmem:[%s1 + $0x48] sm:$0xff]
    %v75 = vld [vmem:[%s1 + $0x50] sm:$0xff]
    %v76 = vld [vmem:[%s1 + $0x58] sm:$0xff]
    %v77 = vld [vmem:[%s1 + $0x60] sm:$0xff]
    %v78 = vld [vmem:[%s1 + $0x68] sm:$0xff]
    %v79 = vld [vmem:[%s1 + $0x70] sm:$0xff]
    %v80 = vld [vmem:[%s1 + $0x78] sm:$0xff]
    %v81 = vld [vmem:[%s1 + $0x80] sm:$0xff]
    %v82 = vld [vmem:[%s1 + $0x88] sm:$0xff]
    %v83 = vld [vmem:[%s1 + $0x90] sm:$0xff]
    %v84 = vld [vmem:[%s1 + $0x98] sm:$0xff]
    %86 = vset.pattern.permute.xlu0 0
    %87 = vperm.xlu0 %86, %v46
    %v88 = vpop.permute.xlu0 %87
    %v110 = vunpack.c.l.b16 %v65
    %v111 = vunpack.c.h.b16 %v65
    %v112 = vunpack.c.l.b16 %v66
    %v113 = vunpack.c.h.b16 %v66
    %v114 = vunpack.c.l.b16 %v67
    %v115 = vunpack.c.h.b16 %v67
    %v116 = vunpack.c.l.b16 %v68
    %v117 = vunpack.c.h.b16 %v68
    %v118 = vunpack.c.l.b16 %v69
    %v119 = vunpack.c.h.b16 %v69
    %v120 = vunpack.c.l.b16 %v70
    %v121 = vunpack.c.h.b16 %v70
    %v122 = vunpack.c.l.b16 %v71
    %v123 = vunpack.c.h.b16 %v71
    %v124 = vunpack.c.l.b16 %v72
    %v125 = vunpack.c.h.b16 %v72
    %v126 = vunpack.c.l.b16 %v73
    %v127 = vunpack.c.h.b16 %v73
    %v128 = vunpack.c.l.b16 %v74
    %v129 = vunpack.c.h.b16 %v74
    %v130 = vunpack.c.l.b16 %v75
    %v131 = vunpack.c.h.b16 %v75
    %v132 = vunpack.c.l.b16 %v76
    %v133 = vunpack.c.h.b16 %v76
    %v134 = vunpack.c.l.b16 %v77
    %v135 = vunpack.c.h.b16 %v77
    %v136 = vunpack.c.l.b16 %v78
    %v137 = vunpack.c.h.b16 %v78
    %v138 = vunpack.c.l.b16 %v79
    %v139 = vunpack.c.h.b16 %v79
    %v140 = vunpack.c.l.b16 %v80
    %v141 = vunpack.c.h.b16 %v80
    %v142 = vunpack.c.l.b16 %v81
    %v143 = vunpack.c.h.b16 %v81
    %v144 = vunpack.c.l.b16 %v82
    %v145 = vunpack.c.h.b16 %v82
    %v146 = vunpack.c.l.b16 %v83
    %v147 = vunpack.c.h.b16 %v83
    %v148 = vunpack.c.l.b16 %v84
    %v149 = vunpack.c.h.b16 %v84
    %v150 = vpack.c.b16 %v114, %v110
    %v151 = vpack.c.b16 %v115, %v111
    %v152 = vpack.c.b16 %v116, %v112
    %v153 = vpack.c.b16 %v117, %v113
    %v154 = vpack.c.b16 %v122, %v118
    %v155 = vpack.c.b16 %v123, %v119
    %v156 = vpack.c.b16 %v124, %v120
    %v157 = vpack.c.b16 %v125, %v121
    %v158 = vpack.c.b16 %v130, %v126
    %v159 = vpack.c.b16 %v131, %v127
    %v160 = vpack.c.b16 %v132, %v128
    %v161 = vpack.c.b16 %v133, %v129
    %v162 = vpack.c.b16 %v138, %v134
    %v163 = vpack.c.b16 %v139, %v135
    %v164 = vpack.c.b16 %v140, %v136
    %v165 = vpack.c.b16 %v141, %v137
    %v166 = vpack.c.b16 %v146, %v142
    %v167 = vpack.c.b16 %v147, %v143
    %v168 = vpack.c.b16 %v148, %v144
    %v169 = vpack.c.b16 %v149, %v145
    %vm190 = vcmask 654336
    %v192 = vsel %vm190, %v64, 0
    %194 = vmatpush.bf16.msra.mxu0 0
    %195 = vmatpush.bf16.msra.mxu0 0
    %196 = vmatpush.bf16.msra.mxu0 0
    %197 = vmatpush.bf16.msra.mxu0 %v166
    %198 = vmatpush.bf16.msra.mxu0 %v162
    %199 = vmatpush.bf16.msra.mxu0 %v158
    %200 = vmatpush.bf16.msra.mxu0 %v154
    %201 = vmatpush.bf16.msra.mxu0 %v150
    %202 = vmatmul.bf16.gmra.mxu0 %v192
    %v203 = vpop.f32.mrf.mxu0
    %v204 = vadd.f32 %v88, %v203
    %v205 = vpop.f32.mrf.mxu0
    %206 = vdwg.mxu0
    %207 = vmatpush.bf16.msra.mxu0 0
    %208 = vmatpush.bf16.msra.mxu0 0
    %209 = vmatpush.bf16.msra.mxu0 0
    %210 = vmatpush.bf16.msra.mxu0 %v167
    %211 = vmatpush.bf16.msra.mxu0 %v163
    %212 = vmatpush.bf16.msra.mxu0 %v159
    %213 = vmatpush.bf16.msra.mxu0 %v155
    %214 = vmatpush.bf16.msra.mxu0 %v151
    %215 = vmatmul.bf16.gmra.mxu0 %v192
    %v216 = vpop.f32.mrf.mxu0
    %v217 = vadd.f32 %v88, %v216
    %v218 = vpop.f32.mrf.mxu0
    %219 = vdwg.mxu0
    %220 = vmatpush.bf16.msra.mxu0 0
    %221 = vmatpush.bf16.msra.mxu0 0
    %222 = vmatpush.bf16.msra.mxu0 0
    %223 = vmatpush.bf16.msra.mxu0 %v168
    %224 = vmatpush.bf16.msra.mxu0 %v164
    %225 = vmatpush.bf16.msra.mxu0 %v160
    %226 = vmatpush.bf16.msra.mxu0 %v156
    %227 = vmatpush.bf16.msra.mxu0 %v152
    %228 = vmatmul.bf16.gmra.mxu0 %v192
    %v229 = vpop.f32.mrf.mxu0
    %v230 = vadd.f32 %v88, %v229
    %v231 = vpop.f32.mrf.mxu0
    %232 = vdwg.mxu0
    %233 = vmatpush.bf16.msra.mxu0 0
    %234 = vmatpush.bf16.msra.mxu0 0
    %235 = vmatpush.bf16.msra.mxu0 0
    %236 = vmatpush.bf16.msra.mxu0 %v169
    %237 = vmatpush.bf16.msra.mxu0 %v165
    %238 = vmatpush.bf16.msra.mxu0 %v161
    %239 = vmatpush.bf16.msra.mxu0 %v157
    %240 = vmatpush.bf16.msra.mxu0 %v153
    %241 = vmatmul.bf16.gmra.mxu0 %v192
    %v242 = vpop.f32.mrf.mxu0
    %v243 = vadd.f32 %v88, %v242
    %v244 = vpop.f32.mrf.mxu0
    %245 = vdwg.mxu0
    %s246 = sld [smem:[#allocation2]]
    %vm247 = vcmp.ge.f32.partialorder %v204, 0.0
    %vm248 = vcmp.ge.f32.partialorder %v217, 0.0
    %vm249 = vcmp.ge.f32.partialorder %v230, 0.0
    %vm250 = vcmp.ge.f32.partialorder %v243, 0.0
    %v251 = vstv %s246
    %v252 = vmul.f32 %v251, %v204
    %v253 = vmul.f32 %v251, %v217
    %v254 = vmul.f32 %v251, %v230
    %v255 = vmul.f32 %v251, %v243
    %v256 = vsel %vm247, %v204, %v252
    %v257 = vsel %vm248, %v217, %v253
    %v258 = vsel %vm249, %v230, %v254
    %v259 = vsel %vm250, %v243, %v255
    %v260 = vmul.f32 %v256, %v256
    %v261 = vmul.f32 %v257, %v257
    %v262 = vmul.f32 %v258, %v258
    %v263 = vmul.f32 %v259, %v259
    %264 = vmatpush.msra.mxu0 1.0
    %265 = vmatpush.msra.mxu0 1.0
    %266 = vmatpush.msra.mxu0 1.0
    %267 = vmatpush.msra.mxu0 1.0
    %268 = vmatpush.msra.mxu0 1.0
    %269 = vmatpush.msra.mxu0 1.0
    %270 = vmatpush.msra.mxu0 1.0
    %271 = vmatpush.msra.mxu0 1.0
    %272 = vmatpush.msra.mxu0 1.0
    %273 = vmatpush.msra.mxu0 1.0
    %274 = vmatpush.msra.mxu0 1.0
    %275 = vmatpush.msra.mxu0 1.0
    %276 = vmatpush.msra.mxu0 1.0
    %277 = vmatpush.msra.mxu0 1.0
    %278 = vmatpush.msra.mxu0 1.0
    %279 = vmatpush.msra.mxu0 1.0
    %280 = vmatmul.f32.gmra.mxu0 %v256
    %v281 = vpop.f32.mrf.mxu0
    %v282 = vadd.f32 0.0, %v281
    %283 = vmatmul.f32.gmra.mxu0 %v260
    %v284 = vpop.f32.mrf.mxu0
    %v285 = vadd.f32 0.0, %v284
    %286 = vdwg.mxu0
    %287 = vmatpush.msra.mxu0 1.0
    %288 = vmatpush.msra.mxu0 1.0
    %289 = vmatpush.msra.mxu0 1.0
    %290 = vmatpush.msra.mxu0 1.0
    %291 = vmatpush.msra.mxu0 1.0
    %292 = vmatpush.msra.mxu0 1.0
    %293 = vmatpush.msra.mxu0 1.0
    %294 = vmatpush.msra.mxu0 1.0
    %295 = vmatpush.msra.mxu0 1.0
    %296 = vmatpush.msra.mxu0 1.0
    %297 = vmatpush.msra.mxu0 1.0
    %298 = vmatpush.msra.mxu0 1.0
    %299 = vmatpush.msra.mxu0 1.0
    %300 = vmatpush.msra.mxu0 1.0
    %301 = vmatpush.msra.mxu0 1.0
    %302 = vmatpush.msra.mxu0 1.0
    %303 = vmatmul.f32.gmra.mxu0 %v257
    %v304 = vpop.f32.mrf.mxu0
    %v305 = vadd.f32 %v282, %v304
    %306 = vmatmul.f32.gmra.mxu0 %v261
    %v307 = vpop.f32.mrf.mxu0
    %v308 = vadd.f32 %v285, %v307
    %309 = vdwg.mxu0
    %310 = vmatpush.msra.mxu0 1.0
    %311 = vmatpush.msra.mxu0 1.0
    %312 = vmatpush.msra.mxu0 1.0
    %313 = vmatpush.msra.mxu0 1.0
    %314 = vmatpush.msra.mxu0 1.0
    %315 = vmatpush.msra.mxu0 1.0
    %316 = vmatpush.msra.mxu0 1.0
    %317 = vmatpush.msra.mxu0 1.0
    %318 = vmatpush.msra.mxu0 1.0
    %319 = vmatpush.msra.mxu0 1.0
    %320 = vmatpush.msra.mxu0 1.0
    %321 = vmatpush.msra.mxu0 1.0
    %322 = vmatpush.msra.mxu0 1.0
    %323 = vmatpush.msra.mxu0 1.0
    %324 = vmatpush.msra.mxu0 1.0
    %325 = vmatpush.msra.mxu0 1.0
    %326 = vmatmul.f32.gmra.mxu0 %v258
    %v327 = vpop.f32.mrf.mxu0
    %v328 = vadd.f32 %v305, %v327
    %329 = vmatmul.f32.gmra.mxu0 %v262
    %v330 = vpop.f32.mrf.mxu0
    %v331 = vadd.f32 %v308, %v330
    %332 = vdwg.mxu0
    %333 = vmatpush.msra.mxu0 1.0
    %334 = vmatpush.msra.mxu0 1.0
    %335 = vmatpush.msra.mxu0 1.0
    %336 = vmatpush.msra.mxu0 1.0
    %337 = vmatpush.msra.mxu0 1.0
    %338 = vmatpush.msra.mxu0 1.0
    %339 = vmatpush.msra.mxu0 1.0
    %340 = vmatpush.msra.mxu0 1.0
    %341 = vmatpush.msra.mxu0 1.0
    %342 = vmatpush.msra.mxu0 1.0
    %343 = vmatpush.msra.mxu0 1.0
    %344 = vmatpush.msra.mxu0 1.0
    %345 = vmatpush.msra.mxu0 1.0
    %346 = vmatpush.msra.mxu0 1.0
    %347 = vmatpush.msra.mxu0 1.0
    %348 = vmatpush.msra.mxu0 1.0
    %349 = vmatmul.f32.gmra.mxu0 %v259
    %v350 = vpop.f32.mrf.mxu0
    %v351 = vadd.f32 %v328, %v350
    %352 = vmatmul.f32.gmra.mxu0 %v263
    %v353 = vpop.f32.mrf.mxu0
    %v354 = vadd.f32 %v331, %v353
    %355 = vdwg.mxu0
    %v356 = vmul.f32 %v351, 0.001953125
    %v357 = vmul.f32 %v354, 0.001953125
    %v358 = vmul.f32 %v356, %v356
    %v359 = vsub.f32 %v357, %v358
    %v360 = vadd.f32 %v359, 1e-05
    %v361 = vrsqrt.pop %v360
    %v362 = vmul.f32 %v361, %v360
    %v363 = vmul.f32 %v362, %v361
    %v364 = vmul.f32 0.5, %v363
    %v365 = vsub.f32 1.5, %v364
    %v366 = vmul.f32 %v361, %v365
    %vm367 = vweird.f32 %v360
    %vm368 = vweird.f32 %v361
    %vm369 = vmor %vm367, %vm368
    %v370 = vsel %vm369, %v361, %v366
    %372 = vrot.lane.b32.xlu0 %v370, 1
    %v373 = vpop.permute.xlu0 %372
    %v375 = vmul.f32 %v46, %v373
    %377 = vrot.lane.b32.xlu0 %v375, 127
    %v378 = vpop.permute.xlu0 %377
    %v380 = vmul.f32 %v356, %v378
    %382 = vrot.lane.b32.xlu0 %v380, 2
    %v383 = vpop.permute.xlu0 %382
    %v385 = vsub.f32 %v46, %v383
    %386 = vset.pattern.permute.xlu0 1
    %387 = vperm.xlu0 %386, %v375
    %v388 = vpop.permute.xlu0 %387
    %v390 = vmul.f32 %v256, %v388
    %v391 = vmul.f32 %v257, %v388
    %v392 = vmul.f32 %v258, %v388
    %v393 = vmul.f32 %v259, %v388
    %395 = vset.pattern.permute.xlu0 2
    %396 = vperm.xlu0 %395, %v385
    %v397 = vpop.permute.xlu0 %396
    %v399 = vadd.f32 %v390, %v397
    %v400 = vadd.f32 %v391, %v397
    %v401 = vadd.f32 %v392, %v397
    %v402 = vadd.f32 %v393, %v397
    %v403 = vmax.f32 %v399, %v400
    %v404 = vmax.f32 %v401, %v402
    %v405 = vmax.f32 %v403, %v404
    %v406 = vlaneseq
    %v407 = vand.u32 %v406, 127
    %v408 = vcvt.s32.f32 %v407
    %v409 = vrcp.pop 16.0
    %v410 = vmul.f32 16.0, %v409
    %v411 = vsub.f32 1.0, %v410
    %v412 = vmul.f32 %v409, %v411
    %v413 = vadd.f32 %v409, %v412
    %vm414 = vweird.f32 %v409
    %v415 = vsel %vm414, %v409, %v413
    %v416 = vmul.f32 %v408, %v415
    %v417 = vfloor.f32 %v416
    %v418 = vmul.f32 %v417, 16.0
    %v419 = vsub.f32 %v408, %v418
    %v420 = vrcp.pop 2.0
    %v421 = vmul.f32 2.0, %v420
    %v422 = vsub.f32 1.0, %v421
    %v423 = vmul.f32 %v420, %v422
    %v424 = vadd.f32 %v420, %v423
    %vm425 = vweird.f32 %v420
    %v426 = vsel %vm425, %v420, %v424
    %v427 = vmul.f32 %v419, %v426
    %v428 = vfloor.f32 %v427
    %429 = vrot.lane.b32.xlu0 %v405, 36
    %v430 = vpop.permute.xlu0 %429
    %vm431 = vcmp.ge.f32.partialorder %v417, 2.0
    %vm432 = vcmp.lt.f32.partialorder %v417, 10.0
    %vm433 = vmand %vm431, %vm432
    %vm434 = vcmp.ge.f32.partialorder %v428, 2.0
    %vm435 = vmand %vm433, %vm434
    %vm436 = vcmp.lt.f32.partialorder %v428, 10.0
    %vm437 = vmand %vm435, %vm436
    %v438 = vsel %vm437, 1, 0
    %vm439 = vcmp.eq.s32.totalorder %v438, 1
    %v440 = vsel %vm439, %v430, 0.0
    %441 = vrot.lane.b32.xlu0 %v405, 34
    %v442 = vpop.permute.xlu0 %441
    %vm443 = vcmp.ge.f32.partialorder %v428, 1.0
    %vm444 = vmand %vm433, %vm443
    %vm445 = vcmp.lt.f32.partialorder %v428, 9.0
    %vm446 = vmand %vm444, %vm445
    %v447 = vsel %vm446, 1, 0
    %vm448 = vcmp.eq.s32.totalorder %v447, 1
    %v449 = vsel %vm448, %v442, 0.0
    %450 = vrot.lane.b32.xlu0 %v405, 32
    %v451 = vpop.permute.xlu0 %450
    %vm452 = vcmp.ge.f32.partialorder %v428, 0.0
    %vm453 = vmand %vm433, %vm452
    %vm454 = vcmp.lt.f32.partialorder %v428, 8.0
    %vm455 = vmand %vm453, %vm454
    %v456 = vsel %vm455, 1, 0
    %vm457 = vcmp.eq.s32.totalorder %v456, 1
    %v458 = vsel %vm457, %v451, 0.0
    %459 = vrot.lane.b32.xlu0 %v405, 30
    %v460 = vpop.permute.xlu0 %459
    %vm461 = vcmp.ge.f32.partialorder %v428, -1.0
    %vm462 = vmand %vm433, %vm461
    %vm463 = vcmp.lt.f32.partialorder %v428, 7.0
    %vm464 = vmand %vm462, %vm463
    %v465 = vsel %vm464, 1, 0
    %vm466 = vcmp.eq.s32.totalorder %v465, 1
    %v467 = vsel %vm466, %v460, 0.0
    %468 = vrot.lane.b32.xlu0 %v405, 28
    %v469 = vpop.permute.xlu0 %468
    %vm470 = vcmp.ge.f32.partialorder %v428, -2.0
    %vm471 = vmand %vm433, %vm470
    %vm472 = vcmp.lt.f32.partialorder %v428, 6.0
    %vm473 = vmand %vm471, %vm472
    %v474 = vsel %vm473, 1, 0
    %vm475 = vcmp.eq.s32.totalorder %v474, 1
    %v476 = vsel %vm475, %v469, 0.0
    %477 = vrot.lane.b32.xlu0 %v405, 20
    %v478 = vpop.permute.xlu0 %477
    %vm479 = vcmp.ge.f32.partialorder %v417, 1.0
    %vm480 = vcmp.lt.f32.partialorder %v417, 9.0
    %vm481 = vmand %vm479, %vm480
    %vm482 = vmand %vm481, %vm434
    %vm483 = vmand %vm482, %vm436
    %v484 = vsel %vm483, 1, 0
    %vm485 = vcmp.eq.s32.totalorder %v484, 1
    %v486 = vsel %vm485, %v478, 0.0
    %487 = vrot.lane.b32.xlu0 %v405, 18
    %v488 = vpop.permute.xlu0 %487
    %vm489 = vmand %vm481, %vm443
    %vm490 = vmand %vm489, %vm445
    %v491 = vsel %vm490, 1, 0
    %vm492 = vcmp.eq.s32.totalorder %v491, 1
    %v493 = vsel %vm492, %v488, 0.0
    %494 = vrot.lane.b32.xlu0 %v405, 16
    %v495 = vpop.permute.xlu0 %494
    %vm496 = vmand %vm481, %vm452
    %vm497 = vmand %vm496, %vm454
    %v498 = vsel %vm497, 1, 0
    %vm499 = vcmp.eq.s32.totalorder %v498, 1
    %v500 = vsel %vm499, %v495, 0.0
    %501 = vrot.lane.b32.xlu0 %v405, 14
    %v502 = vpop.permute.xlu0 %501
    %vm503 = vmand %vm481, %vm461
    %vm504 = vmand %vm503, %vm463
    %v505 = vsel %vm504, 1, 0
    %vm506 = vcmp.eq.s32.totalorder %v505, 1
    %v507 = vsel %vm506, %v502, 0.0
    %508 = vrot.lane.b32.xlu0 %v405, 12
    %v509 = vpop.permute.xlu0 %508
    %vm510 = vmand %vm481, %vm470
    %vm511 = vmand %vm510, %vm472
    %v512 = vsel %vm511, 1, 0
    %vm513 = vcmp.eq.s32.totalorder %v512, 1
    %v514 = vsel %vm513, %v509, 0.0
    %515 = vrot.lane.b32.xlu0 %v405, 4
    %v516 = vpop.permute.xlu0 %515
    %vm517 = vcmp.ge.f32.partialorder %v417, 0.0
    %vm518 = vcmp.lt.f32.partialorder %v417, 8.0
    %vm519 = vmand %vm517, %vm518
    %vm520 = vmand %vm519, %vm434
    %vm521 = vmand %vm520, %vm436
    %v522 = vsel %vm521, 1, 0
    %vm523 = vcmp.eq.s32.totalorder %v522, 1
    %v524 = vsel %vm523, %v516, 0.0
    %525 = vrot.lane.b32.xlu0 %v405, 2
    %v526 = vpop.permute.xlu0 %525
    %vm527 = vmand %vm519, %vm443
    %vm528 = vmand %vm527, %vm445
    %v529 = vsel %vm528, 1, 0
    %vm530 = vcmp.eq.s32.totalorder %v529, 1
    %v531 = vsel %vm530, %v526, 0.0
    %532 = vrot.lane.b32.xlu0 %v405, 126
    %v533 = vpop.permute.xlu0 %532
    %vm534 = vmand %vm519, %vm461
    %vm535 = vmand %vm534, %vm463
    %v536 = vsel %vm535, 1, 0
    %vm537 = vcmp.eq.s32.totalorder %v536, 1
    %v538 = vsel %vm537, %v533, 0.0
    %539 = vrot.lane.b32.xlu0 %v405, 124
    %v540 = vpop.permute.xlu0 %539
    %vm541 = vmand %vm519, %vm470
    %vm542 = vmand %vm541, %vm472
    %v543 = vsel %vm542, 1, 0
    %vm544 = vcmp.eq.s32.totalorder %v543, 1
    %v545 = vsel %vm544, %v540, 0.0
    %546 = vrot.lane.b32.xlu0 %v405, 116
    %v547 = vpop.permute.xlu0 %546
    %vm548 = vcmp.ge.f32.partialorder %v417, -1.0
    %vm549 = vcmp.lt.f32.partialorder %v417, 7.0
    %vm550 = vmand %vm548, %vm549
    %vm551 = vmand %vm550, %vm434
    %vm552 = vmand %vm551, %vm436
    %v553 = vsel %vm552, 1, 0
    %vm554 = vcmp.eq.s32.totalorder %v553, 1
    %v555 = vsel %vm554, %v547, 0.0
    %556 = vrot.lane.b32.xlu0 %v405, 114
    %v557 = vpop.permute.xlu0 %556
    %vm558 = vmand %vm550, %vm443
    %vm559 = vmand %vm558, %vm445
    %v560 = vsel %vm559, 1, 0
    %vm561 = vcmp.eq.s32.totalorder %v560, 1
    %v562 = vsel %vm561, %v557, 0.0
    %563 = vrot.lane.b32.xlu0 %v405, 112
    %v564 = vpop.permute.xlu0 %563
    %vm565 = vmand %vm550, %vm452
    %vm566 = vmand %vm565, %vm454
    %v567 = vsel %vm566, 1, 0
    %vm568 = vcmp.eq.s32.totalorder %v567, 1
    %v569 = vsel %vm568, %v564, 0.0
    %570 = vrot.lane.b32.xlu0 %v405, 110
    %v571 = vpop.permute.xlu0 %570
    %vm572 = vmand %vm550, %vm461
    %vm573 = vmand %vm572, %vm463
    %v574 = vsel %vm573, 1, 0
    %vm575 = vcmp.eq.s32.totalorder %v574, 1
    %v576 = vsel %vm575, %v571, 0.0
    %577 = vrot.lane.b32.xlu0 %v405, 108
    %v578 = vpop.permute.xlu0 %577
    %vm579 = vmand %vm550, %vm470
    %vm580 = vmand %vm579, %vm472
    %v581 = vsel %vm580, 1, 0
    %vm582 = vcmp.eq.s32.totalorder %v581, 1
    %v583 = vsel %vm582, %v578, 0.0
    %584 = vrot.lane.b32.xlu0 %v405, 100
    %v585 = vpop.permute.xlu0 %584
    %vm586 = vcmp.ge.f32.partialorder %v417, -2.0
    %vm587 = vcmp.lt.f32.partialorder %v417, 6.0
    %vm588 = vmand %vm586, %vm587
    %vm589 = vmand %vm588, %vm434
    %vm590 = vmand %vm589, %vm436
    %v591 = vsel %vm590, 1, 0
    %vm592 = vcmp.eq.s32.totalorder %v591, 1
    %v593 = vsel %vm592, %v585, 0.0
    %594 = vrot.lane.b32.xlu0 %v405, 98
    %v595 = vpop.permute.xlu0 %594
    %vm596 = vmand %vm588, %vm443
    %vm597 = vmand %vm596, %vm445
    %v598 = vsel %vm597, 1, 0
    %vm599 = vcmp.eq.s32.totalorder %v598, 1
    %v600 = vsel %vm599, %v595, 0.0
    %601 = vrot.lane.b32.xlu0 %v405, 96
    %v602 = vpop.permute.xlu0 %601
    %vm603 = vmand %vm588, %vm452
    %vm604 = vmand %vm603, %vm454
    %v605 = vsel %vm604, 1, 0
    %vm606 = vcmp.eq.s32.totalorder %v605, 1
    %v607 = vsel %vm606, %v602, 0.0
    %608 = vrot.lane.b32.xlu0 %v405, 94
    %v609 = vpop.permute.xlu0 %608
    %vm610 = vmand %vm588, %vm461
    %vm611 = vmand %vm610, %vm463
    %v612 = vsel %vm611, 1, 0
    %vm613 = vcmp.eq.s32.totalorder %v612, 1
    %v614 = vsel %vm613, %v609, 0.0
    %615 = vrot.lane.b32.xlu0 %v405, 92
    %v616 = vpop.permute.xlu0 %615
    %vm617 = vmand %vm588, %vm470
    %vm618 = vmand %vm617, %vm472
    %v619 = vsel %vm618, 1, 0
    %vm620 = vcmp.eq.s32.totalorder %v619, 1
    %v621 = vsel %vm620, %v616, 0.0
    %v622 = vpack.c.bf16 %v449, %v440
    %v623 = vpack.c.bf16 %v467, %v458
    %v624 = vpack.c.bf16 %v486, %v476
    %v625 = vpack.c.bf16 %v500, %v493
    %v626 = vpack.c.bf16 %v514, %v507
    %v627 = vpack.c.bf16 %v531, %v524
    %v628 = vpack.c.bf16 %v538, %v405
    %v629 = vpack.c.bf16 %v555, %v545
    %v630 = vpack.c.bf16 %v569, %v562
    %v631 = vpack.c.bf16 %v583, %v576
    %v632 = vpack.c.bf16 %v600, %v593
    %v633 = vpack.c.bf16 %v614, %v607
    %v634 = vpack.c.bf16 %v621, %v621
    %v635 = vld [vmem:[%s3] sm:$0xff]
    %v636 = vld [vmem:[%s3 + $0x8] sm:$0xff]
    %637 = vset.pattern.permute.xlu0 3
    %638 = vperm.xlu0 %637, %v46
    %v639 = vpop.permute.xlu0 %638
    %642 = vset.pattern.permute.xlu0 3
    %643 = vperm.xlu0 %642, %v47
    %v644 = vpop.permute.xlu0 %643
    %v648 = vunpack.c.l.b16 %v635
    %v649 = vunpack.c.h.b16 %v635
    %v650 = vunpack.c.l.b16 %v636
    %v651 = vunpack.c.h.b16 %v636
    %v652 = vpack.c.b16 %v650, %v648
    %v653 = vpack.c.b16 %v651, %v649
    %vm655 = vcmask 588800
    %v657 = vsel %vm655, %v653, 0
    %vm659 = vcmask 1043456
    %v661 = vsel %vm659, %v634, 0
    %663 = vmatpush.bf16.msra.mxu0 %v629
    %664 = vmatpush.bf16.msra.mxu0 %v628
    %665 = vmatpush.bf16.msra.mxu0 %v627
    %666 = vmatpush.bf16.msra.mxu0 %v626
    %667 = vmatpush.bf16.msra.mxu0 %v625
    %668 = vmatpush.bf16.msra.mxu0 %v624
    %669 = vmatpush.bf16.msra.mxu0 %v623
    %670 = vmatpush.bf16.msra.mxu0 %v622
    %671 = vmatmul.bf16.gmra.mxu0 %v652
    %v672 = vpop.f32.mrf.mxu0
    %v673 = vadd.f32 %v639, %v672
    %v674 = vpop.f32.mrf.mxu0
    %v675 = vadd.f32 %v644, %v674
    %676 = vdwg.mxu0
    %677 = vmatpush.bf16.msra.mxu0 0
    %678 = vmatpush.bf16.msra.mxu0 0
    %679 = vmatpush.bf16.msra.mxu0 0
    %680 = vmatpush.bf16.msra.mxu0 %v661
    %681 = vmatpush.bf16.msra.mxu0 %v633
    %682 = vmatpush.bf16.msra.mxu0 %v632
    %683 = vmatpush.bf16.msra.mxu0 %v631
    %684 = vmatpush.bf16.msra.mxu0 %v630
    %685 = vmatmul.bf16.gmra.mxu0 %v657
    %v686 = vpop.f32.mrf.mxu0
    %v687 = vadd.f32 %v673, %v686
    %v688 = vpop.f32.mrf.mxu0
    %v689 = vadd.f32 %v675, %v688
    %690 = vdwg.mxu0
    %s691 = sld [smem:[#allocation2 + $0x1]]
    %vm692 = vcmp.ge.f32.partialorder %v687, 0.0
    %vm693 = vcmp.ge.f32.partialorder %v689, 0.0
    %v694 = vstv %s691
    %v695 = vmul.f32 %v694, %v687
    %v696 = vmul.f32 %v694, %v689
    %v697 = vsel %vm692, %v687, %v695
    %v698 = vsel %vm693, %v689, %v696
    %v699 = vmul.f32 %v697, %v697
    %v700 = vmul.f32 %v698, %v698
    %701 = vmatpush.msra.mxu0 1.0
    %702 = vmatpush.msra.mxu0 1.0
    %703 = vmatpush.msra.mxu0 1.0
    %704 = vmatpush.msra.mxu0 1.0
    %705 = vmatpush.msra.mxu0 1.0
    %706 = vmatpush.msra.mxu0 1.0
    %707 = vmatpush.msra.mxu0 1.0
    %708 = vmatpush.msra.mxu0 1.0
    %709 = vmatpush.msra.mxu0 1.0
    %710 = vmatpush.msra.mxu0 1.0
    %711 = vmatpush.msra.mxu0 1.0
    %712 = vmatpush.msra.mxu0 1.0
    %713 = vmatpush.msra.mxu0 1.0
    %714 = vmatpush.msra.mxu0 1.0
    %715 = vmatpush.msra.mxu0 1.0
    %716 = vmatpush.msra.mxu0 1.0
    %717 = vmatmul.f32.gmra.mxu0 %v697
    %v718 = vpop.f32.mrf.mxu0
    %v719 = vadd.f32 0.0, %v718
    %720 = vmatmul.f32.gmra.mxu0 %v698
    %v721 = vpop.f32.mrf.mxu0
    %v722 = vadd.f32 0.0, %v721
    %723 = vmatmul.f32.gmra.mxu0 %v699
    %v724 = vpop.f32.mrf.mxu0
    %v725 = vadd.f32 0.0, %v724
    %726 = vmatmul.f32.gmra.mxu0 %v700
    %v727 = vpop.f32.mrf.mxu0
    %v728 = vadd.f32 0.0, %v727
    %729 = vdwg.mxu0
    %v730 = vmul.f32 %v719, 0.0078125
    %v731 = vmul.f32 %v722, 0.0078125
    %v732 = vmul.f32 %v725, 0.0078125
    %v733 = vmul.f32 %v728, 0.0078125
    %v734 = vmul.f32 %v730, %v730
    %v735 = vmul.f32 %v731, %v731
    %v736 = vsub.f32 %v732, %v734
    %v737 = vsub.f32 %v733, %v735
    %v738 = vadd.f32 %v736, 1e-05
    %v739 = vadd.f32 %v737, 1e-05
    %v740 = vrsqrt.pop %v738
    %v741 = vmul.f32 %v740, %v738
    %v742 = vmul.f32 %v741, %v740
    %v743 = vmul.f32 0.5, %v742
    %v744 = vsub.f32 1.5, %v743
    %v745 = vmul.f32 %v740, %v744
    %vm746 = vweird.f32 %v738
    %vm747 = vweird.f32 %v740
    %vm748 = vmor %vm746, %vm747
    %v749 = vsel %vm748, %v740, %v745
    %v750 = vrsqrt.pop %v739
    %v751 = vmul.f32 %v750, %v739
    %v752 = vmul.f32 %v751, %v750
    %v753 = vmul.f32 0.5, %v752
    %v754 = vsub.f32 1.5, %v753
    %v755 = vmul.f32 %v750, %v754
    %vm756 = vweird.f32 %v739
    %vm757 = vweird.f32 %v750
    %vm758 = vmor %vm756, %vm757
    %v759 = vsel %vm758, %v750, %v755
    %762 = vrot.lane.b32.xlu0 %v749, 4
    %v763 = vpop.permute.xlu0 %762
    %764 = vrot.lane.b32.xlu0 %v759, 4
    %v765 = vpop.permute.xlu0 %764
    %v768 = vmul.f32 %v46, %v763
    %v769 = vmul.f32 %v47, %v765
    %772 = vrot.lane.b32.xlu0 %v768, 124
    %v773 = vpop.permute.xlu0 %772
    %774 = vrot.lane.b32.xlu0 %v769, 124
    %v775 = vpop.permute.xlu0 %774
    %v778 = vmul.f32 %v730, %v773
    %v779 = vmul.f32 %v731, %v775
    %782 = vrot.lane.b32.xlu0 %v778, 5
    %v783 = vpop.permute.xlu0 %782
    %784 = vrot.lane.b32.xlu0 %v779, 5
    %v785 = vpop.permute.xlu0 %784
    %v788 = vsub.f32 %v46, %v783
    %v789 = vsub.f32 %v47, %v785
    %790 = vset.pattern.permute.xlu0 4
    %791 = vperm.xlu0 %790, %v768
    %v792 = vpop.permute.xlu0 %791
    %794 = vset.pattern.permute.xlu0 4
    %795 = vperm.xlu0 %794, %v769
    %v796 = vpop.permute.xlu0 %795
    %v798 = vmul.f32 %v697, %v792
    %v799 = vmul.f32 %v698, %v796
    %801 = vset.pattern.permute.xlu0 5
    %802 = vperm.xlu0 %801, %v788
    %v803 = vpop.permute.xlu0 %802
    %806 = vset.pattern.permute.xlu0 5
    %807 = vperm.xlu0 %806, %v789
    %v808 = vpop.permute.xlu0 %807
    %v810 = vadd.f32 %v798, %v803
    %v811 = vadd.f32 %v799, %v808
    %812 = vrot.lane.b32.xlu0 %v810, 126
    %v813 = vpop.permute.xlu0 %812
    %814 = vrot.lane.b32.xlu0 %v811, 126
    %v815 = vpop.permute.xlu0 %814
    %v816 = vmax.f32 %v810, %v813
    %v817 = vmax.f32 %v811, %v815
    %818 = vrot.lane.b32.xlu0 %v816, 112
    %v819 = vpop.permute.xlu0 %818
    %820 = vrot.lane.b32.xlu0 %v817, 112
    %v821 = vpop.permute.xlu0 %820
    %v822 = vmax.f32 %v816, %v819
    %v823 = vmax.f32 %v817, %v821
    %v824 = vpack.c.bf16 %v822, %v822
    %v825 = vpack.c.bf16 %v823, %v823
    %v826 = vld [vmem:[%s5] sm:$0xf]
    %v827 = vld [vmem:[%s5 + $0x4] sm:$0xf]
    %v828 = vld [vmem:[%s5 + $0x8] sm:$0xf]
    %v829 = vld [vmem:[%s5 + $0xc] sm:$0xf]
    %v830 = vld [vmem:[%s5 + $0x10] sm:$0xf]
    %v831 = vld [vmem:[%s5 + $0x14] sm:$0xf]
    %v832 = vld [vmem:[%s5 + $0x18] sm:$0xf]
    %v833 = vld [vmem:[%s5 + $0x1c] sm:$0xf]
    %v834 = vld [vmem:[%s5 + $0x20] sm:$0xf]
    %v835 = vld [vmem:[%s5 + $0x24] sm:$0xf]
    %v836 = vld [vmem:[%s5 + $0x28] sm:$0xf]
    %v837 = vld [vmem:[%s5 + $0x2c] sm:$0xf]
    %v838 = vld [vmem:[%s5 + $0x30] sm:$0xf]
    %v839 = vld [vmem:[%s5 + $0x34] sm:$0xf]
    %v840 = vld [vmem:[%s5 + $0x38] sm:$0xf]
    %v841 = vld [vmem:[%s5 + $0x3c] sm:$0xf]
    %s842 = scalar_lea.vmem %s5, 64
    %v843 = vld [vmem:[%s842] sm:$0xf]
    %v844 = vld [vmem:[%s842 + $0x4] sm:$0xf]
    %v845 = vld [vmem:[%s842 + $0x8] sm:$0xf]
    %v846 = vld [vmem:[%s842 + $0xc] sm:$0xf]
    %v847 = vld [vmem:[%s842 + $0x10] sm:$0xf]
    %v848 = vld [vmem:[%s842 + $0x14] sm:$0xf]
    %v849 = vld [vmem:[%s842 + $0x18] sm:$0xf]
    %v850 = vld [vmem:[%s842 + $0x1c] sm:$0xf]
    %v851 = vld [vmem:[%s842 + $0x20] sm:$0xf]
    %v852 = vld [vmem:[%s842 + $0x24] sm:$0xf]
    %v853 = vld [vmem:[%s842 + $0x28] sm:$0xf]
    %v854 = vld [vmem:[%s842 + $0x2c] sm:$0xf]
    %v855 = vld [vmem:[%s842 + $0x30] sm:$0xf]
    %v856 = vld [vmem:[%s842 + $0x34] sm:$0xf]
    %v857 = vld [vmem:[%s842 + $0x38] sm:$0xf]
    %v858 = vld [vmem:[%s842 + $0x3c] sm:$0xf]
    %v875 = vunpack.c.l.b16 %v843
    %v876 = vunpack.c.l.b16 %v844
    %v877 = vunpack.c.l.b16 %v845
    %v878 = vunpack.c.l.b16 %v846
    %v879 = vunpack.c.l.b16 %v847
    %v880 = vunpack.c.l.b16 %v848
    %v881 = vunpack.c.l.b16 %v849
    %v882 = vunpack.c.l.b16 %v850
    %v883 = vunpack.c.l.b16 %v851
    %v884 = vunpack.c.l.b16 %v852
    %v885 = vunpack.c.l.b16 %v853
    %v886 = vunpack.c.l.b16 %v854
    %v887 = vunpack.c.l.b16 %v855
    %v888 = vunpack.c.l.b16 %v856
    %v889 = vunpack.c.l.b16 %v857
    %v890 = vunpack.c.l.b16 %v858
    %v891 = vpack.c.b16 %v876, %v875
    %v892 = vpack.c.b16 %v878, %v877
    %v893 = vpack.c.b16 %v880, %v879
    %v894 = vpack.c.b16 %v882, %v881
    %v895 = vpack.c.b16 %v884, %v883
    %v896 = vpack.c.b16 %v886, %v885
    %v897 = vpack.c.b16 %v888, %v887
    %v898 = vpack.c.b16 %v890, %v889
    %v901 = vunpack.c.l.b16 %v824
    %v902 = vunpack.c.l.b16 %v825
    %v903 = vpack.c.b16 %v902, %v901
    %904 = vrot.lane.b32.xlu0 %v903, 124
    %v905 = vpop.permute.xlu0 %904
    %vm907 = vcmask 130048
    %v909 = vsel %vm907, %v891, 0
    %v912 = vsel %vm907, %v892, 0
    %v915 = vsel %vm907, %v893, 0
    %v918 = vsel %vm907, %v894, 0
    %v921 = vsel %vm907, %v895, 0
    %v924 = vsel %vm907, %v896, 0
    %v927 = vsel %vm907, %v897, 0
    %v930 = vsel %vm907, %v898, 0
    %932 = vmatpush.bf16.msra.mxu0 0
    %933 = vmatpush.bf16.msra.mxu0 0
    %934 = vmatpush.bf16.msra.mxu0 0
    %935 = vmatpush.bf16.msra.mxu0 0
    %936 = vmatpush.bf16.msra.mxu0 0
    %937 = vmatpush.bf16.msra.mxu0 0
    %938 = vmatpush.bf16.msra.mxu0 0
    %939 = vmatpush.bf16.msra.mxu0 %v905
    %940 = vmatmul.bf16.gmra.mxu0 %v909
    %v941 = vpop.f32.mrf.mxu0
    %v942 = vadd.f32 0.0, %v941
    %v943 = vpop.f32.mrf.mxu0
    %v944 = vadd.f32 0.0, %v943
    %945 = vmatmul.bf16.gmra.mxu0 %v912
    %v946 = vpop.f32.mrf.mxu0
    %v947 = vadd.f32 0.0, %v946
    %v948 = vpop.f32.mrf.mxu0
    %v949 = vadd.f32 0.0, %v948
    %950 = vmatmul.bf16.gmra.mxu0 %v915
    %v951 = vpop.f32.mrf.mxu0
    %v952 = vadd.f32 0.0, %v951
    %v953 = vpop.f32.mrf.mxu0
    %v954 = vadd.f32 0.0, %v953
    %955 = vmatmul.bf16.gmra.mxu0 %v918
    %v956 = vpop.f32.mrf.mxu0
    %v957 = vadd.f32 0.0, %v956
    %v958 = vpop.f32.mrf.mxu0
    %v959 = vadd.f32 0.0, %v958
    %960 = vmatmul.bf16.gmra.mxu0 %v921
    %v961 = vpop.f32.mrf.mxu0
    %v962 = vadd.f32 0.0, %v961
    %v963 = vpop.f32.mrf.mxu0
    %v964 = vadd.f32 0.0, %v963
    %965 = vmatmul.bf16.gmra.mxu0 %v924
    %v966 = vpop.f32.mrf.mxu0
    %v967 = vadd.f32 0.0, %v966
    %v968 = vpop.f32.mrf.mxu0
    %v969 = vadd.f32 0.0, %v968
    %970 = vmatmul.bf16.gmra.mxu0 %v927
    %v971 = vpop.f32.mrf.mxu0
    %v972 = vadd.f32 0.0, %v971
    %v973 = vpop.f32.mrf.mxu0
    %v974 = vadd.f32 0.0, %v973
    %975 = vmatmul.bf16.gmra.mxu0 %v930
    %v976 = vpop.f32.mrf.mxu0
    %v977 = vadd.f32 0.0, %v976
    %v978 = vpop.f32.mrf.mxu0
    %v979 = vadd.f32 0.0, %v978
    %980 = vdwg.mxu0
    %v997 = vunpack.c.l.b16 %v826
    %v998 = vunpack.c.l.b16 %v827
    %v999 = vunpack.c.l.b16 %v828
    %v1000 = vunpack.c.l.b16 %v829
    %v1001 = vunpack.c.l.b16 %v830
    %v1002 = vunpack.c.l.b16 %v831
    %v1003 = vunpack.c.l.b16 %v832
    %v1004 = vunpack.c.l.b16 %v833
    %v1005 = vunpack.c.l.b16 %v834
    %v1006 = vunpack.c.l.b16 %v835
    %v1007 = vunpack.c.l.b16 %v836
    %v1008 = vunpack.c.l.b16 %v837
    %v1009 = vunpack.c.l.b16 %v838
    %v1010 = vunpack.c.l.b16 %v839
    %v1011 = vunpack.c.l.b16 %v840
    %v1012 = vunpack.c.l.b16 %v841
    %v1013 = vpack.c.b16 %v998, %v997
    %v1014 = vpack.c.b16 %v1000, %v999
    %v1015 = vpack.c.b16 %v1002, %v1001
    %v1016 = vpack.c.b16 %v1004, %v1003
    %v1017 = vpack.c.b16 %v1006, %v1005
    %v1018 = vpack.c.b16 %v1008, %v1007
    %v1019 = vpack.c.b16 %v1010, %v1009
    %v1020 = vpack.c.b16 %v1012, %v1011
    %v1023 = vsel %vm907, %v1013, 0
    %v1026 = vsel %vm907, %v1014, 0
    %v1029 = vsel %vm907, %v1015, 0
    %v1032 = vsel %vm907, %v1016, 0
    %v1035 = vsel %vm907, %v1017, 0
    %v1038 = vsel %vm907, %v1018, 0
    %v1041 = vsel %vm907, %v1019, 0
    %v1044 = vsel %vm907, %v1020, 0
    %1046 = vmatpush.bf16.msra.mxu0 0
    %1047 = vmatpush.bf16.msra.mxu0 0
    %1048 = vmatpush.bf16.msra.mxu0 0
    %1049 = vmatpush.bf16.msra.mxu0 0
    %1050 = vmatpush.bf16.msra.mxu0 0
    %1051 = vmatpush.bf16.msra.mxu0 0
    %1052 = vmatpush.bf16.msra.mxu0 0
    %1053 = vmatpush.bf16.msra.mxu0 %v903
    %1054 = vmatmul.bf16.gmra.mxu0 %v1023
    %v1055 = vpop.f32.mrf.mxu0
    %v1056 = vadd.f32 %v942, %v1055
    %v1057 = vpop.f32.mrf.mxu0
    %v1058 = vadd.f32 %v944, %v1057
    %1059 = vmatmul.bf16.gmra.mxu0 %v1026
    %v1060 = vpop.f32.mrf.mxu0
    %v1061 = vadd.f32 %v947, %v1060
    %v1062 = vpop.f32.mrf.mxu0
    %v1063 = vadd.f32 %v949, %v1062
    %1064 = vmatmul.bf16.gmra.mxu0 %v1029
    %v1065 = vpop.f32.mrf.mxu0
    %v1066 = vadd.f32 %v952, %v1065
    %v1067 = vpop.f32.mrf.mxu0
    %v1068 = vadd.f32 %v954, %v1067
    %1069 = vmatmul.bf16.gmra.mxu0 %v1032
    %v1070 = vpop.f32.mrf.mxu0
    %v1071 = vadd.f32 %v957, %v1070
    %v1072 = vpop.f32.mrf.mxu0
    %v1073 = vadd.f32 %v959, %v1072
    %1074 = vmatmul.bf16.gmra.mxu0 %v1035
    %v1075 = vpop.f32.mrf.mxu0
    %v1076 = vadd.f32 %v962, %v1075
    %v1077 = vpop.f32.mrf.mxu0
    %v1078 = vadd.f32 %v964, %v1077
    %1079 = vmatmul.bf16.gmra.mxu0 %v1038
    %v1080 = vpop.f32.mrf.mxu0
    %v1081 = vadd.f32 %v967, %v1080
    %v1082 = vpop.f32.mrf.mxu0
    %v1083 = vadd.f32 %v969, %v1082
    %1084 = vmatmul.bf16.gmra.mxu0 %v1041
    %v1085 = vpop.f32.mrf.mxu0
    %v1086 = vadd.f32 %v972, %v1085
    %v1087 = vpop.f32.mrf.mxu0
    %v1088 = vadd.f32 %v974, %v1087
    %1089 = vmatmul.bf16.gmra.mxu0 %v1044
    %v1090 = vpop.f32.mrf.mxu0
    %v1091 = vadd.f32 %v977, %v1090
    %v1092 = vpop.f32.mrf.mxu0
    %v1093 = vadd.f32 %v979, %v1092
    %1094 = vdwg.mxu0
    %s1095 = scalar_lea.vmem %s5, 128
    %v1096 = vld [vmem:[%s1095] sm:$0xf]
    %v1097 = vld [vmem:[%s1095 + $0x4] sm:$0xf]
    %v1098 = vld [vmem:[%s1095 + $0x8] sm:$0xf]
    %v1099 = vld [vmem:[%s1095 + $0xc] sm:$0xf]
    %v1100 = vld [vmem:[%s1095 + $0x10] sm:$0xf]
    %v1101 = vld [vmem:[%s1095 + $0x14] sm:$0xf]
    %v1102 = vld [vmem:[%s1095 + $0x18] sm:$0xf]
    %v1103 = vld [vmem:[%s1095 + $0x1c] sm:$0xf]
    %v1104 = vld [vmem:[%s1095 + $0x20] sm:$0xf]
    %v1105 = vld [vmem:[%s1095 + $0x24] sm:$0xf]
    %v1106 = vld [vmem:[%s1095 + $0x28] sm:$0xf]
    %v1107 = vld [vmem:[%s1095 + $0x2c] sm:$0xf]
    %v1108 = vld [vmem:[%s1095 + $0x30] sm:$0xf]
    %v1109 = vld [vmem:[%s1095 + $0x34] sm:$0xf]
    %v1110 = vld [vmem:[%s1095 + $0x38] sm:$0xf]
    %v1111 = vld [vmem:[%s1095 + $0x3c] sm:$0xf]
    %v1128 = vunpack.c.l.b16 %v1096
    %v1129 = vunpack.c.l.b16 %v1097
    %v1130 = vunpack.c.l.b16 %v1098
    %v1131 = vunpack.c.l.b16 %v1099
    %v1132 = vunpack.c.l.b16 %v1100
    %v1133 = vunpack.c.l.b16 %v1101
    %v1134 = vunpack.c.l.b16 %v1102
    %v1135 = vunpack.c.l.b16 %v1103
    %v1136 = vunpack.c.l.b16 %v1104
    %v1137 = vunpack.c.l.b16 %v1105
    %v1138 = vunpack.c.l.b16 %v1106
    %v1139 = vunpack.c.l.b16 %v1107
    %v1140 = vunpack.c.l.b16 %v1108
    %v1141 = vunpack.c.l.b16 %v1109
    %v1142 = vunpack.c.l.b16 %v1110
    %v1143 = vunpack.c.l.b16 %v1111
    %v1144 = vpack.c.b16 %v1129, %v1128
    %v1145 = vpack.c.b16 %v1131, %v1130
    %v1146 = vpack.c.b16 %v1133, %v1132
    %v1147 = vpack.c.b16 %v1135, %v1134
    %v1148 = vpack.c.b16 %v1137, %v1136
    %v1149 = vpack.c.b16 %v1139, %v1138
    %v1150 = vpack.c.b16 %v1141, %v1140
    %v1151 = vpack.c.b16 %v1143, %v1142
    %1152 = vrot.lane.b32.xlu0 %v903, 120
    %v1153 = vpop.permute.xlu0 %1152
    %v1156 = vsel %vm907, %v1144, 0
    %v1159 = vsel %vm907, %v1145, 0
    %v1162 = vsel %vm907, %v1146, 0
    %v1165 = vsel %vm907, %v1147, 0
    %v1168 = vsel %vm907, %v1148, 0
    %v1171 = vsel %vm907, %v1149, 0
    %v1174 = vsel %vm907, %v1150, 0
    %v1177 = vsel %vm907, %v1151, 0
    %1179 = vmatpush.bf16.msra.mxu0 0
    %1180 = vmatpush.bf16.msra.mxu0 0
    %1181 = vmatpush.bf16.msra.mxu0 0
    %1182 = vmatpush.bf16.msra.mxu0 0
    %1183 = vmatpush.bf16.msra.mxu0 0
    %1184 = vmatpush.bf16.msra.mxu0 0
    %1185 = vmatpush.bf16.msra.mxu0 0
    %1186 = vmatpush.bf16.msra.mxu0 %v1153
    %1187 = vmatmul.bf16.gmra.mxu0 %v1156
    %v1188 = vpop.f32.mrf.mxu0
    %v1189 = vadd.f32 0.0, %v1188
    %v1190 = vpop.f32.mrf.mxu0
    %v1191 = vadd.f32 0.0, %v1190
    %1192 = vmatmul.bf16.gmra.mxu0 %v1159
    %v1193 = vpop.f32.mrf.mxu0
    %v1194 = vadd.f32 0.0, %v1193
    %v1195 = vpop.f32.mrf.mxu0
    %v1196 = vadd.f32 0.0, %v1195
    %1197 = vmatmul.bf16.gmra.mxu0 %v1162
    %v1198 = vpop.f32.mrf.mxu0
    %v1199 = vadd.f32 0.0, %v1198
    %v1200 = vpop.f32.mrf.mxu0
    %v1201 = vadd.f32 0.0, %v1200
    %1202 = vmatmul.bf16.gmra.mxu0 %v1165
    %v1203 = vpop.f32.mrf.mxu0
    %v1204 = vadd.f32 0.0, %v1203
    %v1205 = vpop.f32.mrf.mxu0
    %v1206 = vadd.f32 0.0, %v1205
    %1207 = vmatmul.bf16.gmra.mxu0 %v1168
    %v1208 = vpop.f32.mrf.mxu0
    %v1209 = vadd.f32 0.0, %v1208
    %v1210 = vpop.f32.mrf.mxu0
    %v1211 = vadd.f32 0.0, %v1210
    %1212 = vmatmul.bf16.gmra.mxu0 %v1171
    %v1213 = vpop.f32.mrf.mxu0
    %v1214 = vadd.f32 0.0, %v1213
    %v1215 = vpop.f32.mrf.mxu0
    %v1216 = vadd.f32 0.0, %v1215
    %1217 = vmatmul.bf16.gmra.mxu0 %v1174
    %v1218 = vpop.f32.mrf.mxu0
    %v1219 = vadd.f32 0.0, %v1218
    %v1220 = vpop.f32.mrf.mxu0
    %v1221 = vadd.f32 0.0, %v1220
    %1222 = vmatmul.bf16.gmra.mxu0 %v1177
    %v1223 = vpop.f32.mrf.mxu0
    %v1224 = vadd.f32 0.0, %v1223
    %v1225 = vpop.f32.mrf.mxu0
    %v1226 = vadd.f32 0.0, %v1225
    %1227 = vdwg.mxu0
    %v1228 = vadd.f32 %v1056, %v1189
    %v1229 = vadd.f32 %v1058, %v1191
    %v1230 = vadd.f32 %v1061, %v1194
    %v1231 = vadd.f32 %v1063, %v1196
    %v1232 = vadd.f32 %v1066, %v1199
    %v1233 = vadd.f32 %v1068, %v1201
    %v1234 = vadd.f32 %v1071, %v1204
    %v1235 = vadd.f32 %v1073, %v1206
    %v1236 = vadd.f32 %v1076, %v1209
    %v1237 = vadd.f32 %v1078, %v1211
    %v1238 = vadd.f32 %v1081, %v1214
    %v1239 = vadd.f32 %v1083, %v1216
    %v1240 = vadd.f32 %v1086, %v1219
    %v1241 = vadd.f32 %v1088, %v1221
    %v1242 = vadd.f32 %v1091, %v1224
    %v1243 = vadd.f32 %v1093, %v1226
    %s1244 = scalar_lea.vmem %s5, 192
    %v1245 = vld [vmem:[%s1244] sm:$0xf]
    %v1246 = vld [vmem:[%s1244 + $0x4] sm:$0xf]
    %v1247 = vld [vmem:[%s1244 + $0x8] sm:$0xf]
    %v1248 = vld [vmem:[%s1244 + $0xc] sm:$0xf]
    %v1249 = vld [vmem:[%s1244 + $0x10] sm:$0xf]
    %v1250 = vld [vmem:[%s1244 + $0x14] sm:$0xf]
    %v1251 = vld [vmem:[%s1244 + $0x18] sm:$0xf]
    %v1252 = vld [vmem:[%s1244 + $0x1c] sm:$0xf]
    %v1253 = vld [vmem:[%s1244 + $0x20] sm:$0xf]
    %v1254 = vld [vmem:[%s1244 + $0x24] sm:$0xf]
    %v1255 = vld [vmem:[%s1244 + $0x28] sm:$0xf]
    %v1256 = vld [vmem:[%s1244 + $0x2c] sm:$0xf]
    %v1257 = vld [vmem:[%s1244 + $0x30] sm:$0xf]
    %v1258 = vld [vmem:[%s1244 + $0x34] sm:$0xf]
    %v1259 = vld [vmem:[%s1244 + $0x38] sm:$0xf]
    %v1260 = vld [vmem:[%s1244 + $0x3c] sm:$0xf]
    %v1277 = vunpack.c.l.b16 %v1245
    %v1278 = vunpack.c.l.b16 %v1246
    %v1279 = vunpack.c.l.b16 %v1247
    %v1280 = vunpack.c.l.b16 %v1248
    %v1281 = vunpack.c.l.b16 %v1249
    %v1282 = vunpack.c.l.b16 %v1250
    %v1283 = vunpack.c.l.b16 %v1251
    %v1284 = vunpack.c.l.b16 %v1252
    %v1285 = vunpack.c.l.b16 %v1253
    %v1286 = vunpack.c.l.b16 %v1254
    %v1287 = vunpack.c.l.b16 %v1255
    %v1288 = vunpack.c.l.b16 %v1256
    %v1289 = vunpack.c.l.b16 %v1257
    %v1290 = vunpack.c.l.b16 %v1258
    %v1291 = vunpack.c.l.b16 %v1259
    %v1292 = vunpack.c.l.b16 %v1260
    %v1293 = vpack.c.b16 %v1278, %v1277
    %v1294 = vpack.c.b16 %v1280, %v1279
    %v1295 = vpack.c.b16 %v1282, %v1281
    %v1296 = vpack.c.b16 %v1284, %v1283
    %v1297 = vpack.c.b16 %v1286, %v1285
    %v1298 = vpack.c.b16 %v1288, %v1287
    %v1299 = vpack.c.b16 %v1290, %v1289
    %v1300 = vpack.c.b16 %v1292, %v1291
    %1301 = vrot.lane.b32.xlu0 %v903, 116
    %v1302 = vpop.permute.xlu0 %1301
    %v1305 = vsel %vm907, %v1293, 0
    %v1308 = vsel %vm907, %v1294, 0
    %v1311 = vsel %vm907, %v1295, 0
    %v1314 = vsel %vm907, %v1296, 0
    %v1317 = vsel %vm907, %v1297, 0
    %v1320 = vsel %vm907, %v1298, 0
    %v1323 = vsel %vm907, %v1299, 0
    %v1326 = vsel %vm907, %v1300, 0
    %1328 = vmatpush.bf16.msra.mxu0 0
    %1329 = vmatpush.bf16.msra.mxu0 0
    %1330 = vmatpush.bf16.msra.mxu0 0
    %1331 = vmatpush.bf16.msra.mxu0 0
    %1332 = vmatpush.bf16.msra.mxu0 0
    %1333 = vmatpush.bf16.msra.mxu0 0
    %1334 = vmatpush.bf16.msra.mxu0 0
    %1335 = vmatpush.bf16.msra.mxu0 %v1302
    %1336 = vmatmul.bf16.gmra.mxu0 %v1305
    %v1337 = vpop.f32.mrf.mxu0
    %v1338 = vadd.f32 0.0, %v1337
    %v1339 = vpop.f32.mrf.mxu0
    %v1340 = vadd.f32 0.0, %v1339
    %1341 = vmatmul.bf16.gmra.mxu0 %v1308
    %v1342 = vpop.f32.mrf.mxu0
    %v1343 = vadd.f32 0.0, %v1342
    %v1344 = vpop.f32.mrf.mxu0
    %v1345 = vadd.f32 0.0, %v1344
    %1346 = vmatmul.bf16.gmra.mxu0 %v1311
    %v1347 = vpop.f32.mrf.mxu0
    %v1348 = vadd.f32 0.0, %v1347
    %v1349 = vpop.f32.mrf.mxu0
    %v1350 = vadd.f32 0.0, %v1349
    %1351 = vmatmul.bf16.gmra.mxu0 %v1314
    %v1352 = vpop.f32.mrf.mxu0
    %v1353 = vadd.f32 0.0, %v1352
    %v1354 = vpop.f32.mrf.mxu0
    %v1355 = vadd.f32 0.0, %v1354
    %1356 = vmatmul.bf16.gmra.mxu0 %v1317
    %v1357 = vpop.f32.mrf.mxu0
    %v1358 = vadd.f32 0.0, %v1357
    %v1359 = vpop.f32.mrf.mxu0
    %v1360 = vadd.f32 0.0, %v1359
    %1361 = vmatmul.bf16.gmra.mxu0 %v1320
    %v1362 = vpop.f32.mrf.mxu0
    %v1363 = vadd.f32 0.0, %v1362
    %v1364 = vpop.f32.mrf.mxu0
    %v1365 = vadd.f32 0.0, %v1364
    %1366 = vmatmul.bf16.gmra.mxu0 %v1323
    %v1367 = vpop.f32.mrf.mxu0
    %v1368 = vadd.f32 0.0, %v1367
    %v1369 = vpop.f32.mrf.mxu0
    %v1370 = vadd.f32 0.0, %v1369
    %1371 = vmatmul.bf16.gmra.mxu0 %v1326
    %v1372 = vpop.f32.mrf.mxu0
    %v1373 = vadd.f32 0.0, %v1372
    %v1374 = vpop.f32.mrf.mxu0
    %v1375 = vadd.f32 0.0, %v1374
    %1376 = vdwg.mxu0
    %v1377 = vadd.f32 %v1228, %v1338
    %v1378 = vadd.f32 %v1229, %v1340
    %v1379 = vadd.f32 %v1230, %v1343
    %v1380 = vadd.f32 %v1231, %v1345
    %v1381 = vadd.f32 %v1232, %v1348
    %v1382 = vadd.f32 %v1233, %v1350
    %v1383 = vadd.f32 %v1234, %v1353
    %v1384 = vadd.f32 %v1235, %v1355
    %v1385 = vadd.f32 %v1236, %v1358
    %v1386 = vadd.f32 %v1237, %v1360
    %v1387 = vadd.f32 %v1238, %v1363
    %v1388 = vadd.f32 %v1239, %v1365
    %v1389 = vadd.f32 %v1240, %v1368
    %v1390 = vadd.f32 %v1241, %v1370
    %v1391 = vadd.f32 %v1242, %v1373
    %v1392 = vadd.f32 %v1243, %v1375
    %s1393 = scalar_lea.vmem %s5, 256
    %v1394 = vld [vmem:[%s1393] sm:$0xf]
    %v1395 = vld [vmem:[%s1393 + $0x4] sm:$0xf]
    %v1396 = vld [vmem:[%s1393 + $0x8] sm:$0xf]
    %v1397 = vld [vmem:[%s1393 + $0xc] sm:$0xf]
    %v1398 = vld [vmem:[%s1393 + $0x10] sm:$0xf]
    %v1399 = vld [vmem:[%s1393 + $0x14] sm:$0xf]
    %v1400 = vld [vmem:[%s1393 + $0x18] sm:$0xf]
    %v1401 = vld [vmem:[%s1393 + $0x1c] sm:$0xf]
    %v1402 = vld [vmem:[%s1393 + $0x20] sm:$0xf]
    %v1403 = vld [vmem:[%s1393 + $0x24] sm:$0xf]
    %v1404 = vld [vmem:[%s1393 + $0x28] sm:$0xf]
    %v1405 = vld [vmem:[%s1393 + $0x2c] sm:$0xf]
    %v1406 = vld [vmem:[%s1393 + $0x30] sm:$0xf]
    %v1407 = vld [vmem:[%s1393 + $0x34] sm:$0xf]
    %v1408 = vld [vmem:[%s1393 + $0x38] sm:$0xf]
    %v1409 = vld [vmem:[%s1393 + $0x3c] sm:$0xf]
    %v1426 = vunpack.c.l.b16 %v1394
    %v1427 = vunpack.c.l.b16 %v1395
    %v1428 = vunpack.c.l.b16 %v1396
    %v1429 = vunpack.c.l.b16 %v1397
    %v1430 = vunpack.c.l.b16 %v1398
    %v1431 = vunpack.c.l.b16 %v1399
    %v1432 = vunpack.c.l.b16 %v1400
    %v1433 = vunpack.c.l.b16 %v1401
    %v1434 = vunpack.c.l.b16 %v1402
    %v1435 = vunpack.c.l.b16 %v1403
    %v1436 = vunpack.c.l.b16 %v1404
    %v1437 = vunpack.c.l.b16 %v1405
    %v1438 = vunpack.c.l.b16 %v1406
    %v1439 = vunpack.c.l.b16 %v1407
    %v1440 = vunpack.c.l.b16 %v1408
    %v1441 = vunpack.c.l.b16 %v1409
    %v1442 = vpack.c.b16 %v1427, %v1426
    %v1443 = vpack.c.b16 %v1429, %v1428
    %v1444 = vpack.c.b16 %v1431, %v1430
    %v1445 = vpack.c.b16 %v1433, %v1432
    %v1446 = vpack.c.b16 %v1435, %v1434
    %v1447 = vpack.c.b16 %v1437, %v1436
    %v1448 = vpack.c.b16 %v1439, %v1438
    %v1449 = vpack.c.b16 %v1441, %v1440
    %1450 = vrot.lane.b32.xlu0 %v903, 96
    %v1451 = vpop.permute.xlu0 %1450
    %v1454 = vsel %vm907, %v1442, 0
    %v1457 = vsel %vm907, %v1443, 0
    %v1460 = vsel %vm907, %v1444, 0
    %v1463 = vsel %vm907, %v1445, 0
    %v1466 = vsel %vm907, %v1446, 0
    %v1469 = vsel %vm907, %v1447, 0
    %v1472 = vsel %vm907, %v1448, 0
    %v1475 = vsel %vm907, %v1449, 0
    %1477 = vmatpush.bf16.msra.mxu0 0
    %1478 = vmatpush.bf16.msra.mxu0 0
    %1479 = vmatpush.bf16.msra.mxu0 0
    %1480 = vmatpush.bf16.msra.mxu0 0
    %1481 = vmatpush.bf16.msra.mxu0 0
    %1482 = vmatpush.bf16.msra.mxu0 0
    %1483 = vmatpush.bf16.msra.mxu0 0
    %1484 = vmatpush.bf16.msra.mxu0 %v1451
    %1485 = vmatmul.bf16.gmra.mxu0 %v1454
    %v1486 = vpop.f32.mrf.mxu0
    %v1487 = vadd.f32 0.0, %v1486
    %v1488 = vpop.f32.mrf.mxu0
    %v1489 = vadd.f32 0.0, %v1488
    %1490 = vmatmul.bf16.gmra.mxu0 %v1457
    %v1491 = vpop.f32.mrf.mxu0
    %v1492 = vadd.f32 0.0, %v1491
    %v1493 = vpop.f32.mrf.mxu0
    %v1494 = vadd.f32 0.0, %v1493
    %1495 = vmatmul.bf16.gmra.mxu0 %v1460
    %v1496 = vpop.f32.mrf.mxu0
    %v1497 = vadd.f32 0.0, %v1496
    %v1498 = vpop.f32.mrf.mxu0
    %v1499 = vadd.f32 0.0, %v1498
    %1500 = vmatmul.bf16.gmra.mxu0 %v1463
    %v1501 = vpop.f32.mrf.mxu0
    %v1502 = vadd.f32 0.0, %v1501
    %v1503 = vpop.f32.mrf.mxu0
    %v1504 = vadd.f32 0.0, %v1503
    %1505 = vmatmul.bf16.gmra.mxu0 %v1466
    %v1506 = vpop.f32.mrf.mxu0
    %v1507 = vadd.f32 0.0, %v1506
    %v1508 = vpop.f32.mrf.mxu0
    %v1509 = vadd.f32 0.0, %v1508
    %1510 = vmatmul.bf16.gmra.mxu0 %v1469
    %v1511 = vpop.f32.mrf.mxu0
    %v1512 = vadd.f32 0.0, %v1511
    %v1513 = vpop.f32.mrf.mxu0
    %v1514 = vadd.f32 0.0, %v1513
    %1515 = vmatmul.bf16.gmra.mxu0 %v1472
    %v1516 = vpop.f32.mrf.mxu0
    %v1517 = vadd.f32 0.0, %v1516
    %v1518 = vpop.f32.mrf.mxu0
    %v1519 = vadd.f32 0.0, %v1518
    %1520 = vmatmul.bf16.gmra.mxu0 %v1475
    %v1521 = vpop.f32.mrf.mxu0
    %v1522 = vadd.f32 0.0, %v1521
    %v1523 = vpop.f32.mrf.mxu0
    %v1524 = vadd.f32 0.0, %v1523
    %1525 = vdwg.mxu0
    %v1526 = vadd.f32 %v1377, %v1487
    %v1527 = vadd.f32 %v1378, %v1489
    %v1528 = vadd.f32 %v1379, %v1492
    %v1529 = vadd.f32 %v1380, %v1494
    %v1530 = vadd.f32 %v1381, %v1497
    %v1531 = vadd.f32 %v1382, %v1499
    %v1532 = vadd.f32 %v1383, %v1502
    %v1533 = vadd.f32 %v1384, %v1504
    %v1534 = vadd.f32 %v1385, %v1507
    %v1535 = vadd.f32 %v1386, %v1509
    %v1536 = vadd.f32 %v1387, %v1512
    %v1537 = vadd.f32 %v1388, %v1514
    %v1538 = vadd.f32 %v1389, %v1517
    %v1539 = vadd.f32 %v1390, %v1519
    %v1540 = vadd.f32 %v1391, %v1522
    %v1541 = vadd.f32 %v1392, %v1524
    %s1542 = scalar_lea.vmem %s5, 320
    %v1543 = vld [vmem:[%s1542] sm:$0xf]
    %v1544 = vld [vmem:[%s1542 + $0x4] sm:$0xf]
    %v1545 = vld [vmem:[%s1542 + $0x8] sm:$0xf]
    %v1546 = vld [vmem:[%s1542 + $0xc] sm:$0xf]
    %v1547 = vld [vmem:[%s1542 + $0x10] sm:$0xf]
    %v1548 = vld [vmem:[%s1542 + $0x14] sm:$0xf]
    %v1549 = vld [vmem:[%s1542 + $0x18] sm:$0xf]
    %v1550 = vld [vmem:[%s1542 + $0x1c] sm:$0xf]
    %v1551 = vld [vmem:[%s1542 + $0x20] sm:$0xf]
    %v1552 = vld [vmem:[%s1542 + $0x24] sm:$0xf]
    %v1553 = vld [vmem:[%s1542 + $0x28] sm:$0xf]
    %v1554 = vld [vmem:[%s1542 + $0x2c] sm:$0xf]
    %v1555 = vld [vmem:[%s1542 + $0x30] sm:$0xf]
    %v1556 = vld [vmem:[%s1542 + $0x34] sm:$0xf]
    %v1557 = vld [vmem:[%s1542 + $0x38] sm:$0xf]
    %v1558 = vld [vmem:[%s1542 + $0x3c] sm:$0xf]
    %v1575 = vunpack.c.l.b16 %v1543
    %v1576 = vunpack.c.l.b16 %v1544
    %v1577 = vunpack.c.l.b16 %v1545
    %v1578 = vunpack.c.l.b16 %v1546
    %v1579 = vunpack.c.l.b16 %v1547
    %v1580 = vunpack.c.l.b16 %v1548
    %v1581 = vunpack.c.l.b16 %v1549
    %v1582 = vunpack.c.l.b16 %v1550
    %v1583 = vunpack.c.l.b16 %v1551
    %v1584 = vunpack.c.l.b16 %v1552
    %v1585 = vunpack.c.l.b16 %v1553
    %v1586 = vunpack.c.l.b16 %v1554
    %v1587 = vunpack.c.l.b16 %v1555
    %v1588 = vunpack.c.l.b16 %v1556
    %v1589 = vunpack.c.l.b16 %v1557
    %v1590 = vunpack.c.l.b16 %v1558
    %v1591 = vpack.c.b16 %v1576, %v1575
    %v1592 = vpack.c.b16 %v1578, %v1577
    %v1593 = vpack.c.b16 %v1580, %v1579
    %v1594 = vpack.c.b16 %v1582, %v1581
    %v1595 = vpack.c.b16 %v1584, %v1583
    %v1596 = vpack.c.b16 %v1586, %v1585
    %v1597 = vpack.c.b16 %v1588, %v1587
    %v1598 = vpack.c.b16 %v1590, %v1589
    %1599 = vrot.lane.b32.xlu0 %v903, 92
    %v1600 = vpop.permute.xlu0 %1599
    %v1603 = vsel %vm907, %v1591, 0
    %v1606 = vsel %vm907, %v1592, 0
    %v1609 = vsel %vm907, %v1593, 0
    %v1612 = vsel %vm907, %v1594, 0
    %v1615 = vsel %vm907, %v1595, 0
    %v1618 = vsel %vm907, %v1596, 0
    %v1621 = vsel %vm907, %v1597, 0
    %v1624 = vsel %vm907, %v1598, 0
    %1626 = vmatpush.bf16.msra.mxu0 0
    %1627 = vmatpush.bf16.msra.mxu0 0
    %1628 = vmatpush.bf16.msra.mxu0 0
    %1629 = vmatpush.bf16.msra.mxu0 0
    %1630 = vmatpush.bf16.msra.mxu0 0
    %1631 = vmatpush.bf16.msra.mxu0 0
    %1632 = vmatpush.bf16.msra.mxu0 0
    %1633 = vmatpush.bf16.msra.mxu0 %v1600
    %1634 = vmatmul.bf16.gmra.mxu0 %v1603
    %v1635 = vpop.f32.mrf.mxu0
    %v1636 = vadd.f32 0.0, %v1635
    %v1637 = vpop.f32.mrf.mxu0
    %v1638 = vadd.f32 0.0, %v1637
    %1639 = vmatmul.bf16.gmra.mxu0 %v1606
    %v1640 = vpop.f32.mrf.mxu0
    %v1641 = vadd.f32 0.0, %v1640
    %v1642 = vpop.f32.mrf.mxu0
    %v1643 = vadd.f32 0.0, %v1642
    %1644 = vmatmul.bf16.gmra.mxu0 %v1609
    %v1645 = vpop.f32.mrf.mxu0
    %v1646 = vadd.f32 0.0, %v1645
    %v1647 = vpop.f32.mrf.mxu0
    %v1648 = vadd.f32 0.0, %v1647
    %1649 = vmatmul.bf16.gmra.mxu0 %v1612
    %v1650 = vpop.f32.mrf.mxu0
    %v1651 = vadd.f32 0.0, %v1650
    %v1652 = vpop.f32.mrf.mxu0
    %v1653 = vadd.f32 0.0, %v1652
    %1654 = vmatmul.bf16.gmra.mxu0 %v1615
    %v1655 = vpop.f32.mrf.mxu0
    %v1656 = vadd.f32 0.0, %v1655
    %v1657 = vpop.f32.mrf.mxu0
    %v1658 = vadd.f32 0.0, %v1657
    %1659 = vmatmul.bf16.gmra.mxu0 %v1618
    %v1660 = vpop.f32.mrf.mxu0
    %v1661 = vadd.f32 0.0, %v1660
    %v1662 = vpop.f32.mrf.mxu0
    %v1663 = vadd.f32 0.0, %v1662
    %1664 = vmatmul.bf16.gmra.mxu0 %v1621
    %v1665 = vpop.f32.mrf.mxu0
    %v1666 = vadd.f32 0.0, %v1665
    %v1667 = vpop.f32.mrf.mxu0
    %v1668 = vadd.f32 0.0, %v1667
    %1669 = vmatmul.bf16.gmra.mxu0 %v1624
    %v1670 = vpop.f32.mrf.mxu0
    %v1671 = vadd.f32 0.0, %v1670
    %v1672 = vpop.f32.mrf.mxu0
    %v1673 = vadd.f32 0.0, %v1672
    %1674 = vdwg.mxu0
    %v1675 = vadd.f32 %v1526, %v1636
    %v1676 = vadd.f32 %v1527, %v1638
    %v1677 = vadd.f32 %v1528, %v1641
    %v1678 = vadd.f32 %v1529, %v1643
    %v1679 = vadd.f32 %v1530, %v1646
    %v1680 = vadd.f32 %v1531, %v1648
    %v1681 = vadd.f32 %v1532, %v1651
    %v1682 = vadd.f32 %v1533, %v1653
    %v1683 = vadd.f32 %v1534, %v1656
    %v1684 = vadd.f32 %v1535, %v1658
    %v1685 = vadd.f32 %v1536, %v1661
    %v1686 = vadd.f32 %v1537, %v1663
    %v1687 = vadd.f32 %v1538, %v1666
    %v1688 = vadd.f32 %v1539, %v1668
    %v1689 = vadd.f32 %v1540, %v1671
    %v1690 = vadd.f32 %v1541, %v1673
    %s1691 = scalar_lea.vmem %s5, 384
    %v1692 = vld [vmem:[%s1691] sm:$0xf]
    %v1693 = vld [vmem:[%s1691 + $0x4] sm:$0xf]
    %v1694 = vld [vmem:[%s1691 + $0x8] sm:$0xf]
    %v1695 = vld [vmem:[%s1691 + $0xc] sm:$0xf]
    %v1696 = vld [vmem:[%s1691 + $0x10] sm:$0xf]
    %v1697 = vld [vmem:[%s1691 + $0x14] sm:$0xf]
    %v1698 = vld [vmem:[%s1691 + $0x18] sm:$0xf]
    %v1699 = vld [vmem:[%s1691 + $0x1c] sm:$0xf]
    %v1700 = vld [vmem:[%s1691 + $0x20] sm:$0xf]
    %v1701 = vld [vmem:[%s1691 + $0x24] sm:$0xf]
    %v1702 = vld [vmem:[%s1691 + $0x28] sm:$0xf]
    %v1703 = vld [vmem:[%s1691 + $0x2c] sm:$0xf]
    %v1704 = vld [vmem:[%s1691 + $0x30] sm:$0xf]
    %v1705 = vld [vmem:[%s1691 + $0x34] sm:$0xf]
    %v1706 = vld [vmem:[%s1691 + $0x38] sm:$0xf]
    %v1707 = vld [vmem:[%s1691 + $0x3c] sm:$0xf]
    %v1724 = vunpack.c.l.b16 %v1692
    %v1725 = vunpack.c.l.b16 %v1693
    %v1726 = vunpack.c.l.b16 %v1694
    %v1727 = vunpack.c.l.b16 %v1695
    %v1728 = vunpack.c.l.b16 %v1696
    %v1729 = vunpack.c.l.b16 %v1697
    %v1730 = vunpack.c.l.b16 %v1698
    %v1731 = vunpack.c.l.b16 %v1699
    %v1732 = vunpack.c.l.b16 %v1700
    %v1733 = vunpack.c.l.b16 %v1701
    %v1734 = vunpack.c.l.b16 %v1702
    %v1735 = vunpack.c.l.b16 %v1703
    %v1736 = vunpack.c.l.b16 %v1704
    %v1737 = vunpack.c.l.b16 %v1705
    %v1738 = vunpack.c.l.b16 %v1706
    %v1739 = vunpack.c.l.b16 %v1707
    %v1740 = vpack.c.b16 %v1725, %v1724
    %v1741 = vpack.c.b16 %v1727, %v1726
    %v1742 = vpack.c.b16 %v1729, %v1728
    %v1743 = vpack.c.b16 %v1731, %v1730
    %v1744 = vpack.c.b16 %v1733, %v1732
    %v1745 = vpack.c.b16 %v1735, %v1734
    %v1746 = vpack.c.b16 %v1737, %v1736
    %v1747 = vpack.c.b16 %v1739, %v1738
    %1748 = vrot.lane.b32.xlu0 %v903, 88
    %v1749 = vpop.permute.xlu0 %1748
    %v1752 = vsel %vm907, %v1740, 0
    %v1755 = vsel %vm907, %v1741, 0
    %v1758 = vsel %vm907, %v1742, 0
    %v1761 = vsel %vm907, %v1743, 0
    %v1764 = vsel %vm907, %v1744, 0
    %v1767 = vsel %vm907, %v1745, 0
    %v1770 = vsel %vm907, %v1746, 0
    %v1773 = vsel %vm907, %v1747, 0
    %1775 = vmatpush.bf16.msra.mxu0 0
    %1776 = vmatpush.bf16.msra.mxu0 0
    %1777 = vmatpush.bf16.msra.mxu0 0
    %1778 = vmatpush.bf16.msra.mxu0 0
    %1779 = vmatpush.bf16.msra.mxu0 0
    %1780 = vmatpush.bf16.msra.mxu0 0
    %1781 = vmatpush.bf16.msra.mxu0 0
    %1782 = vmatpush.bf16.msra.mxu0 %v1749
    %1783 = vmatmul.bf16.gmra.mxu0 %v1752
    %v1784 = vpop.f32.mrf.mxu0
    %v1785 = vadd.f32 0.0, %v1784
    %v1786 = vpop.f32.mrf.mxu0
    %v1787 = vadd.f32 0.0, %v1786
    %1788 = vmatmul.bf16.gmra.mxu0 %v1755
    %v1789 = vpop.f32.mrf.mxu0
    %v1790 = vadd.f32 0.0, %v1789
    %v1791 = vpop.f32.mrf.mxu0
    %v1792 = vadd.f32 0.0, %v1791
    %1793 = vmatmul.bf16.gmra.mxu0 %v1758
    %v1794 = vpop.f32.mrf.mxu0
    %v1795 = vadd.f32 0.0, %v1794
    %v1796 = vpop.f32.mrf.mxu0
    %v1797 = vadd.f32 0.0, %v1796
    %1798 = vmatmul.bf16.gmra.mxu0 %v1761
    %v1799 = vpop.f32.mrf.mxu0
    %v1800 = vadd.f32 0.0, %v1799
    %v1801 = vpop.f32.mrf.mxu0
    %v1802 = vadd.f32 0.0, %v1801
    %1803 = vmatmul.bf16.gmra.mxu0 %v1764
    %v1804 = vpop.f32.mrf.mxu0
    %v1805 = vadd.f32 0.0, %v1804
    %v1806 = vpop.f32.mrf.mxu0
    %v1807 = vadd.f32 0.0, %v1806
    %1808 = vmatmul.bf16.gmra.mxu0 %v1767
    %v1809 = vpop.f32.mrf.mxu0
    %v1810 = vadd.f32 0.0, %v1809
    %v1811 = vpop.f32.mrf.mxu0
    %v1812 = vadd.f32 0.0, %v1811
    %1813 = vmatmul.bf16.gmra.mxu0 %v1770
    %v1814 = vpop.f32.mrf.mxu0
    %v1815 = vadd.f32 0.0, %v1814
    %v1816 = vpop.f32.mrf.mxu0
    %v1817 = vadd.f32 0.0, %v1816
    %1818 = vmatmul.bf16.gmra.mxu0 %v1773
    %v1819 = vpop.f32.mrf.mxu0
    %v1820 = vadd.f32 0.0, %v1819
    %v1821 = vpop.f32.mrf.mxu0
    %v1822 = vadd.f32 0.0, %v1821
    %1823 = vdwg.mxu0
    %v1824 = vadd.f32 %v1675, %v1785
    %v1825 = vadd.f32 %v1676, %v1787
    %v1826 = vadd.f32 %v1677, %v1790
    %v1827 = vadd.f32 %v1678, %v1792
    %v1828 = vadd.f32 %v1679, %v1795
    %v1829 = vadd.f32 %v1680, %v1797
    %v1830 = vadd.f32 %v1681, %v1800
    %v1831 = vadd.f32 %v1682, %v1802
    %v1832 = vadd.f32 %v1683, %v1805
    %v1833 = vadd.f32 %v1684, %v1807
    %v1834 = vadd.f32 %v1685, %v1810
    %v1835 = vadd.f32 %v1686, %v1812
    %v1836 = vadd.f32 %v1687, %v1815
    %v1837 = vadd.f32 %v1688, %v1817
    %v1838 = vadd.f32 %v1689, %v1820
    %v1839 = vadd.f32 %v1690, %v1822
    %s1840 = scalar_lea.vmem %s5, 448
    %v1841 = vld [vmem:[%s1840] sm:$0xf]
    %v1842 = vld [vmem:[%s1840 + $0x4] sm:$0xf]
    %v1843 = vld [vmem:[%s1840 + $0x8] sm:$0xf]
    %v1844 = vld [vmem:[%s1840 + $0xc] sm:$0xf]
    %v1845 = vld [vmem:[%s1840 + $0x10] sm:$0xf]
    %v1846 = vld [vmem:[%s1840 + $0x14] sm:$0xf]
    %v1847 = vld [vmem:[%s1840 + $0x18] sm:$0xf]
    %v1848 = vld [vmem:[%s1840 + $0x1c] sm:$0xf]
    %v1849 = vld [vmem:[%s1840 + $0x20] sm:$0xf]
    %v1850 = vld [vmem:[%s1840 + $0x24] sm:$0xf]
    %v1851 = vld [vmem:[%s1840 + $0x28] sm:$0xf]
    %v1852 = vld [vmem:[%s1840 + $0x2c] sm:$0xf]
    %v1853 = vld [vmem:[%s1840 + $0x30] sm:$0xf]
    %v1854 = vld [vmem:[%s1840 + $0x34] sm:$0xf]
    %v1855 = vld [vmem:[%s1840 + $0x38] sm:$0xf]
    %v1856 = vld [vmem:[%s1840 + $0x3c] sm:$0xf]
    %v1873 = vunpack.c.l.b16 %v1841
    %v1874 = vunpack.c.l.b16 %v1842
    %v1875 = vunpack.c.l.b16 %v1843
    %v1876 = vunpack.c.l.b16 %v1844
    %v1877 = vunpack.c.l.b16 %v1845
    %v1878 = vunpack.c.l.b16 %v1846
    %v1879 = vunpack.c.l.b16 %v1847
    %v1880 = vunpack.c.l.b16 %v1848
    %v1881 = vunpack.c.l.b16 %v1849
    %v1882 = vunpack.c.l.b16 %v1850
    %v1883 = vunpack.c.l.b16 %v1851
    %v1884 = vunpack.c.l.b16 %v1852
    %v1885 = vunpack.c.l.b16 %v1853
    %v1886 = vunpack.c.l.b16 %v1854
    %v1887 = vunpack.c.l.b16 %v1855
    %v1888 = vunpack.c.l.b16 %v1856
    %v1889 = vpack.c.b16 %v1874, %v1873
    %v1890 = vpack.c.b16 %v1876, %v1875
    %v1891 = vpack.c.b16 %v1878, %v1877
    %v1892 = vpack.c.b16 %v1880, %v1879
    %v1893 = vpack.c.b16 %v1882, %v1881
    %v1894 = vpack.c.b16 %v1884, %v1883
    %v1895 = vpack.c.b16 %v1886, %v1885
    %v1896 = vpack.c.b16 %v1888, %v1887
    %1897 = vrot.lane.b32.xlu0 %v903, 84
    %v1898 = vpop.permute.xlu0 %1897
    %v1901 = vsel %vm907, %v1889, 0
    %v1904 = vsel %vm907, %v1890, 0
    %v1907 = vsel %vm907, %v1891, 0
    %v1910 = vsel %vm907, %v1892, 0
    %v1913 = vsel %vm907, %v1893, 0
    %v1916 = vsel %vm907, %v1894, 0
    %v1919 = vsel %vm907, %v1895, 0
    %v1922 = vsel %vm907, %v1896, 0
    %1924 = vmatpush.bf16.msra.mxu0 0
    %1925 = vmatpush.bf16.msra.mxu0 0
    %1926 = vmatpush.bf16.msra.mxu0 0
    %1927 = vmatpush.bf16.msra.mxu0 0
    %1928 = vmatpush.bf16.msra.mxu0 0
    %1929 = vmatpush.bf16.msra.mxu0 0
    %1930 = vmatpush.bf16.msra.mxu0 0
    %1931 = vmatpush.bf16.msra.mxu0 %v1898
    %1932 = vmatmul.bf16.gmra.mxu0 %v1901
    %v1933 = vpop.f32.mrf.mxu0
    %v1934 = vadd.f32 0.0, %v1933
    %v1935 = vpop.f32.mrf.mxu0
    %v1936 = vadd.f32 0.0, %v1935
    %1937 = vmatmul.bf16.gmra.mxu0 %v1904
    %v1938 = vpop.f32.mrf.mxu0
    %v1939 = vadd.f32 0.0, %v1938
    %v1940 = vpop.f32.mrf.mxu0
    %v1941 = vadd.f32 0.0, %v1940
    %1942 = vmatmul.bf16.gmra.mxu0 %v1907
    %v1943 = vpop.f32.mrf.mxu0
    %v1944 = vadd.f32 0.0, %v1943
    %v1945 = vpop.f32.mrf.mxu0
    %v1946 = vadd.f32 0.0, %v1945
    %1947 = vmatmul.bf16.gmra.mxu0 %v1910
    %v1948 = vpop.f32.mrf.mxu0
    %v1949 = vadd.f32 0.0, %v1948
    %v1950 = vpop.f32.mrf.mxu0
    %v1951 = vadd.f32 0.0, %v1950
    %1952 = vmatmul.bf16.gmra.mxu0 %v1913
    %v1953 = vpop.f32.mrf.mxu0
    %v1954 = vadd.f32 0.0, %v1953
    %v1955 = vpop.f32.mrf.mxu0
    %v1956 = vadd.f32 0.0, %v1955
    %1957 = vmatmul.bf16.gmra.mxu0 %v1916
    %v1958 = vpop.f32.mrf.mxu0
    %v1959 = vadd.f32 0.0, %v1958
    %v1960 = vpop.f32.mrf.mxu0
    %v1961 = vadd.f32 0.0, %v1960
    %1962 = vmatmul.bf16.gmra.mxu0 %v1919
    %v1963 = vpop.f32.mrf.mxu0
    %v1964 = vadd.f32 0.0, %v1963
    %v1965 = vpop.f32.mrf.mxu0
    %v1966 = vadd.f32 0.0, %v1965
    %1967 = vmatmul.bf16.gmra.mxu0 %v1922
    %v1968 = vpop.f32.mrf.mxu0
    %v1969 = vadd.f32 0.0, %v1968
    %v1970 = vpop.f32.mrf.mxu0
    %v1971 = vadd.f32 0.0, %v1970
    %1972 = vdwg.mxu0
    %v1973 = vadd.f32 %v1824, %v1934
    %v1974 = vadd.f32 %v1825, %v1936
    %v1975 = vadd.f32 %v1826, %v1939
    %v1976 = vadd.f32 %v1827, %v1941
    %v1977 = vadd.f32 %v1828, %v1944
    %v1978 = vadd.f32 %v1829, %v1946
    %v1979 = vadd.f32 %v1830, %v1949
    %v1980 = vadd.f32 %v1831, %v1951
    %v1981 = vadd.f32 %v1832, %v1954
    %v1982 = vadd.f32 %v1833, %v1956
    %v1983 = vadd.f32 %v1834, %v1959
    %v1984 = vadd.f32 %v1835, %v1961
    %v1985 = vadd.f32 %v1836, %v1964
    %v1986 = vadd.f32 %v1837, %v1966
    %v1987 = vadd.f32 %v1838, %v1969
    %v1988 = vadd.f32 %v1839, %v1971
    %s1989 = scalar_lea.vmem %s5, 512
    %v1990 = vld [vmem:[%s1989] sm:$0xf]
    %v1991 = vld [vmem:[%s1989 + $0x4] sm:$0xf]
    %v1992 = vld [vmem:[%s1989 + $0x8] sm:$0xf]
    %v1993 = vld [vmem:[%s1989 + $0xc] sm:$0xf]
    %v1994 = vld [vmem:[%s1989 + $0x10] sm:$0xf]
    %v1995 = vld [vmem:[%s1989 + $0x14] sm:$0xf]
    %v1996 = vld [vmem:[%s1989 + $0x18] sm:$0xf]
    %v1997 = vld [vmem:[%s1989 + $0x1c] sm:$0xf]
    %v1998 = vld [vmem:[%s1989 + $0x20] sm:$0xf]
    %v1999 = vld [vmem:[%s1989 + $0x24] sm:$0xf]
    %v2000 = vld [vmem:[%s1989 + $0x28] sm:$0xf]
    %v2001 = vld [vmem:[%s1989 + $0x2c] sm:$0xf]
    %v2002 = vld [vmem:[%s1989 + $0x30] sm:$0xf]
    %v2003 = vld [vmem:[%s1989 + $0x34] sm:$0xf]
    %v2004 = vld [vmem:[%s1989 + $0x38] sm:$0xf]
    %v2005 = vld [vmem:[%s1989 + $0x3c] sm:$0xf]
    %v2022 = vunpack.c.l.b16 %v1990
    %v2023 = vunpack.c.l.b16 %v1991
    %v2024 = vunpack.c.l.b16 %v1992
    %v2025 = vunpack.c.l.b16 %v1993
    %v2026 = vunpack.c.l.b16 %v1994
    %v2027 = vunpack.c.l.b16 %v1995
    %v2028 = vunpack.c.l.b16 %v1996
    %v2029 = vunpack.c.l.b16 %v1997
    %v2030 = vunpack.c.l.b16 %v1998
    %v2031 = vunpack.c.l.b16 %v1999
    %v2032 = vunpack.c.l.b16 %v2000
    %v2033 = vunpack.c.l.b16 %v2001
    %v2034 = vunpack.c.l.b16 %v2002
    %v2035 = vunpack.c.l.b16 %v2003
    %v2036 = vunpack.c.l.b16 %v2004
    %v2037 = vunpack.c.l.b16 %v2005
    %v2038 = vpack.c.b16 %v2023, %v2022
    %v2039 = vpack.c.b16 %v2025, %v2024
    %v2040 = vpack.c.b16 %v2027, %v2026
    %v2041 = vpack.c.b16 %v2029, %v2028
    %v2042 = vpack.c.b16 %v2031, %v2030
    %v2043 = vpack.c.b16 %v2033, %v2032
    %v2044 = vpack.c.b16 %v2035, %v2034
    %v2045 = vpack.c.b16 %v2037, %v2036
    %2046 = vrot.lane.b32.xlu0 %v903, 64
    %v2047 = vpop.permute.xlu0 %2046
    %v2050 = vsel %vm907, %v2038, 0
    %v2053 = vsel %vm907, %v2039, 0
    %v2056 = vsel %vm907, %v2040, 0
    %v2059 = vsel %vm907, %v2041, 0
    %v2062 = vsel %vm907, %v2042, 0
    %v2065 = vsel %vm907, %v2043, 0
    %v2068 = vsel %vm907, %v2044, 0
    %v2071 = vsel %vm907, %v2045, 0
    %2073 = vmatpush.bf16.msra.mxu0 0
    %2074 = vmatpush.bf16.msra.mxu0 0
    %2075 = vmatpush.bf16.msra.mxu0 0
    %2076 = vmatpush.bf16.msra.mxu0 0
    %2077 = vmatpush.bf16.msra.mxu0 0
    %2078 = vmatpush.bf16.msra.mxu0 0
    %2079 = vmatpush.bf16.msra.mxu0 0
    %2080 = vmatpush.bf16.msra.mxu0 %v2047
    %2081 = vmatmul.bf16.gmra.mxu0 %v2050
    %v2082 = vpop.f32.mrf.mxu0
    %v2083 = vadd.f32 0.0, %v2082
    %v2084 = vpop.f32.mrf.mxu0
    %v2085 = vadd.f32 0.0, %v2084
    %2086 = vmatmul.bf16.gmra.mxu0 %v2053
    %v2087 = vpop.f32.mrf.mxu0
    %v2088 = vadd.f32 0.0, %v2087
    %v2089 = vpop.f32.mrf.mxu0
    %v2090 = vadd.f32 0.0, %v2089
    %2091 = vmatmul.bf16.gmra.mxu0 %v2056
    %v2092 = vpop.f32.mrf.mxu0
    %v2093 = vadd.f32 0.0, %v2092
    %v2094 = vpop.f32.mrf.mxu0
    %v2095 = vadd.f32 0.0, %v2094
    %2096 = vmatmul.bf16.gmra.mxu0 %v2059
    %v2097 = vpop.f32.mrf.mxu0
    %v2098 = vadd.f32 0.0, %v2097
    %v2099 = vpop.f32.mrf.mxu0
    %v2100 = vadd.f32 0.0, %v2099
    %2101 = vmatmul.bf16.gmra.mxu0 %v2062
    %v2102 = vpop.f32.mrf.mxu0
    %v2103 = vadd.f32 0.0, %v2102
    %v2104 = vpop.f32.mrf.mxu0
    %v2105 = vadd.f32 0.0, %v2104
    %2106 = vmatmul.bf16.gmra.mxu0 %v2065
    %v2107 = vpop.f32.mrf.mxu0
    %v2108 = vadd.f32 0.0, %v2107
    %v2109 = vpop.f32.mrf.mxu0
    %v2110 = vadd.f32 0.0, %v2109
    %2111 = vmatmul.bf16.gmra.mxu0 %v2068
    %v2112 = vpop.f32.mrf.mxu0
    %v2113 = vadd.f32 0.0, %v2112
    %v2114 = vpop.f32.mrf.mxu0
    %v2115 = vadd.f32 0.0, %v2114
    %2116 = vmatmul.bf16.gmra.mxu0 %v2071
    %v2117 = vpop.f32.mrf.mxu0
    %v2118 = vadd.f32 0.0, %v2117
    %v2119 = vpop.f32.mrf.mxu0
    %v2120 = vadd.f32 0.0, %v2119
    %2121 = vdwg.mxu0
    %v2122 = vadd.f32 %v1973, %v2083
    %v2123 = vadd.f32 %v1974, %v2085
    %v2124 = vadd.f32 %v1975, %v2088
    %v2125 = vadd.f32 %v1976, %v2090
    %v2126 = vadd.f32 %v1977, %v2093
    %v2127 = vadd.f32 %v1978, %v2095
    %v2128 = vadd.f32 %v1979, %v2098
    %v2129 = vadd.f32 %v1980, %v2100
    %v2130 = vadd.f32 %v1981, %v2103
    %v2131 = vadd.f32 %v1982, %v2105
    %v2132 = vadd.f32 %v1983, %v2108
    %v2133 = vadd.f32 %v1984, %v2110
    %v2134 = vadd.f32 %v1985, %v2113
    %v2135 = vadd.f32 %v1986, %v2115
    %v2136 = vadd.f32 %v1987, %v2118
    %v2137 = vadd.f32 %v1988, %v2120
    %s2138 = scalar_lea.vmem %s5, 576
    %v2139 = vld [vmem:[%s2138] sm:$0xf]
    %v2140 = vld [vmem:[%s2138 + $0x4] sm:$0xf]
    %v2141 = vld [vmem:[%s2138 + $0x8] sm:$0xf]
    %v2142 = vld [vmem:[%s2138 + $0xc] sm:$0xf]
    %v2143 = vld [vmem:[%s2138 + $0x10] sm:$0xf]
    %v2144 = vld [vmem:[%s2138 + $0x14] sm:$0xf]
    %v2145 = vld [vmem:[%s2138 + $0x18] sm:$0xf]
    %v2146 = vld [vmem:[%s2138 + $0x1c] sm:$0xf]
    %v2147 = vld [vmem:[%s2138 + $0x20] sm:$0xf]
    %v2148 = vld [vmem:[%s2138 + $0x24] sm:$0xf]
    %v2149 = vld [vmem:[%s2138 + $0x28] sm:$0xf]
    %v2150 = vld [vmem:[%s2138 + $0x2c] sm:$0xf]
    %v2151 = vld [vmem:[%s2138 + $0x30] sm:$0xf]
    %v2152 = vld [vmem:[%s2138 + $0x34] sm:$0xf]
    %v2153 = vld [vmem:[%s2138 + $0x38] sm:$0xf]
    %v2154 = vld [vmem:[%s2138 + $0x3c] sm:$0xf]
    %v2171 = vunpack.c.l.b16 %v2139
    %v2172 = vunpack.c.l.b16 %v2140
    %v2173 = vunpack.c.l.b16 %v2141
    %v2174 = vunpack.c.l.b16 %v2142
    %v2175 = vunpack.c.l.b16 %v2143
    %v2176 = vunpack.c.l.b16 %v2144
    %v2177 = vunpack.c.l.b16 %v2145
    %v2178 = vunpack.c.l.b16 %v2146
    %v2179 = vunpack.c.l.b16 %v2147
    %v2180 = vunpack.c.l.b16 %v2148
    %v2181 = vunpack.c.l.b16 %v2149
    %v2182 = vunpack.c.l.b16 %v2150
    %v2183 = vunpack.c.l.b16 %v2151
    %v2184 = vunpack.c.l.b16 %v2152
    %v2185 = vunpack.c.l.b16 %v2153
    %v2186 = vunpack.c.l.b16 %v2154
    %v2187 = vpack.c.b16 %v2172, %v2171
    %v2188 = vpack.c.b16 %v2174, %v2173
    %v2189 = vpack.c.b16 %v2176, %v2175
    %v2190 = vpack.c.b16 %v2178, %v2177
    %v2191 = vpack.c.b16 %v2180, %v2179
    %v2192 = vpack.c.b16 %v2182, %v2181
    %v2193 = vpack.c.b16 %v2184, %v2183
    %v2194 = vpack.c.b16 %v2186, %v2185
    %2195 = vrot.lane.b32.xlu0 %v903, 60
    %v2196 = vpop.permute.xlu0 %2195
    %v2199 = vsel %vm907, %v2187, 0
    %v2202 = vsel %vm907, %v2188, 0
    %v2205 = vsel %vm907, %v2189, 0
    %v2208 = vsel %vm907, %v2190, 0
    %v2211 = vsel %vm907, %v2191, 0
    %v2214 = vsel %vm907, %v2192, 0
    %v2217 = vsel %vm907, %v2193, 0
    %v2220 = vsel %vm907, %v2194, 0
    %2222 = vmatpush.bf16.msra.mxu0 0
    %2223 = vmatpush.bf16.msra.mxu0 0
    %2224 = vmatpush.bf16.msra.mxu0 0
    %2225 = vmatpush.bf16.msra.mxu0 0
    %2226 = vmatpush.bf16.msra.mxu0 0
    %2227 = vmatpush.bf16.msra.mxu0 0
    %2228 = vmatpush.bf16.msra.mxu0 0
    %2229 = vmatpush.bf16.msra.mxu0 %v2196
    %2230 = vmatmul.bf16.gmra.mxu0 %v2199
    %v2231 = vpop.f32.mrf.mxu0
    %v2232 = vadd.f32 0.0, %v2231
    %v2233 = vpop.f32.mrf.mxu0
    %v2234 = vadd.f32 0.0, %v2233
    %2235 = vmatmul.bf16.gmra.mxu0 %v2202
    %v2236 = vpop.f32.mrf.mxu0
    %v2237 = vadd.f32 0.0, %v2236
    %v2238 = vpop.f32.mrf.mxu0
    %v2239 = vadd.f32 0.0, %v2238
    %2240 = vmatmul.bf16.gmra.mxu0 %v2205
    %v2241 = vpop.f32.mrf.mxu0
    %v2242 = vadd.f32 0.0, %v2241
    %v2243 = vpop.f32.mrf.mxu0
    %v2244 = vadd.f32 0.0, %v2243
    %2245 = vmatmul.bf16.gmra.mxu0 %v2208
    %v2246 = vpop.f32.mrf.mxu0
    %v2247 = vadd.f32 0.0, %v2246
    %v2248 = vpop.f32.mrf.mxu0
    %v2249 = vadd.f32 0.0, %v2248
    %2250 = vmatmul.bf16.gmra.mxu0 %v2211
    %v2251 = vpop.f32.mrf.mxu0
    %v2252 = vadd.f32 0.0, %v2251
    %v2253 = vpop.f32.mrf.mxu0
    %v2254 = vadd.f32 0.0, %v2253
    %2255 = vmatmul.bf16.gmra.mxu0 %v2214
    %v2256 = vpop.f32.mrf.mxu0
    %v2257 = vadd.f32 0.0, %v2256
    %v2258 = vpop.f32.mrf.mxu0
    %v2259 = vadd.f32 0.0, %v2258
    %2260 = vmatmul.bf16.gmra.mxu0 %v2217
    %v2261 = vpop.f32.mrf.mxu0
    %v2262 = vadd.f32 0.0, %v2261
    %v2263 = vpop.f32.mrf.mxu0
    %v2264 = vadd.f32 0.0, %v2263
    %2265 = vmatmul.bf16.gmra.mxu0 %v2220
    %v2266 = vpop.f32.mrf.mxu0
    %v2267 = vadd.f32 0.0, %v2266
    %v2268 = vpop.f32.mrf.mxu0
    %v2269 = vadd.f32 0.0, %v2268
    %2270 = vdwg.mxu0
    %v2271 = vadd.f32 %v2122, %v2232
    %v2272 = vadd.f32 %v2123, %v2234
    %v2273 = vadd.f32 %v2124, %v2237
    %v2274 = vadd.f32 %v2125, %v2239
    %v2275 = vadd.f32 %v2126, %v2242
    %v2276 = vadd.f32 %v2127, %v2244
    %v2277 = vadd.f32 %v2128, %v2247
    %v2278 = vadd.f32 %v2129, %v2249
    %v2279 = vadd.f32 %v2130, %v2252
    %v2280 = vadd.f32 %v2131, %v2254
    %v2281 = vadd.f32 %v2132, %v2257
    %v2282 = vadd.f32 %v2133, %v2259
    %v2283 = vadd.f32 %v2134, %v2262
    %v2284 = vadd.f32 %v2135, %v2264
    %v2285 = vadd.f32 %v2136, %v2267
    %v2286 = vadd.f32 %v2137, %v2269
    %s2287 = scalar_lea.vmem %s5, 640
    %v2288 = vld [vmem:[%s2287] sm:$0xf]
    %v2289 = vld [vmem:[%s2287 + $0x4] sm:$0xf]
    %v2290 = vld [vmem:[%s2287 + $0x8] sm:$0xf]
    %v2291 = vld [vmem:[%s2287 + $0xc] sm:$0xf]
    %v2292 = vld [vmem:[%s2287 + $0x10] sm:$0xf]
    %v2293 = vld [vmem:[%s2287 + $0x14] sm:$0xf]
    %v2294 = vld [vmem:[%s2287 + $0x18] sm:$0xf]
    %v2295 = vld [vmem:[%s2287 + $0x1c] sm:$0xf]
    %v2296 = vld [vmem:[%s2287 + $0x20] sm:$0xf]
    %v2297 = vld [vmem:[%s2287 + $0x24] sm:$0xf]
    %v2298 = vld [vmem:[%s2287 + $0x28] sm:$0xf]
    %v2299 = vld [vmem:[%s2287 + $0x2c] sm:$0xf]
    %v2300 = vld [vmem:[%s2287 + $0x30] sm:$0xf]
    %v2301 = vld [vmem:[%s2287 + $0x34] sm:$0xf]
    %v2302 = vld [vmem:[%s2287 + $0x38] sm:$0xf]
    %v2303 = vld [vmem:[%s2287 + $0x3c] sm:$0xf]
    %v2320 = vunpack.c.l.b16 %v2288
    %v2321 = vunpack.c.l.b16 %v2289
    %v2322 = vunpack.c.l.b16 %v2290
    %v2323 = vunpack.c.l.b16 %v2291
    %v2324 = vunpack.c.l.b16 %v2292
    %v2325 = vunpack.c.l.b16 %v2293
    %v2326 = vunpack.c.l.b16 %v2294
    %v2327 = vunpack.c.l.b16 %v2295
    %v2328 = vunpack.c.l.b16 %v2296
    %v2329 = vunpack.c.l.b16 %v2297
    %v2330 = vunpack.c.l.b16 %v2298
    %v2331 = vunpack.c.l.b16 %v2299
    %v2332 = vunpack.c.l.b16 %v2300
    %v2333 = vunpack.c.l.b16 %v2301
    %v2334 = vunpack.c.l.b16 %v2302
    %v2335 = vunpack.c.l.b16 %v2303
    %v2336 = vpack.c.b16 %v2321, %v2320
    %v2337 = vpack.c.b16 %v2323, %v2322
    %v2338 = vpack.c.b16 %v2325, %v2324
    %v2339 = vpack.c.b16 %v2327, %v2326
    %v2340 = vpack.c.b16 %v2329, %v2328
    %v2341 = vpack.c.b16 %v2331, %v2330
    %v2342 = vpack.c.b16 %v2333, %v2332
    %v2343 = vpack.c.b16 %v2335, %v2334
    %2344 = vrot.lane.b32.xlu0 %v903, 56
    %v2345 = vpop.permute.xlu0 %2344
    %v2348 = vsel %vm907, %v2336, 0
    %v2351 = vsel %vm907, %v2337, 0
    %v2354 = vsel %vm907, %v2338, 0
    %v2357 = vsel %vm907, %v2339, 0
    %v2360 = vsel %vm907, %v2340, 0
    %v2363 = vsel %vm907, %v2341, 0
    %v2366 = vsel %vm907, %v2342, 0
    %v2369 = vsel %vm907, %v2343, 0
    %2371 = vmatpush.bf16.msra.mxu0 0
    %2372 = vmatpush.bf16.msra.mxu0 0
    %2373 = vmatpush.bf16.msra.mxu0 0
    %2374 = vmatpush.bf16.msra.mxu0 0
    %2375 = vmatpush.bf16.msra.mxu0 0
    %2376 = vmatpush.bf16.msra.mxu0 0
    %2377 = vmatpush.bf16.msra.mxu0 0
    %2378 = vmatpush.bf16.msra.mxu0 %v2345
    %2379 = vmatmul.bf16.gmra.mxu0 %v2348
    %v2380 = vpop.f32.mrf.mxu0
    %v2381 = vadd.f32 0.0, %v2380
    %v2382 = vpop.f32.mrf.mxu0
    %v2383 = vadd.f32 0.0, %v2382
    %2384 = vmatmul.bf16.gmra.mxu0 %v2351
    %v2385 = vpop.f32.mrf.mxu0
    %v2386 = vadd.f32 0.0, %v2385
    %v2387 = vpop.f32.mrf.mxu0
    %v2388 = vadd.f32 0.0, %v2387
    %2389 = vmatmul.bf16.gmra.mxu0 %v2354
    %v2390 = vpop.f32.mrf.mxu0
    %v2391 = vadd.f32 0.0, %v2390
    %v2392 = vpop.f32.mrf.mxu0
    %v2393 = vadd.f32 0.0, %v2392
    %2394 = vmatmul.bf16.gmra.mxu0 %v2357
    %v2395 = vpop.f32.mrf.mxu0
    %v2396 = vadd.f32 0.0, %v2395
    %v2397 = vpop.f32.mrf.mxu0
    %v2398 = vadd.f32 0.0, %v2397
    %2399 = vmatmul.bf16.gmra.mxu0 %v2360
    %v2400 = vpop.f32.mrf.mxu0
    %v2401 = vadd.f32 0.0, %v2400
    %v2402 = vpop.f32.mrf.mxu0
    %v2403 = vadd.f32 0.0, %v2402
    %2404 = vmatmul.bf16.gmra.mxu0 %v2363
    %v2405 = vpop.f32.mrf.mxu0
    %v2406 = vadd.f32 0.0, %v2405
    %v2407 = vpop.f32.mrf.mxu0
    %v2408 = vadd.f32 0.0, %v2407
    %2409 = vmatmul.bf16.gmra.mxu0 %v2366
    %v2410 = vpop.f32.mrf.mxu0
    %v2411 = vadd.f32 0.0, %v2410
    %v2412 = vpop.f32.mrf.mxu0
    %v2413 = vadd.f32 0.0, %v2412
    %2414 = vmatmul.bf16.gmra.mxu0 %v2369
    %v2415 = vpop.f32.mrf.mxu0
    %v2416 = vadd.f32 0.0, %v2415
    %v2417 = vpop.f32.mrf.mxu0
    %v2418 = vadd.f32 0.0, %v2417
    %2419 = vdwg.mxu0
    %v2420 = vadd.f32 %v2271, %v2381
    %v2421 = vadd.f32 %v2272, %v2383
    %v2422 = vadd.f32 %v2273, %v2386
    %v2423 = vadd.f32 %v2274, %v2388
    %v2424 = vadd.f32 %v2275, %v2391
    %v2425 = vadd.f32 %v2276, %v2393
    %v2426 = vadd.f32 %v2277, %v2396
    %v2427 = vadd.f32 %v2278, %v2398
    %v2428 = vadd.f32 %v2279, %v2401
    %v2429 = vadd.f32 %v2280, %v2403
    %v2430 = vadd.f32 %v2281, %v2406
    %v2431 = vadd.f32 %v2282, %v2408
    %v2432 = vadd.f32 %v2283, %v2411
    %v2433 = vadd.f32 %v2284, %v2413
    %v2434 = vadd.f32 %v2285, %v2416
    %v2435 = vadd.f32 %v2286, %v2418
    %s2436 = scalar_lea.vmem %s5, 704
    %v2437 = vld [vmem:[%s2436] sm:$0xf]
    %v2438 = vld [vmem:[%s2436 + $0x4] sm:$0xf]
    %v2439 = vld [vmem:[%s2436 + $0x8] sm:$0xf]
    %v2440 = vld [vmem:[%s2436 + $0xc] sm:$0xf]
    %v2441 = vld [vmem:[%s2436 + $0x10] sm:$0xf]
    %v2442 = vld [vmem:[%s2436 + $0x14] sm:$0xf]
    %v2443 = vld [vmem:[%s2436 + $0x18] sm:$0xf]
    %v2444 = vld [vmem:[%s2436 + $0x1c] sm:$0xf]
    %v2445 = vld [vmem:[%s2436 + $0x20] sm:$0xf]
    %v2446 = vld [vmem:[%s2436 + $0x24] sm:$0xf]
    %v2447 = vld [vmem:[%s2436 + $0x28] sm:$0xf]
    %v2448 = vld [vmem:[%s2436 + $0x2c] sm:$0xf]
    %v2449 = vld [vmem:[%s2436 + $0x30] sm:$0xf]
    %v2450 = vld [vmem:[%s2436 + $0x34] sm:$0xf]
    %v2451 = vld [vmem:[%s2436 + $0x38] sm:$0xf]
    %v2452 = vld [vmem:[%s2436 + $0x3c] sm:$0xf]
    %v2469 = vunpack.c.l.b16 %v2437
    %v2470 = vunpack.c.l.b16 %v2438
    %v2471 = vunpack.c.l.b16 %v2439
    %v2472 = vunpack.c.l.b16 %v2440
    %v2473 = vunpack.c.l.b16 %v2441
    %v2474 = vunpack.c.l.b16 %v2442
    %v2475 = vunpack.c.l.b16 %v2443
    %v2476 = vunpack.c.l.b16 %v2444
    %v2477 = vunpack.c.l.b16 %v2445
    %v2478 = vunpack.c.l.b16 %v2446
    %v2479 = vunpack.c.l.b16 %v2447
    %v2480 = vunpack.c.l.b16 %v2448
    %v2481 = vunpack.c.l.b16 %v2449
    %v2482 = vunpack.c.l.b16 %v2450
    %v2483 = vunpack.c.l.b16 %v2451
    %v2484 = vunpack.c.l.b16 %v2452
    %v2485 = vpack.c.b16 %v2470, %v2469
    %v2486 = vpack.c.b16 %v2472, %v2471
    %v2487 = vpack.c.b16 %v2474, %v2473
    %v2488 = vpack.c.b16 %v2476, %v2475
    %v2489 = vpack.c.b16 %v2478, %v2477
    %v2490 = vpack.c.b16 %v2480, %v2479
    %v2491 = vpack.c.b16 %v2482, %v2481
    %v2492 = vpack.c.b16 %v2484, %v2483
    %2493 = vrot.lane.b32.xlu0 %v903, 52
    %v2494 = vpop.permute.xlu0 %2493
    %v2497 = vsel %vm907, %v2485, 0
    %v2500 = vsel %vm907, %v2486, 0
    %v2503 = vsel %vm907, %v2487, 0
    %v2506 = vsel %vm907, %v2488, 0
    %v2509 = vsel %vm907, %v2489, 0
    %v2512 = vsel %vm907, %v2490, 0
    %v2515 = vsel %vm907, %v2491, 0
    %v2518 = vsel %vm907, %v2492, 0
    %2520 = vmatpush.bf16.msra.mxu0 0
    %2521 = vmatpush.bf16.msra.mxu0 0
    %2522 = vmatpush.bf16.msra.mxu0 0
    %2523 = vmatpush.bf16.msra.mxu0 0
    %2524 = vmatpush.bf16.msra.mxu0 0
    %2525 = vmatpush.bf16.msra.mxu0 0
    %2526 = vmatpush.bf16.msra.mxu0 0
    %2527 = vmatpush.bf16.msra.mxu0 %v2494
    %2528 = vmatmul.bf16.gmra.mxu0 %v2497
    %v2529 = vpop.f32.mrf.mxu0
    %v2530 = vadd.f32 0.0, %v2529
    %v2531 = vpop.f32.mrf.mxu0
    %v2532 = vadd.f32 0.0, %v2531
    %2533 = vmatmul.bf16.gmra.mxu0 %v2500
    %v2534 = vpop.f32.mrf.mxu0
    %v2535 = vadd.f32 0.0, %v2534
    %v2536 = vpop.f32.mrf.mxu0
    %v2537 = vadd.f32 0.0, %v2536
    %2538 = vmatmul.bf16.gmra.mxu0 %v2503
    %v2539 = vpop.f32.mrf.mxu0
    %v2540 = vadd.f32 0.0, %v2539
    %v2541 = vpop.f32.mrf.mxu0
    %v2542 = vadd.f32 0.0, %v2541
    %2543 = vmatmul.bf16.gmra.mxu0 %v2506
    %v2544 = vpop.f32.mrf.mxu0
    %v2545 = vadd.f32 0.0, %v2544
    %v2546 = vpop.f32.mrf.mxu0
    %v2547 = vadd.f32 0.0, %v2546
    %2548 = vmatmul.bf16.gmra.mxu0 %v2509
    %v2549 = vpop.f32.mrf.mxu0
    %v2550 = vadd.f32 0.0, %v2549
    %v2551 = vpop.f32.mrf.mxu0
    %v2552 = vadd.f32 0.0, %v2551
    %2553 = vmatmul.bf16.gmra.mxu0 %v2512
    %v2554 = vpop.f32.mrf.mxu0
    %v2555 = vadd.f32 0.0, %v2554
    %v2556 = vpop.f32.mrf.mxu0
    %v2557 = vadd.f32 0.0, %v2556
    %2558 = vmatmul.bf16.gmra.mxu0 %v2515
    %v2559 = vpop.f32.mrf.mxu0
    %v2560 = vadd.f32 0.0, %v2559
    %v2561 = vpop.f32.mrf.mxu0
    %v2562 = vadd.f32 0.0, %v2561
    %2563 = vmatmul.bf16.gmra.mxu0 %v2518
    %v2564 = vpop.f32.mrf.mxu0
    %v2565 = vadd.f32 0.0, %v2564
    %v2566 = vpop.f32.mrf.mxu0
    %v2567 = vadd.f32 0.0, %v2566
    %2568 = vdwg.mxu0
    %v2569 = vadd.f32 %v2420, %v2530
    %v2570 = vadd.f32 %v2421, %v2532
    %v2571 = vadd.f32 %v2422, %v2535
    %v2572 = vadd.f32 %v2423, %v2537
    %v2573 = vadd.f32 %v2424, %v2540
    %v2574 = vadd.f32 %v2425, %v2542
    %v2575 = vadd.f32 %v2426, %v2545
    %v2576 = vadd.f32 %v2427, %v2547
    %v2577 = vadd.f32 %v2428, %v2550
    %v2578 = vadd.f32 %v2429, %v2552
    %v2579 = vadd.f32 %v2430, %v2555
    %v2580 = vadd.f32 %v2431, %v2557
    %v2581 = vadd.f32 %v2432, %v2560
    %v2582 = vadd.f32 %v2433, %v2562
    %v2583 = vadd.f32 %v2434, %v2565
    %v2584 = vadd.f32 %v2435, %v2567
    %s2585 = scalar_lea.vmem %s5, 768
    %v2586 = vld [vmem:[%s2585] sm:$0xf]
    %v2587 = vld [vmem:[%s2585 + $0x4] sm:$0xf]
    %v2588 = vld [vmem:[%s2585 + $0x8] sm:$0xf]
    %v2589 = vld [vmem:[%s2585 + $0xc] sm:$0xf]
    %v2590 = vld [vmem:[%s2585 + $0x10] sm:$0xf]
    %v2591 = vld [vmem:[%s2585 + $0x14] sm:$0xf]
    %v2592 = vld [vmem:[%s2585 + $0x18] sm:$0xf]
    %v2593 = vld [vmem:[%s2585 + $0x1c] sm:$0xf]
    %v2594 = vld [vmem:[%s2585 + $0x20] sm:$0xf]
    %v2595 = vld [vmem:[%s2585 + $0x24] sm:$0xf]
    %v2596 = vld [vmem:[%s2585 + $0x28] sm:$0xf]
    %v2597 = vld [vmem:[%s2585 + $0x2c] sm:$0xf]
    %v2598 = vld [vmem:[%s2585 + $0x30] sm:$0xf]
    %v2599 = vld [vmem:[%s2585 + $0x34] sm:$0xf]
    %v2600 = vld [vmem:[%s2585 + $0x38] sm:$0xf]
    %v2601 = vld [vmem:[%s2585 + $0x3c] sm:$0xf]
    %v2618 = vunpack.c.l.b16 %v2586
    %v2619 = vunpack.c.l.b16 %v2587
    %v2620 = vunpack.c.l.b16 %v2588
    %v2621 = vunpack.c.l.b16 %v2589
    %v2622 = vunpack.c.l.b16 %v2590
    %v2623 = vunpack.c.l.b16 %v2591
    %v2624 = vunpack.c.l.b16 %v2592
    %v2625 = vunpack.c.l.b16 %v2593
    %v2626 = vunpack.c.l.b16 %v2594
    %v2627 = vunpack.c.l.b16 %v2595
    %v2628 = vunpack.c.l.b16 %v2596
    %v2629 = vunpack.c.l.b16 %v2597
    %v2630 = vunpack.c.l.b16 %v2598
    %v2631 = vunpack.c.l.b16 %v2599
    %v2632 = vunpack.c.l.b16 %v2600
    %v2633 = vunpack.c.l.b16 %v2601
    %v2634 = vpack.c.b16 %v2619, %v2618
    %v2635 = vpack.c.b16 %v2621, %v2620
    %v2636 = vpack.c.b16 %v2623, %v2622
    %v2637 = vpack.c.b16 %v2625, %v2624
    %v2638 = vpack.c.b16 %v2627, %v2626
    %v2639 = vpack.c.b16 %v2629, %v2628
    %v2640 = vpack.c.b16 %v2631, %v2630
    %v2641 = vpack.c.b16 %v2633, %v2632
    %2642 = vrot.lane.b32.xlu0 %v903, 32
    %v2643 = vpop.permute.xlu0 %2642
    %v2646 = vsel %vm907, %v2634, 0
    %v2649 = vsel %vm907, %v2635, 0
    %v2652 = vsel %vm907, %v2636, 0
    %v2655 = vsel %vm907, %v2637, 0
    %v2658 = vsel %vm907, %v2638, 0
    %v2661 = vsel %vm907, %v2639, 0
    %v2664 = vsel %vm907, %v2640, 0
    %v2667 = vsel %vm907, %v2641, 0
    %2669 = vmatpush.bf16.msra.mxu0 0
    %2670 = vmatpush.bf16.msra.mxu0 0
    %2671 = vmatpush.bf16.msra.mxu0 0
    %2672 = vmatpush.bf16.msra.mxu0 0
    %2673 = vmatpush.bf16.msra.mxu0 0
    %2674 = vmatpush.bf16.msra.mxu0 0
    %2675 = vmatpush.bf16.msra.mxu0 0
    %2676 = vmatpush.bf16.msra.mxu0 %v2643
    %2677 = vmatmul.bf16.gmra.mxu0 %v2646
    %v2678 = vpop.f32.mrf.mxu0
    %v2679 = vadd.f32 0.0, %v2678
    %v2680 = vpop.f32.mrf.mxu0
    %v2681 = vadd.f32 0.0, %v2680
    %2682 = vmatmul.bf16.gmra.mxu0 %v2649
    %v2683 = vpop.f32.mrf.mxu0
    %v2684 = vadd.f32 0.0, %v2683
    %v2685 = vpop.f32.mrf.mxu0
    %v2686 = vadd.f32 0.0, %v2685
    %2687 = vmatmul.bf16.gmra.mxu0 %v2652
    %v2688 = vpop.f32.mrf.mxu0
    %v2689 = vadd.f32 0.0, %v2688
    %v2690 = vpop.f32.mrf.mxu0
    %v2691 = vadd.f32 0.0, %v2690
    %2692 = vmatmul.bf16.gmra.mxu0 %v2655
    %v2693 = vpop.f32.mrf.mxu0
    %v2694 = vadd.f32 0.0, %v2693
    %v2695 = vpop.f32.mrf.mxu0
    %v2696 = vadd.f32 0.0, %v2695
    %2697 = vmatmul.bf16.gmra.mxu0 %v2658
    %v2698 = vpop.f32.mrf.mxu0
    %v2699 = vadd.f32 0.0, %v2698
    %v2700 = vpop.f32.mrf.mxu0
    %v2701 = vadd.f32 0.0, %v2700
    %2702 = vmatmul.bf16.gmra.mxu0 %v2661
    %v2703 = vpop.f32.mrf.mxu0
    %v2704 = vadd.f32 0.0, %v2703
    %v2705 = vpop.f32.mrf.mxu0
    %v2706 = vadd.f32 0.0, %v2705
    %2707 = vmatmul.bf16.gmra.mxu0 %v2664
    %v2708 = vpop.f32.mrf.mxu0
    %v2709 = vadd.f32 0.0, %v2708
    %v2710 = vpop.f32.mrf.mxu0
    %v2711 = vadd.f32 0.0, %v2710
    %2712 = vmatmul.bf16.gmra.mxu0 %v2667
    %v2713 = vpop.f32.mrf.mxu0
    %v2714 = vadd.f32 0.0, %v2713
    %v2715 = vpop.f32.mrf.mxu0
    %v2716 = vadd.f32 0.0, %v2715
    %2717 = vdwg.mxu0
    %v2718 = vadd.f32 %v2569, %v2679
    %v2719 = vadd.f32 %v2570, %v2681
    %v2720 = vadd.f32 %v2571, %v2684
    %v2721 = vadd.f32 %v2572, %v2686
    %v2722 = vadd.f32 %v2573, %v2689
    %v2723 = vadd.f32 %v2574, %v2691
    %v2724 = vadd.f32 %v2575, %v2694
    %v2725 = vadd.f32 %v2576, %v2696
    %v2726 = vadd.f32 %v2577, %v2699
    %v2727 = vadd.f32 %v2578, %v2701
    %v2728 = vadd.f32 %v2579, %v2704
    %v2729 = vadd.f32 %v2580, %v2706
    %v2730 = vadd.f32 %v2581, %v2709
    %v2731 = vadd.f32 %v2582, %v2711
    %v2732 = vadd.f32 %v2583, %v2714
    %v2733 = vadd.f32 %v2584, %v2716
    %s2734 = scalar_lea.vmem %s5, 832
    %v2735 = vld [vmem:[%s2734] sm:$0xf]
    %v2736 = vld [vmem:[%s2734 + $0x4] sm:$0xf]
    %v2737 = vld [vmem:[%s2734 + $0x8] sm:$0xf]
    %v2738 = vld [vmem:[%s2734 + $0xc] sm:$0xf]
    %v2739 = vld [vmem:[%s2734 + $0x10] sm:$0xf]
    %v2740 = vld [vmem:[%s2734 + $0x14] sm:$0xf]
    %v2741 = vld [vmem:[%s2734 + $0x18] sm:$0xf]
    %v2742 = vld [vmem:[%s2734 + $0x1c] sm:$0xf]
    %v2743 = vld [vmem:[%s2734 + $0x20] sm:$0xf]
    %v2744 = vld [vmem:[%s2734 + $0x24] sm:$0xf]
    %v2745 = vld [vmem:[%s2734 + $0x28] sm:$0xf]
    %v2746 = vld [vmem:[%s2734 + $0x2c] sm:$0xf]
    %v2747 = vld [vmem:[%s2734 + $0x30] sm:$0xf]
    %v2748 = vld [vmem:[%s2734 + $0x34] sm:$0xf]
    %v2749 = vld [vmem:[%s2734 + $0x38] sm:$0xf]
    %v2750 = vld [vmem:[%s2734 + $0x3c] sm:$0xf]
    %v2767 = vunpack.c.l.b16 %v2735
    %v2768 = vunpack.c.l.b16 %v2736
    %v2769 = vunpack.c.l.b16 %v2737
    %v2770 = vunpack.c.l.b16 %v2738
    %v2771 = vunpack.c.l.b16 %v2739
    %v2772 = vunpack.c.l.b16 %v2740
    %v2773 = vunpack.c.l.b16 %v2741
    %v2774 = vunpack.c.l.b16 %v2742
    %v2775 = vunpack.c.l.b16 %v2743
    %v2776 = vunpack.c.l.b16 %v2744
    %v2777 = vunpack.c.l.b16 %v2745
    %v2778 = vunpack.c.l.b16 %v2746
    %v2779 = vunpack.c.l.b16 %v2747
    %v2780 = vunpack.c.l.b16 %v2748
    %v2781 = vunpack.c.l.b16 %v2749
    %v2782 = vunpack.c.l.b16 %v2750
    %v2783 = vpack.c.b16 %v2768, %v2767
    %v2784 = vpack.c.b16 %v2770, %v2769
    %v2785 = vpack.c.b16 %v2772, %v2771
    %v2786 = vpack.c.b16 %v2774, %v2773
    %v2787 = vpack.c.b16 %v2776, %v2775
    %v2788 = vpack.c.b16 %v2778, %v2777
    %v2789 = vpack.c.b16 %v2780, %v2779
    %v2790 = vpack.c.b16 %v2782, %v2781
    %2791 = vrot.lane.b32.xlu0 %v903, 28
    %v2792 = vpop.permute.xlu0 %2791
    %v2795 = vsel %vm907, %v2783, 0
    %v2798 = vsel %vm907, %v2784, 0
    %v2801 = vsel %vm907, %v2785, 0
    %v2804 = vsel %vm907, %v2786, 0
    %v2807 = vsel %vm907, %v2787, 0
    %v2810 = vsel %vm907, %v2788, 0
    %v2813 = vsel %vm907, %v2789, 0
    %v2816 = vsel %vm907, %v2790, 0
    %2818 = vmatpush.bf16.msra.mxu0 0
    %2819 = vmatpush.bf16.msra.mxu0 0
    %2820 = vmatpush.bf16.msra.mxu0 0
    %2821 = vmatpush.bf16.msra.mxu0 0
    %2822 = vmatpush.bf16.msra.mxu0 0
    %2823 = vmatpush.bf16.msra.mxu0 0
    %2824 = vmatpush.bf16.msra.mxu0 0
    %2825 = vmatpush.bf16.msra.mxu0 %v2792
    %2826 = vmatmul.bf16.gmra.mxu0 %v2795
    %v2827 = vpop.f32.mrf.mxu0
    %v2828 = vadd.f32 0.0, %v2827
    %v2829 = vpop.f32.mrf.mxu0
    %v2830 = vadd.f32 0.0, %v2829
    %2831 = vmatmul.bf16.gmra.mxu0 %v2798
    %v2832 = vpop.f32.mrf.mxu0
    %v2833 = vadd.f32 0.0, %v2832
    %v2834 = vpop.f32.mrf.mxu0
    %v2835 = vadd.f32 0.0, %v2834
    %2836 = vmatmul.bf16.gmra.mxu0 %v2801
    %v2837 = vpop.f32.mrf.mxu0
    %v2838 = vadd.f32 0.0, %v2837
    %v2839 = vpop.f32.mrf.mxu0
    %v2840 = vadd.f32 0.0, %v2839
    %2841 = vmatmul.bf16.gmra.mxu0 %v2804
    %v2842 = vpop.f32.mrf.mxu0
    %v2843 = vadd.f32 0.0, %v2842
    %v2844 = vpop.f32.mrf.mxu0
    %v2845 = vadd.f32 0.0, %v2844
    %2846 = vmatmul.bf16.gmra.mxu0 %v2807
    %v2847 = vpop.f32.mrf.mxu0
    %v2848 = vadd.f32 0.0, %v2847
    %v2849 = vpop.f32.mrf.mxu0
    %v2850 = vadd.f32 0.0, %v2849
    %2851 = vmatmul.bf16.gmra.mxu0 %v2810
    %v2852 = vpop.f32.mrf.mxu0
    %v2853 = vadd.f32 0.0, %v2852
    %v2854 = vpop.f32.mrf.mxu0
    %v2855 = vadd.f32 0.0, %v2854
    %2856 = vmatmul.bf16.gmra.mxu0 %v2813
    %v2857 = vpop.f32.mrf.mxu0
    %v2858 = vadd.f32 0.0, %v2857
    %v2859 = vpop.f32.mrf.mxu0
    %v2860 = vadd.f32 0.0, %v2859
    %2861 = vmatmul.bf16.gmra.mxu0 %v2816
    %v2862 = vpop.f32.mrf.mxu0
    %v2863 = vadd.f32 0.0, %v2862
    %v2864 = vpop.f32.mrf.mxu0
    %v2865 = vadd.f32 0.0, %v2864
    %2866 = vdwg.mxu0
    %v2867 = vadd.f32 %v2718, %v2828
    %v2868 = vadd.f32 %v2719, %v2830
    %v2869 = vadd.f32 %v2720, %v2833
    %v2870 = vadd.f32 %v2721, %v2835
    %v2871 = vadd.f32 %v2722, %v2838
    %v2872 = vadd.f32 %v2723, %v2840
    %v2873 = vadd.f32 %v2724, %v2843
    %v2874 = vadd.f32 %v2725, %v2845
    %v2875 = vadd.f32 %v2726, %v2848
    %v2876 = vadd.f32 %v2727, %v2850
    %v2877 = vadd.f32 %v2728, %v2853
    %v2878 = vadd.f32 %v2729, %v2855
    %v2879 = vadd.f32 %v2730, %v2858
    %v2880 = vadd.f32 %v2731, %v2860
    %v2881 = vadd.f32 %v2732, %v2863
    %v2882 = vadd.f32 %v2733, %v2865
    %s2883 = scalar_lea.vmem %s5, 896
    %v2884 = vld [vmem:[%s2883] sm:$0xf]
    %v2885 = vld [vmem:[%s2883 + $0x4] sm:$0xf]
    %v2886 = vld [vmem:[%s2883 + $0x8] sm:$0xf]
    %v2887 = vld [vmem:[%s2883 + $0xc] sm:$0xf]
    %v2888 = vld [vmem:[%s2883 + $0x10] sm:$0xf]
    %v2889 = vld [vmem:[%s2883 + $0x14] sm:$0xf]
    %v2890 = vld [vmem:[%s2883 + $0x18] sm:$0xf]
    %v2891 = vld [vmem:[%s2883 + $0x1c] sm:$0xf]
    %v2892 = vld [vmem:[%s2883 + $0x20] sm:$0xf]
    %v2893 = vld [vmem:[%s2883 + $0x24] sm:$0xf]
    %v2894 = vld [vmem:[%s2883 + $0x28] sm:$0xf]
    %v2895 = vld [vmem:[%s2883 + $0x2c] sm:$0xf]
    %v2896 = vld [vmem:[%s2883 + $0x30] sm:$0xf]
    %v2897 = vld [vmem:[%s2883 + $0x34] sm:$0xf]
    %v2898 = vld [vmem:[%s2883 + $0x38] sm:$0xf]
    %v2899 = vld [vmem:[%s2883 + $0x3c] sm:$0xf]
    %v2916 = vunpack.c.l.b16 %v2884
    %v2917 = vunpack.c.l.b16 %v2885
    %v2918 = vunpack.c.l.b16 %v2886
    %v2919 = vunpack.c.l.b16 %v2887
    %v2920 = vunpack.c.l.b16 %v2888
    %v2921 = vunpack.c.l.b16 %v2889
    %v2922 = vunpack.c.l.b16 %v2890
    %v2923 = vunpack.c.l.b16 %v2891
    %v2924 = vunpack.c.l.b16 %v2892
    %v2925 = vunpack.c.l.b16 %v2893
    %v2926 = vunpack.c.l.b16 %v2894
    %v2927 = vunpack.c.l.b16 %v2895
    %v2928 = vunpack.c.l.b16 %v2896
    %v2929 = vunpack.c.l.b16 %v2897
    %v2930 = vunpack.c.l.b16 %v2898
    %v2931 = vunpack.c.l.b16 %v2899
    %v2932 = vpack.c.b16 %v2917, %v2916
    %v2933 = vpack.c.b16 %v2919, %v2918
    %v2934 = vpack.c.b16 %v2921, %v2920
    %v2935 = vpack.c.b16 %v2923, %v2922
    %v2936 = vpack.c.b16 %v2925, %v2924
    %v2937 = vpack.c.b16 %v2927, %v2926
    %v2938 = vpack.c.b16 %v2929, %v2928
    %v2939 = vpack.c.b16 %v2931, %v2930
    %2940 = vrot.lane.b32.xlu0 %v903, 24
    %v2941 = vpop.permute.xlu0 %2940
    %v2944 = vsel %vm907, %v2932, 0
    %v2947 = vsel %vm907, %v2933, 0
    %v2950 = vsel %vm907, %v2934, 0
    %v2953 = vsel %vm907, %v2935, 0
    %v2956 = vsel %vm907, %v2936, 0
    %v2959 = vsel %vm907, %v2937, 0
    %v2962 = vsel %vm907, %v2938, 0
    %v2965 = vsel %vm907, %v2939, 0
    %2967 = vmatpush.bf16.msra.mxu0 0
    %2968 = vmatpush.bf16.msra.mxu0 0
    %2969 = vmatpush.bf16.msra.mxu0 0
    %2970 = vmatpush.bf16.msra.mxu0 0
    %2971 = vmatpush.bf16.msra.mxu0 0
    %2972 = vmatpush.bf16.msra.mxu0 0
    %2973 = vmatpush.bf16.msra.mxu0 0
    %2974 = vmatpush.bf16.msra.mxu0 %v2941
    %2975 = vmatmul.bf16.gmra.mxu0 %v2944
    %v2976 = vpop.f32.mrf.mxu0
    %v2977 = vadd.f32 0.0, %v2976
    %v2978 = vpop.f32.mrf.mxu0
    %v2979 = vadd.f32 0.0, %v2978
    %2980 = vmatmul.bf16.gmra.mxu0 %v2947
    %v2981 = vpop.f32.mrf.mxu0
    %v2982 = vadd.f32 0.0, %v2981
    %v2983 = vpop.f32.mrf.mxu0
    %v2984 = vadd.f32 0.0, %v2983
    %2985 = vmatmul.bf16.gmra.mxu0 %v2950
    %v2986 = vpop.f32.mrf.mxu0
    %v2987 = vadd.f32 0.0, %v2986
    %v2988 = vpop.f32.mrf.mxu0
    %v2989 = vadd.f32 0.0, %v2988
    %2990 = vmatmul.bf16.gmra.mxu0 %v2953
    %v2991 = vpop.f32.mrf.mxu0
    %v2992 = vadd.f32 0.0, %v2991
    %v2993 = vpop.f32.mrf.mxu0
    %v2994 = vadd.f32 0.0, %v2993
    %2995 = vmatmul.bf16.gmra.mxu0 %v2956
    %v2996 = vpop.f32.mrf.mxu0
    %v2997 = vadd.f32 0.0, %v2996
    %v2998 = vpop.f32.mrf.mxu0
    %v2999 = vadd.f32 0.0, %v2998
    %3000 = vmatmul.bf16.gmra.mxu0 %v2959
    %v3001 = vpop.f32.mrf.mxu0
    %v3002 = vadd.f32 0.0, %v3001
    %v3003 = vpop.f32.mrf.mxu0
    %v3004 = vadd.f32 0.0, %v3003
    %3005 = vmatmul.bf16.gmra.mxu0 %v2962
    %v3006 = vpop.f32.mrf.mxu0
    %v3007 = vadd.f32 0.0, %v3006
    %v3008 = vpop.f32.mrf.mxu0
    %v3009 = vadd.f32 0.0, %v3008
    %3010 = vmatmul.bf16.gmra.mxu0 %v2965
    %v3011 = vpop.f32.mrf.mxu0
    %v3012 = vadd.f32 0.0, %v3011
    %v3013 = vpop.f32.mrf.mxu0
    %v3014 = vadd.f32 0.0, %v3013
    %3015 = vdwg.mxu0
    %v3016 = vadd.f32 %v2867, %v2977
    %v3017 = vadd.f32 %v2868, %v2979
    %v3018 = vadd.f32 %v2869, %v2982
    %v3019 = vadd.f32 %v2870, %v2984
    %v3020 = vadd.f32 %v2871, %v2987
    %v3021 = vadd.f32 %v2872, %v2989
    %v3022 = vadd.f32 %v2873, %v2992
    %v3023 = vadd.f32 %v2874, %v2994
    %v3024 = vadd.f32 %v2875, %v2997
    %v3025 = vadd.f32 %v2876, %v2999
    %v3026 = vadd.f32 %v2877, %v3002
    %v3027 = vadd.f32 %v2878, %v3004
    %v3028 = vadd.f32 %v2879, %v3007
    %v3029 = vadd.f32 %v2880, %v3009
    %v3030 = vadd.f32 %v2881, %v3012
    %v3031 = vadd.f32 %v2882, %v3014
    %s3032 = scalar_lea.vmem %s5, 960
    %v3033 = vld [vmem:[%s3032] sm:$0xf]
    %v3034 = vld [vmem:[%s3032 + $0x4] sm:$0xf]
    %v3035 = vld [vmem:[%s3032 + $0x8] sm:$0xf]
    %v3036 = vld [vmem:[%s3032 + $0xc] sm:$0xf]
    %v3037 = vld [vmem:[%s3032 + $0x10] sm:$0xf]
    %v3038 = vld [vmem:[%s3032 + $0x14] sm:$0xf]
    %v3039 = vld [vmem:[%s3032 + $0x18] sm:$0xf]
    %v3040 = vld [vmem:[%s3032 + $0x1c] sm:$0xf]
    %v3041 = vld [vmem:[%s3032 + $0x20] sm:$0xf]
    %v3042 = vld [vmem:[%s3032 + $0x24] sm:$0xf]
    %v3043 = vld [vmem:[%s3032 + $0x28] sm:$0xf]
    %v3044 = vld [vmem:[%s3032 + $0x2c] sm:$0xf]
    %v3045 = vld [vmem:[%s3032 + $0x30] sm:$0xf]
    %v3046 = vld [vmem:[%s3032 + $0x34] sm:$0xf]
    %v3047 = vld [vmem:[%s3032 + $0x38] sm:$0xf]
    %v3048 = vld [vmem:[%s3032 + $0x3c] sm:$0xf]
    %v3065 = vunpack.c.l.b16 %v3033
    %v3066 = vunpack.c.l.b16 %v3034
    %v3067 = vunpack.c.l.b16 %v3035
    %v3068 = vunpack.c.l.b16 %v3036
    %v3069 = vunpack.c.l.b16 %v3037
    %v3070 = vunpack.c.l.b16 %v3038
    %v3071 = vunpack.c.l.b16 %v3039
    %v3072 = vunpack.c.l.b16 %v3040
    %v3073 = vunpack.c.l.b16 %v3041
    %v3074 = vunpack.c.l.b16 %v3042
    %v3075 = vunpack.c.l.b16 %v3043
    %v3076 = vunpack.c.l.b16 %v3044
    %v3077 = vunpack.c.l.b16 %v3045
    %v3078 = vunpack.c.l.b16 %v3046
    %v3079 = vunpack.c.l.b16 %v3047
    %v3080 = vunpack.c.l.b16 %v3048
    %v3081 = vpack.c.b16 %v3066, %v3065
    %v3082 = vpack.c.b16 %v3068, %v3067
    %v3083 = vpack.c.b16 %v3070, %v3069
    %v3084 = vpack.c.b16 %v3072, %v3071
    %v3085 = vpack.c.b16 %v3074, %v3073
    %v3086 = vpack.c.b16 %v3076, %v3075
    %v3087 = vpack.c.b16 %v3078, %v3077
    %v3088 = vpack.c.b16 %v3080, %v3079
    %3089 = vrot.lane.b32.xlu0 %v903, 20
    %v3090 = vpop.permute.xlu0 %3089
    %v3093 = vsel %vm907, %v3081, 0
    %v3096 = vsel %vm907, %v3082, 0
    %v3099 = vsel %vm907, %v3083, 0
    %v3102 = vsel %vm907, %v3084, 0
    %v3105 = vsel %vm907, %v3085, 0
    %v3108 = vsel %vm907, %v3086, 0
    %v3111 = vsel %vm907, %v3087, 0
    %v3114 = vsel %vm907, %v3088, 0
    %3116 = vmatpush.bf16.msra.mxu0 0
    %3117 = vmatpush.bf16.msra.mxu0 0
    %3118 = vmatpush.bf16.msra.mxu0 0
    %3119 = vmatpush.bf16.msra.mxu0 0
    %3120 = vmatpush.bf16.msra.mxu0 0
    %3121 = vmatpush.bf16.msra.mxu0 0
    %3122 = vmatpush.bf16.msra.mxu0 0
    %3123 = vmatpush.bf16.msra.mxu0 %v3090
    %3124 = vmatmul.bf16.gmra.mxu0 %v3093
    %v3125 = vpop.f32.mrf.mxu0
    %v3126 = vadd.f32 0.0, %v3125
    %v3127 = vpop.f32.mrf.mxu0
    %v3128 = vadd.f32 0.0, %v3127
    %3129 = vmatmul.bf16.gmra.mxu0 %v3096
    %v3130 = vpop.f32.mrf.mxu0
    %v3131 = vadd.f32 0.0, %v3130
    %v3132 = vpop.f32.mrf.mxu0
    %v3133 = vadd.f32 0.0, %v3132
    %3134 = vmatmul.bf16.gmra.mxu0 %v3099
    %v3135 = vpop.f32.mrf.mxu0
    %v3136 = vadd.f32 0.0, %v3135
    %v3137 = vpop.f32.mrf.mxu0
    %v3138 = vadd.f32 0.0, %v3137
    %3139 = vmatmul.bf16.gmra.mxu0 %v3102
    %v3140 = vpop.f32.mrf.mxu0
    %v3141 = vadd.f32 0.0, %v3140
    %v3142 = vpop.f32.mrf.mxu0
    %v3143 = vadd.f32 0.0, %v3142
    %3144 = vmatmul.bf16.gmra.mxu0 %v3105
    %v3145 = vpop.f32.mrf.mxu0
    %v3146 = vadd.f32 0.0, %v3145
    %v3147 = vpop.f32.mrf.mxu0
    %v3148 = vadd.f32 0.0, %v3147
    %3149 = vmatmul.bf16.gmra.mxu0 %v3108
    %v3150 = vpop.f32.mrf.mxu0
    %v3151 = vadd.f32 0.0, %v3150
    %v3152 = vpop.f32.mrf.mxu0
    %v3153 = vadd.f32 0.0, %v3152
    %3154 = vmatmul.bf16.gmra.mxu0 %v3111
    %v3155 = vpop.f32.mrf.mxu0
    %v3156 = vadd.f32 0.0, %v3155
    %v3157 = vpop.f32.mrf.mxu0
    %v3158 = vadd.f32 0.0, %v3157
    %3159 = vmatmul.bf16.gmra.mxu0 %v3114
    %v3160 = vpop.f32.mrf.mxu0
    %v3161 = vadd.f32 0.0, %v3160
    %v3162 = vpop.f32.mrf.mxu0
    %v3163 = vadd.f32 0.0, %v3162
    %3164 = vdwg.mxu0
    %v3165 = vadd.f32 %v3016, %v3126
    %v3166 = vadd.f32 %v3017, %v3128
    %v3167 = vadd.f32 %v3018, %v3131
    %v3168 = vadd.f32 %v3019, %v3133
    %v3169 = vadd.f32 %v3020, %v3136
    %v3170 = vadd.f32 %v3021, %v3138
    %v3171 = vadd.f32 %v3022, %v3141
    %v3172 = vadd.f32 %v3023, %v3143
    %v3173 = vadd.f32 %v3024, %v3146
    %v3174 = vadd.f32 %v3025, %v3148
    %v3175 = vadd.f32 %v3026, %v3151
    %v3176 = vadd.f32 %v3027, %v3153
    %v3177 = vadd.f32 %v3028, %v3156
    %v3178 = vadd.f32 %v3029, %v3158
    %v3179 = vadd.f32 %v3030, %v3161
    %v3180 = vadd.f32 %v3031, %v3163
    %3182 = vset.pattern.permute.xlu0 0
    %3183 = vperm.xlu0 %3182, %v48
    %v3184 = vpop.permute.xlu0 %3183
    %3187 = vset.pattern.permute.xlu0 0
    %3188 = vperm.xlu0 %3187, %v49
    %v3189 = vpop.permute.xlu0 %3188
    %3192 = vset.pattern.permute.xlu0 0
    %3193 = vperm.xlu0 %3192, %v50
    %v3194 = vpop.permute.xlu0 %3193
    %3197 = vset.pattern.permute.xlu0 0
    %3198 = vperm.xlu0 %3197, %v51
    %v3199 = vpop.permute.xlu0 %3198
    %3202 = vset.pattern.permute.xlu0 0
    %3203 = vperm.xlu0 %3202, %v52
    %v3204 = vpop.permute.xlu0 %3203
    %3207 = vset.pattern.permute.xlu0 0
    %3208 = vperm.xlu0 %3207, %v53
    %v3209 = vpop.permute.xlu0 %3208
    %3212 = vset.pattern.permute.xlu0 0
    %3213 = vperm.xlu0 %3212, %v54
    %v3214 = vpop.permute.xlu0 %3213
    %3217 = vset.pattern.permute.xlu0 0
    %3218 = vperm.xlu0 %3217, %v55
    %v3219 = vpop.permute.xlu0 %3218
    %3222 = vset.pattern.permute.xlu0 0
    %3223 = vperm.xlu0 %3222, %v56
    %v3224 = vpop.permute.xlu0 %3223
    %3227 = vset.pattern.permute.xlu0 0
    %3228 = vperm.xlu0 %3227, %v57
    %v3229 = vpop.permute.xlu0 %3228
    %3232 = vset.pattern.permute.xlu0 0
    %3233 = vperm.xlu0 %3232, %v58
    %v3234 = vpop.permute.xlu0 %3233
    %3237 = vset.pattern.permute.xlu0 0
    %3238 = vperm.xlu0 %3237, %v59
    %v3239 = vpop.permute.xlu0 %3238
    %3242 = vset.pattern.permute.xlu0 0
    %3243 = vperm.xlu0 %3242, %v60
    %v3244 = vpop.permute.xlu0 %3243
    %3247 = vset.pattern.permute.xlu0 0
    %3248 = vperm.xlu0 %3247, %v61
    %v3249 = vpop.permute.xlu0 %3248
    %3252 = vset.pattern.permute.xlu0 0
    %3253 = vperm.xlu0 %3252, %v62
    %v3254 = vpop.permute.xlu0 %3253
    %3257 = vset.pattern.permute.xlu0 0
    %3258 = vperm.xlu0 %3257, %v63
    %v3259 = vpop.permute.xlu0 %3258
    %v3261 = vadd.f32 %v3165, %v3184
    %v3262 = vadd.f32 %v3166, %v3189
    %v3263 = vadd.f32 %v3167, %v3194
    %v3264 = vadd.f32 %v3168, %v3199
    %v3265 = vadd.f32 %v3169, %v3204
    %v3266 = vadd.f32 %v3170, %v3209
    %v3267 = vadd.f32 %v3171, %v3214
    %v3268 = vadd.f32 %v3172, %v3219
    %v3269 = vadd.f32 %v3173, %v3224
    %v3270 = vadd.f32 %v3174, %v3229
    %v3271 = vadd.f32 %v3175, %v3234
    %v3272 = vadd.f32 %v3176, %v3239
    %v3273 = vadd.f32 %v3177, %v3244
    %v3274 = vadd.f32 %v3178, %v3249
    %v3275 = vadd.f32 %v3179, %v3254
    %v3276 = vadd.f32 %v3180, %v3259
    %s3277 = sld [smem:[#allocation2 + $0x2]]
    %vm3278 = vcmp.ge.f32.partialorder %v3261, 0.0
    %vm3279 = vcmp.ge.f32.partialorder %v3262, 0.0
    %vm3280 = vcmp.ge.f32.partialorder %v3263, 0.0
    %vm3281 = vcmp.ge.f32.partialorder %v3264, 0.0
    %vm3282 = vcmp.ge.f32.partialorder %v3265, 0.0
    %vm3283 = vcmp.ge.f32.partialorder %v3266, 0.0
    %vm3284 = vcmp.ge.f32.partialorder %v3267, 0.0
    %vm3285 = vcmp.ge.f32.partialorder %v3268, 0.0
    %vm3286 = vcmp.ge.f32.partialorder %v3269, 0.0
    %vm3287 = vcmp.ge.f32.partialorder %v3270, 0.0
    %vm3288 = vcmp.ge.f32.partialorder %v3271, 0.0
    %vm3289 = vcmp.ge.f32.partialorder %v3272, 0.0
    %vm3290 = vcmp.ge.f32.partialorder %v3273, 0.0
    %vm3291 = vcmp.ge.f32.partialorder %v3274, 0.0
    %vm3292 = vcmp.ge.f32.partialorder %v3275, 0.0
    %vm3293 = vcmp.ge.f32.partialorder %v3276, 0.0
    %v3294 = vstv %s3277
    %v3295 = vmul.f32 %v3294, %v3261
    %v3296 = vmul.f32 %v3294, %v3262
    %v3297 = vmul.f32 %v3294, %v3263
    %v3298 = vmul.f32 %v3294, %v3264
    %v3299 = vmul.f32 %v3294, %v3265
    %v3300 = vmul.f32 %v3294, %v3266
    %v3301 = vmul.f32 %v3294, %v3267
    %v3302 = vmul.f32 %v3294, %v3268
    %v3303 = vmul.f32 %v3294, %v3269
    %v3304 = vmul.f32 %v3294, %v3270
    %v3305 = vmul.f32 %v3294, %v3271
    %v3306 = vmul.f32 %v3294, %v3272
    %v3307 = vmul.f32 %v3294, %v3273
    %v3308 = vmul.f32 %v3294, %v3274
    %v3309 = vmul.f32 %v3294, %v3275
    %v3310 = vmul.f32 %v3294, %v3276
    %v3311 = vsel %vm3278, %v3261, %v3295
    %v3312 = vsel %vm3279, %v3262, %v3296
    %v3313 = vsel %vm3280, %v3263, %v3297
    %v3314 = vsel %vm3281, %v3264, %v3298
    %v3315 = vsel %vm3282, %v3265, %v3299
    %v3316 = vsel %vm3283, %v3266, %v3300
    %v3317 = vsel %vm3284, %v3267, %v3301
    %v3318 = vsel %vm3285, %v3268, %v3302
    %v3319 = vsel %vm3286, %v3269, %v3303
    %v3320 = vsel %vm3287, %v3270, %v3304
    %v3321 = vsel %vm3288, %v3271, %v3305
    %v3322 = vsel %vm3289, %v3272, %v3306
    %v3323 = vsel %vm3290, %v3273, %v3307
    %v3324 = vsel %vm3291, %v3274, %v3308
    %v3325 = vsel %vm3292, %v3275, %v3309
    %v3326 = vsel %vm3293, %v3276, %v3310
    %v3327 = vld [vmem:[%s6] sm:$0xf]
    %v3328 = vld [vmem:[%s6 + $0x4] sm:$0xf]
    %v3329 = vld [vmem:[%s6 + $0x8] sm:$0xf]
    %v3330 = vld [vmem:[%s6 + $0xc] sm:$0xf]
    %v3331 = vld [vmem:[%s6 + $0x10] sm:$0xf]
    %v3332 = vld [vmem:[%s6 + $0x14] sm:$0xf]
    %v3333 = vld [vmem:[%s6 + $0x18] sm:$0xf]
    %v3334 = vld [vmem:[%s6 + $0x1c] sm:$0xf]
    %v3335 = vld [vmem:[%s6 + $0x20] sm:$0xf]
    %v3336 = vld [vmem:[%s6 + $0x24] sm:$0xf]
    %v3337 = vld [vmem:[%s6 + $0x28] sm:$0xf]
    %v3338 = vld [vmem:[%s6 + $0x2c] sm:$0xf]
    %v3339 = vld [vmem:[%s6 + $0x30] sm:$0xf]
    %v3340 = vld [vmem:[%s6 + $0x34] sm:$0xf]
    %v3341 = vld [vmem:[%s6 + $0x38] sm:$0xf]
    %v3342 = vld [vmem:[%s6 + $0x3c] sm:$0xf]
    %v3343 = vpack.c.bf16 %v3312, %v3311
    %v3344 = vpack.c.bf16 %v3314, %v3313
    %v3345 = vpack.c.bf16 %v3316, %v3315
    %v3346 = vpack.c.bf16 %v3318, %v3317
    %v3347 = vpack.c.bf16 %v3320, %v3319
    %v3348 = vpack.c.bf16 %v3322, %v3321
    %v3349 = vpack.c.bf16 %v3324, %v3323
    %v3350 = vpack.c.bf16 %v3326, %v3325
    %3351 = vset.pattern.permute.xlu0 1
    %3352 = vperm.xlu0 %3351, %v48
    %v3353 = vpop.permute.xlu0 %3352
    %3355 = vset.pattern.permute.xlu0 1
    %3356 = vperm.xlu0 %3355, %v49
    %v3357 = vpop.permute.xlu0 %3356
    %3359 = vset.pattern.permute.xlu0 1
    %3360 = vperm.xlu0 %3359, %v50
    %v3361 = vpop.permute.xlu0 %3360
    %3363 = vset.pattern.permute.xlu0 1
    %3364 = vperm.xlu0 %3363, %v51
    %v3365 = vpop.permute.xlu0 %3364
    %3367 = vset.pattern.permute.xlu0 1
    %3368 = vperm.xlu0 %3367, %v52
    %v3369 = vpop.permute.xlu0 %3368
    %3371 = vset.pattern.permute.xlu0 1
    %3372 = vperm.xlu0 %3371, %v53
    %v3373 = vpop.permute.xlu0 %3372
    %3375 = vset.pattern.permute.xlu0 1
    %3376 = vperm.xlu0 %3375, %v54
    %v3377 = vpop.permute.xlu0 %3376
    %3379 = vset.pattern.permute.xlu0 1
    %3380 = vperm.xlu0 %3379, %v55
    %v3381 = vpop.permute.xlu0 %3380
    %3383 = vset.pattern.permute.xlu0 1
    %3384 = vperm.xlu0 %3383, %v56
    %v3385 = vpop.permute.xlu0 %3384
    %3387 = vset.pattern.permute.xlu0 1
    %3388 = vperm.xlu0 %3387, %v57
    %v3389 = vpop.permute.xlu0 %3388
    %3391 = vset.pattern.permute.xlu0 1
    %3392 = vperm.xlu0 %3391, %v58
    %v3393 = vpop.permute.xlu0 %3392
    %3395 = vset.pattern.permute.xlu0 1
    %3396 = vperm.xlu0 %3395, %v59
    %v3397 = vpop.permute.xlu0 %3396
    %3399 = vset.pattern.permute.xlu0 1
    %3400 = vperm.xlu0 %3399, %v60
    %v3401 = vpop.permute.xlu0 %3400
    %3403 = vset.pattern.permute.xlu0 1
    %3404 = vperm.xlu0 %3403, %v61
    %v3405 = vpop.permute.xlu0 %3404
    %3407 = vset.pattern.permute.xlu0 1
    %3408 = vperm.xlu0 %3407, %v62
    %v3409 = vpop.permute.xlu0 %3408
    %3411 = vset.pattern.permute.xlu0 1
    %3412 = vperm.xlu0 %3411, %v63
    %v3413 = vpop.permute.xlu0 %3412
    %v3431 = vunpack.c.l.b16 %v3327
    %v3432 = vunpack.c.l.b16 %v3328
    %v3433 = vunpack.c.l.b16 %v3329
    %v3434 = vunpack.c.l.b16 %v3330
    %v3435 = vunpack.c.l.b16 %v3331
    %v3436 = vunpack.c.l.b16 %v3332
    %v3437 = vunpack.c.l.b16 %v3333
    %v3438 = vunpack.c.l.b16 %v3334
    %v3439 = vunpack.c.l.b16 %v3335
    %v3440 = vunpack.c.l.b16 %v3336
    %v3441 = vunpack.c.l.b16 %v3337
    %v3442 = vunpack.c.l.b16 %v3338
    %v3443 = vunpack.c.l.b16 %v3339
    %v3444 = vunpack.c.l.b16 %v3340
    %v3445 = vunpack.c.l.b16 %v3341
    %v3446 = vunpack.c.l.b16 %v3342
    %v3447 = vpack.c.b16 %v3432, %v3431
    %v3448 = vpack.c.b16 %v3434, %v3433
    %v3449 = vpack.c.b16 %v3436, %v3435
    %v3450 = vpack.c.b16 %v3438, %v3437
    %v3451 = vpack.c.b16 %v3440, %v3439
    %v3452 = vpack.c.b16 %v3442, %v3441
    %v3453 = vpack.c.b16 %v3444, %v3443
    %v3454 = vpack.c.b16 %v3446, %v3445
    %3463 = vmatpush.bf16.msra.mxu0 %v3350
    %3464 = vmatpush.bf16.msra.mxu0 %v3349
    %3465 = vmatpush.bf16.msra.mxu0 %v3348
    %3466 = vmatpush.bf16.msra.mxu0 %v3347
    %3467 = vmatpush.bf16.msra.mxu0 %v3346
    %3468 = vmatpush.bf16.msra.mxu0 %v3345
    %3469 = vmatpush.bf16.msra.mxu0 %v3344
    %3470 = vmatpush.bf16.msra.mxu0 %v3343
    %3471 = vmatmul.bf16.gmra.mxu0 %v3447
    %v3472 = vpop.f32.mrf.mxu0
    %v3473 = vadd.f32 %v3353, %v3472
    %v3474 = vpop.f32.mrf.mxu0
    %v3475 = vadd.f32 %v3357, %v3474
    %3476 = vmatmul.bf16.gmra.mxu0 %v3448
    %v3477 = vpop.f32.mrf.mxu0
    %v3478 = vadd.f32 %v3361, %v3477
    %v3479 = vpop.f32.mrf.mxu0
    %v3480 = vadd.f32 %v3365, %v3479
    %3481 = vmatmul.bf16.gmra.mxu0 %v3449
    %v3482 = vpop.f32.mrf.mxu0
    %v3483 = vadd.f32 %v3369, %v3482
    %v3484 = vpop.f32.mrf.mxu0
    %v3485 = vadd.f32 %v3373, %v3484
    %3486 = vmatmul.bf16.gmra.mxu0 %v3450
    %v3487 = vpop.f32.mrf.mxu0
    %v3488 = vadd.f32 %v3377, %v3487
    %v3489 = vpop.f32.mrf.mxu0
    %v3490 = vadd.f32 %v3381, %v3489
    %3491 = vmatmul.bf16.gmra.mxu0 %v3451
    %v3492 = vpop.f32.mrf.mxu0
    %v3493 = vadd.f32 %v3385, %v3492
    %v3494 = vpop.f32.mrf.mxu0
    %v3495 = vadd.f32 %v3389, %v3494
    %3496 = vmatmul.bf16.gmra.mxu0 %v3452
    %v3497 = vpop.f32.mrf.mxu0
    %v3498 = vadd.f32 %v3393, %v3497
    %v3499 = vpop.f32.mrf.mxu0
    %v3500 = vadd.f32 %v3397, %v3499
    %3501 = vmatmul.bf16.gmra.mxu0 %v3453
    %v3502 = vpop.f32.mrf.mxu0
    %v3503 = vadd.f32 %v3401, %v3502
    %v3504 = vpop.f32.mrf.mxu0
    %v3505 = vadd.f32 %v3405, %v3504
    %3506 = vmatmul.bf16.gmra.mxu0 %v3454
    %v3507 = vpop.f32.mrf.mxu0
    %v3508 = vadd.f32 %v3409, %v3507
    %v3509 = vpop.f32.mrf.mxu0
    %v3510 = vadd.f32 %v3413, %v3509
    %3511 = vdwg.mxu0
    %s3512 = sld [smem:[#allocation2 + $0x3]]
    %vm3513 = vcmp.ge.f32.partialorder %v3473, 0.0
    %vm3514 = vcmp.ge.f32.partialorder %v3475, 0.0
    %vm3515 = vcmp.ge.f32.partialorder %v3478, 0.0
    %vm3516 = vcmp.ge.f32.partialorder %v3480, 0.0
    %vm3517 = vcmp.ge.f32.partialorder %v3483, 0.0
    %vm3518 = vcmp.ge.f32.partialorder %v3485, 0.0
    %vm3519 = vcmp.ge.f32.partialorder %v3488, 0.0
    %vm3520 = vcmp.ge.f32.partialorder %v3490, 0.0
    %vm3521 = vcmp.ge.f32.partialorder %v3493, 0.0
    %vm3522 = vcmp.ge.f32.partialorder %v3495, 0.0
    %vm3523 = vcmp.ge.f32.partialorder %v3498, 0.0
    %vm3524 = vcmp.ge.f32.partialorder %v3500, 0.0
    %vm3525 = vcmp.ge.f32.partialorder %v3503, 0.0
    %vm3526 = vcmp.ge.f32.partialorder %v3505, 0.0
    %vm3527 = vcmp.ge.f32.partialorder %v3508, 0.0
    %vm3528 = vcmp.ge.f32.partialorder %v3510, 0.0
    %v3529 = vstv %s3512
    %v3530 = vmul.f32 %v3529, %v3473
    %v3531 = vmul.f32 %v3529, %v3475
    %v3532 = vmul.f32 %v3529, %v3478
    %v3533 = vmul.f32 %v3529, %v3480
    %v3534 = vmul.f32 %v3529, %v3483
    %v3535 = vmul.f32 %v3529, %v3485
    %v3536 = vmul.f32 %v3529, %v3488
    %v3537 = vmul.f32 %v3529, %v3490
    %v3538 = vmul.f32 %v3529, %v3493
    %v3539 = vmul.f32 %v3529, %v3495
    %v3540 = vmul.f32 %v3529, %v3498
    %v3541 = vmul.f32 %v3529, %v3500
    %v3542 = vmul.f32 %v3529, %v3503
    %v3543 = vmul.f32 %v3529, %v3505
    %v3544 = vmul.f32 %v3529, %v3508
    %v3545 = vmul.f32 %v3529, %v3510
    %v3546 = vsel %vm3513, %v3473, %v3530
    %v3547 = vsel %vm3514, %v3475, %v3531
    %v3548 = vsel %vm3515, %v3478, %v3532
    %v3549 = vsel %vm3516, %v3480, %v3533
    %v3550 = vsel %vm3517, %v3483, %v3534
    %v3551 = vsel %vm3518, %v3485, %v3535
    %v3552 = vsel %vm3519, %v3488, %v3536
    %v3553 = vsel %vm3520, %v3490, %v3537
    %v3554 = vsel %vm3521, %v3493, %v3538
    %v3555 = vsel %vm3522, %v3495, %v3539
    %v3556 = vsel %vm3523, %v3498, %v3540
    %v3557 = vsel %vm3524, %v3500, %v3541
    %v3558 = vsel %vm3525, %v3503, %v3542
    %v3559 = vsel %vm3526, %v3505, %v3543
    %v3560 = vsel %vm3527, %v3508, %v3544
    %v3561 = vsel %vm3528, %v3510, %v3545
    %v3562 = vld [vmem:[%s7] sm:$0xf]
    %v3563 = vld [vmem:[%s7 + $0x4] sm:$0xf]
    %v3564 = vld [vmem:[%s7 + $0x8] sm:$0xf]
    %v3565 = vld [vmem:[%s7 + $0xc] sm:$0xf]
    %v3566 = vpack.c.bf16 %v3547, %v3546
    %v3567 = vpack.c.bf16 %v3549, %v3548
    %v3568 = vpack.c.bf16 %v3551, %v3550
    %v3569 = vpack.c.bf16 %v3553, %v3552
    %v3570 = vpack.c.bf16 %v3555, %v3554
    %v3571 = vpack.c.bf16 %v3557, %v3556
    %v3572 = vpack.c.bf16 %v3559, %v3558
    %v3573 = vpack.c.bf16 %v3561, %v3560
    %3574 = vset.pattern.permute.xlu0 2
    %3575 = vperm.xlu0 %3574, %v48
    %v3576 = vpop.permute.xlu0 %3575
    %3578 = vset.pattern.permute.xlu0 2
    %3579 = vperm.xlu0 %3578, %v49
    %v3580 = vpop.permute.xlu0 %3579
    %3582 = vset.pattern.permute.xlu0 2
    %3583 = vperm.xlu0 %3582, %v50
    %v3584 = vpop.permute.xlu0 %3583
    %3586 = vset.pattern.permute.xlu0 2
    %3587 = vperm.xlu0 %3586, %v51
    %v3588 = vpop.permute.xlu0 %3587
    %v3594 = vunpack.c.l.b16 %v3562
    %v3595 = vunpack.c.l.b16 %v3563
    %v3596 = vunpack.c.l.b16 %v3564
    %v3597 = vunpack.c.l.b16 %v3565
    %v3598 = vpack.c.b16 %v3595, %v3594
    %v3599 = vpack.c.b16 %v3597, %v3596
    %3602 = vmatpush.bf16.msra.mxu0 %v3573
    %3603 = vmatpush.bf16.msra.mxu0 %v3572
    %3604 = vmatpush.bf16.msra.mxu0 %v3571
    %3605 = vmatpush.bf16.msra.mxu0 %v3570
    %3606 = vmatpush.bf16.msra.mxu0 %v3569
    %3607 = vmatpush.bf16.msra.mxu0 %v3568
    %3608 = vmatpush.bf16.msra.mxu0 %v3567
    %3609 = vmatpush.bf16.msra.mxu0 %v3566
    %3610 = vmatmul.bf16.gmra.mxu0 %v3598
    %v3611 = vpop.f32.mrf.mxu0
    %v3612 = vadd.f32 %v3576, %v3611
    %v3613 = vpop.f32.mrf.mxu0
    %v3614 = vadd.f32 %v3580, %v3613
    %3615 = vmatmul.bf16.gmra.mxu0 %v3599
    %v3616 = vpop.f32.mrf.mxu0
    %v3617 = vadd.f32 %v3584, %v3616
    %v3618 = vpop.f32.mrf.mxu0
    %v3619 = vadd.f32 %v3588, %v3618
    %3620 = vdwg.mxu0
    %vm3621 = vcmask 15360
    %3622 = vst.msk [vmem:[%s9] sm:$0xff] %vm3621, %v3612
    %3623 = vst.msk [vmem:[%s9 + $0x8] sm:$0xff] %vm3621, %v3614
    %3624 = vst.msk [vmem:[%s9 + $0x10] sm:$0xff] %vm3621, %v3617
    %3625 = vst.msk [vmem:[%s9 + $0x18] sm:$0xff] %vm3621, %v3619
    // Predicated region
    $region42: #{embedding_net_forward.1} parent=1 // pred_check
      _
    $region43: #{embedding_net_forward.1} parent=1 // pred_check_branch
      %3627 = sbr.rel (0) target = $region45
    $region44: #{embedding_net_forward.1} parent=1 // pred_region
      _
    $region45: #{embedding_net_forward.1} parent=1 // pred_fallthru
      _
    // Predicated region
    $region46: #{embedding_net_forward.1} parent=1 // pred_check
      _
    $region47: #{embedding_net_forward.1} parent=1 // pred_check_branch
      %3629 = sbr.rel (0) target = $region49
    $region48: #{embedding_net_forward.1} parent=1 // pred_region
      _
    $region49: #{embedding_net_forward.1} parent=1 // pred_fallthru
      _
    %3630 = vsyncpa [#allocation3], 1

</llo_original>
